<compile_context>
chip_gen: v7x
topology: tpu7x:2x2x1
jax: 0.10.0
libtpu: 0.0.40
codegen_flags: <defaults>
</compile_context>

<pallas_src>
import functools

import jax
import jax.numpy as jnp
from jax.experimental import pallas as pl
from jax.experimental.pallas import tpu as pltpu

HIDDEN = 750   # fixed by the PyTorch module
H_PAD = 768    # 6 * 128: exact MXU / vreg tiles
LANE = 128     # lane-dense width for inputs, heads and outputs


def _cdiv(a, b):
    return -(-a // b)


def _round_up(x, m):
    return (x + m - 1) // m * m


def _pad_axis(x, target, axis):
    pad = target - x.shape[axis]
    if pad <= 0:
        return x
    widths = [(0, 0)] * x.ndim
    widths[axis] = (0, pad)
    return jnp.pad(x, widths)


def _vae_kernel(max_action,
                sa_ref, noise_ref,
                e1w_ref, e1b_ref,
                e2w_ref, e2b_ref,
                msw_ref, msb_ref,
                d1w_ref, d1b_ref,
                d2w_ref, d2b_ref,
                d3w_ref, d3b_ref,
                u_ref, mean_ref, std_ref):
    f32 = jnp.float32
    bf16 = jnp.bfloat16

    sa = sa_ref[...]                                   # (TB, 128) bf16 slab

    # ----- encoder (single K=128 matmul for e1) -----
    h = jnp.dot(sa, e1w_ref[...], preferred_element_type=f32) + e1b_ref[...]
    h = jnp.maximum(h, 0.0).astype(bf16)
    h2 = jnp.maximum(
        jnp.dot(h, e2w_ref[...], preferred_element_type=f32) + e2b_ref[...],
        0.0)                                           # f32; feeds only the heads

    # fused mean / log_std head, kept in f32 for parity with the PyTorch module
    ms = jnp.dot(h2, msw_ref[...], preferred_element_type=f32) + msb_ref[...]
    mean = ms[:, :LANE]                                # padded lanes are 0
    log_std = jnp.clip(ms[:, LANE:], -4.0, 15.0)       # padded lanes are 0
    std = jnp.exp(log_std)                             # padded lanes are 1

    # reparameterization: z = mean + std * eps; noise padded lanes are 0 so
    # z's padded lanes are exactly 0.
    z = mean + std * noise_ref[...]

    # ----- decoder (single K=128 matmul for d1) -----
    # decoder input slab: z occupies lanes [0, L), sa occupies lanes [L, ...);
    # the two slabs are lane-disjoint, so a plain add concatenates them.
    dz = z.astype(bf16) + sa
    d = jnp.dot(dz, d1w_ref[...], preferred_element_type=f32) + d1b_ref[...]
    d = jnp.maximum(d, 0.0).astype(bf16)
    d = jnp.maximum(
        jnp.dot(d, d2w_ref[...], preferred_element_type=f32) + d2b_ref[...],
        0.0).astype(bf16)
    u = max_action * jnp.tanh(
        jnp.dot(d, d3w_ref[...], preferred_element_type=f32) + d3b_ref[...])

    u_ref[...] = u
    mean_ref[...] = mean
    std_ref[...] = std


def init_vae_params(key, state_dim, action_dim, latent_dim):
    """Deterministic PyTorch-Linear-style init; weights stored as (in, out), f32."""
    def linear(k, fan_in, fan_out):
        kw, kb = jax.random.split(k)
        bound = 1.0 / jnp.sqrt(jnp.float32(fan_in))
        w = jax.random.uniform(kw, (fan_in, fan_out), jnp.float32, -bound, bound)
        b = jax.random.uniform(kb, (1, fan_out), jnp.float32, -bound, bound)
        return w, b

    ks = jax.random.split(key, 7)
    p = {}
    p["e1_w"], p["e1_b"] = linear(ks[0], state_dim + action_dim, HIDDEN)
    p["e2_w"], p["e2_b"] = linear(ks[1], HIDDEN, HIDDEN)
    p["mean_w"], p["mean_b"] = linear(ks[2], HIDDEN, latent_dim)
    p["log_std_w"], p["log_std_b"] = linear(ks[3], HIDDEN, latent_dim)
    p["d1_w"], p["d1_b"] = linear(ks[4], state_dim + latent_dim, HIDDEN)
    p["d2_w"], p["d2_b"] = linear(ks[5], HIDDEN, HIDDEN)
    p["d3_w"], p["d3_b"] = linear(ks[6], HIDDEN, action_dim)
    return p


def pack_vae_params(params, state_dim, action_dim, latent_dim):
    """One-time host-side packing: lane-pack / zero-pad / bf16-cast the weights."""
    S, A, L = state_dim, action_dim, latent_dim
    assert L + S + A <= LANE, "fused lane-packed layout needs latent+state+action <= 128"
    bf16 = jnp.bfloat16

    # e1: input slab has state at lanes [L, L+S), action at [L+S, L+S+A).
    e1_w = jnp.zeros((LANE, H_PAD), jnp.float32)
    e1_w = e1_w.at[L:L + S, :HIDDEN].set(params["e1_w"][:S])
    e1_w = e1_w.at[L + S:L + S + A, :HIDDEN].set(params["e1_w"][S:])
    e1_w = e1_w.astype(bf16)
    e1_b = _pad_axis(params["e1_b"], H_PAD, 1)

    e2_w = _pad_axis(_pad_axis(params["e2_w"], H_PAD, 0), H_PAD, 1).astype(bf16)
    e2_b = _pad_axis(params["e2_b"], H_PAD, 1)

    # fused mean / log_std head (kept f32): mean weights in lanes [0, L),
    # log_std in [LANE, LANE+L); all padding is zero so padded mean cols = 0
    # and padded log_std cols = 0 (=> std padding = exp(0) = 1, sliced off).
    ms_w = jnp.zeros((H_PAD, 2 * LANE), jnp.float32)
    ms_w = ms_w.at[:HIDDEN, :L].set(params["mean_w"])
    ms_w = ms_w.at[:HIDDEN, LANE:LANE + L].set(params["log_std_w"])
    ms_b = jnp.zeros((1, 2 * LANE), jnp.float32)
    ms_b = ms_b.at[:, :L].set(params["mean_b"])
    ms_b = ms_b.at[:, LANE:LANE + L].set(params["log_std_b"])

    # d1: decoder input slab has z at lanes [0, L), state at [L, L+S); the
    # action lanes [L+S, L+S+A) get zero weight rows so they contribute nothing.
    d1_w = jnp.zeros((LANE, H_PAD), jnp.float32)
    d1_w = d1_w.at[:L, :HIDDEN].set(params["d1_w"][S:])
    d1_w = d1_w.at[L:L + S, :HIDDEN].set(params["d1_w"][:S])
    d1_w = d1_w.astype(bf16)
    d1_b = _pad_axis(params["d1_b"], H_PAD, 1)

    d2_w = _pad_axis(_pad_axis(params["d2_w"], H_PAD, 0), H_PAD, 1).astype(bf16)
    d2_b = _pad_axis(params["d2_b"], H_PAD, 1)

    d3_w = _pad_axis(_pad_axis(params["d3_w"], H_PAD, 0), LANE, 1).astype(bf16)
    d3_b = _pad_axis(params["d3_b"], LANE, 1)

    return dict(e1_w=e1_w, e1_b=e1_b,
                e2_w=e2_w, e2_b=e2_b,
                ms_w=ms_w, ms_b=ms_b,
                d1_w=d1_w, d1_b=d1_b,
                d2_w=d2_w, d2_b=d2_b,
                d3_w=d3_w, d3_b=d3_b)


def vae_forward_pallas(packed, state, action, noise, max_action):
    # NOTE: max_action is a static Python float baked into the kernel closure
    # (matches the PyTorch module attribute). Pass a fresh float, not a tracer.
    B, S = state.shape
    A = action.shape[1]
    L = noise.shape[1]
    assert L + S + A <= LANE, "fused lane-packed layout needs latent+state+action <= 128"

    # Host-side lane packing: one bf16 (B, 128) slab holding state and action.
    sa = jnp.zeros((B, LANE), jnp.float32)
    sa = sa.at[:, L:L + S].set(state.astype(jnp.float32))
    sa = sa.at[:, L + S:L + S + A].set(action.astype(jnp.float32))
    sa = sa.astype(jnp.bfloat16)
    noise_p = _pad_axis(noise.astype(jnp.float32), LANE, 1)

    # Batch tiling: single step for tiny batches; otherwise >= 2 (even) grid
    # steps so both v7x TensorCores get work, TB capped at 512 and fitted to B
    # so padded-row waste stays below one tile.
    if B < 128:
        TB = _round_up(max(B, 1), 8)
        n_steps = 1
    else:
        n_steps = max(2, _cdiv(B, 512))
        if n_steps % 2:
            n_steps += 1
        TB = _round_up(_cdiv(B, n_steps), 8)
    B_pad = n_steps * TB

    sa_p = _pad_axis(sa, B_pad, 0)
    noise_p = _pad_axis(noise_p, B_pad, 0)

    weight_names = ["e1_w", "e1_b", "e2_w", "e2_b", "ms_w", "ms_b",
                    "d1_w", "d1_b", "d2_w", "d2_b", "d3_w", "d3_b"]
    weights = [packed[n] for n in weight_names]

    def batch_spec():
        return pl.BlockSpec((TB, LANE), lambda i: (i, 0))

    def resident_spec(w):
        # full-array block, same block index on every grid step => weights are
        # fetched once and stay resident in VMEM across the batch grid.
        return pl.BlockSpec(w.shape, lambda i: (0, 0))

    in_specs = ([batch_spec(), batch_spec()]
                + [resident_spec(w) for w in weights])
    out_specs = (batch_spec(), batch_spec(), batch_spec())

    kernel = functools.partial(_vae_kernel, float(max_action))
    u_p, mean_p, std_p = pl.pallas_call(
        kernel,
        grid=(n_steps,),
        out_shape=(jax.ShapeDtypeStruct((B_pad, LANE), jnp.float32),   # u
                   jax.ShapeDtypeStruct((B_pad, LANE), jnp.float32),   # mean
                   jax.ShapeDtypeStruct((B_pad, LANE), jnp.float32)),  # std
        in_specs=in_specs,
        out_specs=out_specs,
        compiler_params=pltpu.CompilerParams(
            dimension_semantics=("parallel",),
            vmem_limit_bytes=32 << 20),
    )(sa_p, noise_p, *weights)

    return u_p[:B, :A], mean_p[:B, :L], std_p[:B, :L]


def vae_forward_ref(params, state, action, noise, max_action):
    """Pure-JAX f32 reference mirroring the PyTorch forward."""
    sa = jnp.concatenate([state, action], axis=1)
    h = jax.nn.relu(sa @ params["e1_w"] + params["e1_b"])
    h = jax.nn.relu(h @ params["e2_w"] + params["e2_b"])
    mean = h @ params["mean_w"] + params["mean_b"]
    log_std = jnp.clip(h @ params["log_std_w"] + params["log_std_b"], -4.0, 15.0)
    std = jnp.exp(log_std)
    z = mean + std * noise
    sz = jnp.concatenate([state, z], axis=1)
    d = jax.nn.relu(sz @ params["d1_w"] + params["d1_b"])
    d = jax.nn.relu(d @ params["d2_w"] + params["d2_b"])
    u = max_action * jnp.tanh(d @ params["d3_w"] + params["d3_b"])
    return u, mean, std


if __name__ == "__main__":
    state_dim, action_dim, latent_dim = 12, 4, 8
    max_action = 1.0
    batch = 8

    key = jax.random.PRNGKey(0)
    k_param, k_state, k_action, k_noise = jax.random.split(key, 4)

    params = init_vae_params(k_param, state_dim, action_dim, latent_dim)
    packed = pack_vae_params(params, state_dim, action_dim, latent_dim)

    state = jax.random.normal(k_state, (batch, state_dim), jnp.float32)
    action = jax.random.normal(k_action, (batch, action_dim), jnp.float32)
    # TODO(synk): torch.randn_like(std) is sampled host-side and passed in so
    # the kernel is deterministic for the correctness check.
    noise = jax.random.normal(k_noise, (batch, latent_dim), jnp.float32)

    u, mean, std = vae_forward_pallas(packed, state, action, noise, max_action)
    jax.block_until_ready((u, mean, std))

    u_r, mean_r, std_r = vae_forward_ref(params, state, action, noise, max_action)
    # bf16 weights/activations in the kernel vs f32 reference -> loose tolerances.
    assert jnp.allclose(u, u_r, atol=5e-2, rtol=5e-2)
    assert jnp.allclose(mean, mean_r, atol=5e-2, rtol=5e-2)
    assert jnp.allclose(std, std_r, atol=5e-2, rtol=5e-2)

    print("KERNEL_OK")
</pallas_src>

<mosaic_0001>
module attributes {stable_mosaic.version = 11 : i64} {
  func.func @_vae_kernel(%arg0: i32, %arg1: memref<8x128xbf16, #tpu.memory_space<vmem>>, %arg2: memref<8x128xf32, #tpu.memory_space<vmem>>, %arg3: memref<128x768xbf16, #tpu.memory_space<vmem>>, %arg4: memref<1x768xf32, #tpu.memory_space<vmem>>, %arg5: memref<768x768xbf16, #tpu.memory_space<vmem>>, %arg6: memref<1x768xf32, #tpu.memory_space<vmem>>, %arg7: memref<768x256xf32, #tpu.memory_space<vmem>>, %arg8: memref<1x256xf32, #tpu.memory_space<vmem>>, %arg9: memref<128x768xbf16, #tpu.memory_space<vmem>>, %arg10: memref<1x768xf32, #tpu.memory_space<vmem>>, %arg11: memref<768x768xbf16, #tpu.memory_space<vmem>>, %arg12: memref<1x768xf32, #tpu.memory_space<vmem>>, %arg13: memref<768x128xbf16, #tpu.memory_space<vmem>>, %arg14: memref<1x128xf32, #tpu.memory_space<vmem>>, %arg15: memref<8x128xf32, #tpu.memory_space<vmem>>, %arg16: memref<8x128xf32, #tpu.memory_space<vmem>>, %arg17: memref<8x128xf32, #tpu.memory_space<vmem>>) attributes {dimension_semantics = [#tpu.dimension_semantics<parallel>], iteration_bounds = array<i64: 1>, scalar_prefetch = 0 : i64, scratch_operands = 0 : i64, tpu.core_type = #tpu.core_type<tc>, window_params = [{transform_indices = @transform_0, window_bounds = array<i64: 8, 128>}, {transform_indices = @transform_1, window_bounds = array<i64: 8, 128>}, {pipeline_mode = #tpu.pipeline_mode<synchronous>, transform_indices = @transform_2, window_bounds = array<i64: 128, 768>}, {pipeline_mode = #tpu.pipeline_mode<synchronous>, transform_indices = @transform_3, window_bounds = array<i64: 1, 768>}, {pipeline_mode = #tpu.pipeline_mode<synchronous>, transform_indices = @transform_4, window_bounds = array<i64: 768, 768>}, {pipeline_mode = #tpu.pipeline_mode<synchronous>, transform_indices = @transform_5, window_bounds = array<i64: 1, 768>}, {pipeline_mode = #tpu.pipeline_mode<synchronous>, transform_indices = @transform_6, window_bounds = array<i64: 768, 256>}, {pipeline_mode = #tpu.pipeline_mode<synchronous>, transform_indices = @transform_7, window_bounds = array<i64: 1, 256>}, {pipeline_mode = #tpu.pipeline_mode<synchronous>, transform_indices = @transform_8, window_bounds = array<i64: 128, 768>}, {pipeline_mode = #tpu.pipeline_mode<synchronous>, transform_indices = @transform_9, window_bounds = array<i64: 1, 768>}, {pipeline_mode = #tpu.pipeline_mode<synchronous>, transform_indices = @transform_10, window_bounds = array<i64: 768, 768>}, {pipeline_mode = #tpu.pipeline_mode<synchronous>, transform_indices = @transform_11, window_bounds = array<i64: 1, 768>}, {pipeline_mode = #tpu.pipeline_mode<synchronous>, transform_indices = @transform_12, window_bounds = array<i64: 768, 128>}, {pipeline_mode = #tpu.pipeline_mode<synchronous>, transform_indices = @transform_13, window_bounds = array<i64: 1, 128>}, {transform_indices = @transform_14, window_bounds = array<i64: 8, 128>}, {transform_indices = @transform_15, window_bounds = array<i64: 8, 128>}, {transform_indices = @transform_16, window_bounds = array<i64: 8, 128>}]} {
    %c0 = arith.constant 0 : index
    %c0_0 = arith.constant 0 : index
    %0 = vector.load %arg1[%c0, %c0_0] : memref<8x128xbf16, #tpu.memory_space<vmem>>, vector<8x128xbf16>
    %c0_1 = arith.constant 0 : index
    %c0_2 = arith.constant 0 : index
    %1 = vector.load %arg3[%c0_1, %c0_2] : memref<128x768xbf16, #tpu.memory_space<vmem>>, vector<128x768xbf16>
    %cst = arith.constant dense<0.000000e+00> : vector<8x768xf32>
    %2 = tpu.matmul %0, %1, %cst {dimension_numbers = #tpu.dot_dimension_numbers<[1], [0], [0], [1], [0, 0, 1, 1], [], []>} : vector<8x128xbf16>, vector<128x768xbf16>, vector<8x768xf32> -> vector<8x768xf32>
    %c0_3 = arith.constant 0 : index
    %c0_4 = arith.constant 0 : index
    %3 = vector.load %arg4[%c0_3, %c0_4] : memref<1x768xf32, #tpu.memory_space<vmem>>, vector<1x768xf32>
    %4 = vector.broadcast %3 : vector<1x768xf32> to vector<8x768xf32>
    %5 = arith.addf %2, %4 : vector<8x768xf32>
    %cst_5 = arith.constant 0.000000e+00 : f32
    %6 = vector.broadcast %cst_5 : f32 to vector<8x768xf32>
    %7 = arith.maximumf %5, %6 : vector<8x768xf32>
    %8 = arith.truncf %7 : vector<8x768xf32> to vector<8x768xbf16>
    %c0_6 = arith.constant 0 : index
    %c0_7 = arith.constant 0 : index
    %9 = vector.load %arg5[%c0_6, %c0_7] : memref<768x768xbf16, #tpu.memory_space<vmem>>, vector<768x768xbf16>
    %cst_8 = arith.constant dense<0.000000e+00> : vector<8x768xf32>
    %10 = tpu.matmul %8, %9, %cst_8 {dimension_numbers = #tpu.dot_dimension_numbers<[1], [0], [0], [1], [0, 0, 1, 1], [], []>} : vector<8x768xbf16>, vector<768x768xbf16>, vector<8x768xf32> -> vector<8x768xf32>
    %c0_9 = arith.constant 0 : index
    %c0_10 = arith.constant 0 : index
    %11 = vector.load %arg6[%c0_9, %c0_10] : memref<1x768xf32, #tpu.memory_space<vmem>>, vector<1x768xf32>
    %12 = vector.broadcast %11 : vector<1x768xf32> to vector<8x768xf32>
    %13 = arith.addf %10, %12 : vector<8x768xf32>
    %cst_11 = arith.constant 0.000000e+00 : f32
    %14 = vector.broadcast %cst_11 : f32 to vector<8x768xf32>
    %15 = arith.maximumf %13, %14 : vector<8x768xf32>
    %c0_12 = arith.constant 0 : index
    %c0_13 = arith.constant 0 : index
    %16 = vector.load %arg7[%c0_12, %c0_13] : memref<768x256xf32, #tpu.memory_space<vmem>>, vector<768x256xf32>
    %cst_14 = arith.constant dense<0.000000e+00> : vector<8x256xf32>
    %17 = tpu.matmul %15, %16, %cst_14 {dimension_numbers = #tpu.dot_dimension_numbers<[1], [0], [0], [1], [0, 0, 1, 1], [], []>} : vector<8x768xf32>, vector<768x256xf32>, vector<8x256xf32> -> vector<8x256xf32>
    %c0_15 = arith.constant 0 : index
    %c0_16 = arith.constant 0 : index
    %18 = vector.load %arg8[%c0_15, %c0_16] : memref<1x256xf32, #tpu.memory_space<vmem>>, vector<1x256xf32>
    %19 = vector.broadcast %18 : vector<1x256xf32> to vector<8x256xf32>
    %20 = arith.addf %17, %19 : vector<8x256xf32>
    %21 = vector.extract_strided_slice %20 {offsets = [0, 0], sizes = [8, 128], strides = [1, 1]} : vector<8x256xf32> to vector<8x128xf32>
    %22 = vector.extract_strided_slice %20 {offsets = [0, 128], sizes = [8, 128], strides = [1, 1]} : vector<8x256xf32> to vector<8x128xf32>
    %cst_17 = arith.constant -4.000000e+00 : f32
    %cst_18 = arith.constant 1.500000e+01 : f32
    %23 = vector.broadcast %cst_17 : f32 to vector<8x128xf32>
    %24 = arith.maximumf %23, %22 : vector<8x128xf32>
    %25 = vector.broadcast %cst_18 : f32 to vector<8x128xf32>
    %26 = arith.minimumf %25, %24 : vector<8x128xf32>
    %27 = math.exp %26 : vector<8x128xf32>
    %c0_19 = arith.constant 0 : index
    %c0_20 = arith.constant 0 : index
    %28 = vector.load %arg2[%c0_19, %c0_20] : memref<8x128xf32, #tpu.memory_space<vmem>>, vector<8x128xf32>
    %29 = arith.mulf %27, %28 : vector<8x128xf32>
    %30 = arith.addf %21, %29 : vector<8x128xf32>
    %31 = arith.truncf %30 : vector<8x128xf32> to vector<8x128xbf16>
    %32 = arith.addf %31, %0 : vector<8x128xbf16>
    %c0_21 = arith.constant 0 : index
    %c0_22 = arith.constant 0 : index
    %33 = vector.load %arg9[%c0_21, %c0_22] : memref<128x768xbf16, #tpu.memory_space<vmem>>, vector<128x768xbf16>
    %cst_23 = arith.constant dense<0.000000e+00> : vector<8x768xf32>
    %34 = tpu.matmul %32, %33, %cst_23 {dimension_numbers = #tpu.dot_dimension_numbers<[1], [0], [0], [1], [0, 0, 1, 1], [], []>} : vector<8x128xbf16>, vector<128x768xbf16>, vector<8x768xf32> -> vector<8x768xf32>
    %c0_24 = arith.constant 0 : index
    %c0_25 = arith.constant 0 : index
    %35 = vector.load %arg10[%c0_24, %c0_25] : memref<1x768xf32, #tpu.memory_space<vmem>>, vector<1x768xf32>
    %36 = vector.broadcast %35 : vector<1x768xf32> to vector<8x768xf32>
    %37 = arith.addf %34, %36 : vector<8x768xf32>
    %cst_26 = arith.constant 0.000000e+00 : f32
    %38 = vector.broadcast %cst_26 : f32 to vector<8x768xf32>
    %39 = arith.maximumf %37, %38 : vector<8x768xf32>
    %40 = arith.truncf %39 : vector<8x768xf32> to vector<8x768xbf16>
    %c0_27 = arith.constant 0 : index
    %c0_28 = arith.constant 0 : index
    %41 = vector.load %arg11[%c0_27, %c0_28] : memref<768x768xbf16, #tpu.memory_space<vmem>>, vector<768x768xbf16>
    %cst_29 = arith.constant dense<0.000000e+00> : vector<8x768xf32>
    %42 = tpu.matmul %40, %41, %cst_29 {dimension_numbers = #tpu.dot_dimension_numbers<[1], [0], [0], [1], [0, 0, 1, 1], [], []>} : vector<8x768xbf16>, vector<768x768xbf16>, vector<8x768xf32> -> vector<8x768xf32>
    %c0_30 = arith.constant 0 : index
    %c0_31 = arith.constant 0 : index
    %43 = vector.load %arg12[%c0_30, %c0_31] : memref<1x768xf32, #tpu.memory_space<vmem>>, vector<1x768xf32>
    %44 = vector.broadcast %43 : vector<1x768xf32> to vector<8x768xf32>
    %45 = arith.addf %42, %44 : vector<8x768xf32>
    %cst_32 = arith.constant 0.000000e+00 : f32
    %46 = vector.broadcast %cst_32 : f32 to vector<8x768xf32>
    %47 = arith.maximumf %45, %46 : vector<8x768xf32>
    %48 = arith.truncf %47 : vector<8x768xf32> to vector<8x768xbf16>
    %c0_33 = arith.constant 0 : index
    %c0_34 = arith.constant 0 : index
    %49 = vector.load %arg13[%c0_33, %c0_34] : memref<768x128xbf16, #tpu.memory_space<vmem>>, vector<768x128xbf16>
    %cst_35 = arith.constant dense<0.000000e+00> : vector<8x128xf32>
    %50 = tpu.matmul %48, %49, %cst_35 {dimension_numbers = #tpu.dot_dimension_numbers<[1], [0], [0], [1], [0, 0, 1, 1], [], []>} : vector<8x768xbf16>, vector<768x128xbf16>, vector<8x128xf32> -> vector<8x128xf32>
    %c0_36 = arith.constant 0 : index
    %c0_37 = arith.constant 0 : index
    %51 = vector.load %arg14[%c0_36, %c0_37] : memref<1x128xf32, #tpu.memory_space<vmem>>, vector<1x128xf32>
    %52 = vector.broadcast %51 : vector<1x128xf32> to vector<8x128xf32>
    %53 = arith.addf %50, %52 : vector<8x128xf32>
    %54 = math.tanh %53 : vector<8x128xf32>
    %cst_38 = arith.constant 1.000000e+00 : f32
    %55 = vector.broadcast %cst_38 : f32 to vector<8x128xf32>
    %56 = arith.mulf %55, %54 : vector<8x128xf32>
    %c0_39 = arith.constant 0 : index
    %c0_40 = arith.constant 0 : index
    %57 = vector.load %arg15[%c0_39, %c0_40] : memref<8x128xf32, #tpu.memory_space<vmem>>, vector<8x128xf32>
    tpu.vector_store %arg15[%c0_39, %c0_40], %56 {strides = array<i32>} : memref<8x128xf32, #tpu.memory_space<vmem>>, vector<8x128xf32>,
    %c0_41 = arith.constant 0 : index
    %c0_42 = arith.constant 0 : index
    %58 = vector.load %arg16[%c0_41, %c0_42] : memref<8x128xf32, #tpu.memory_space<vmem>>, vector<8x128xf32>
    tpu.vector_store %arg16[%c0_41, %c0_42], %21 {strides = array<i32>} : memref<8x128xf32, #tpu.memory_space<vmem>>, vector<8x128xf32>,
    %c0_43 = arith.constant 0 : index
    %c0_44 = arith.constant 0 : index
    %59 = vector.load %arg17[%c0_43, %c0_44] : memref<8x128xf32, #tpu.memory_space<vmem>>, vector<8x128xf32>
    tpu.vector_store %arg17[%c0_43, %c0_44], %27 {strides = array<i32>} : memref<8x128xf32, #tpu.memory_space<vmem>>, vector<8x128xf32>,
    return
  }
  func.func @transform_0(%arg0: i32) -> (i32, i32) {
    %c0_i32 = arith.constant 0 : i32
    %c0_i32_0 = arith.constant 0 : i32
    return %arg0, %c0_i32 : i32, i32
  }
  func.func @transform_1(%arg0: i32) -> (i32, i32) {
    %c0_i32 = arith.constant 0 : i32
    %c0_i32_0 = arith.constant 0 : i32
    return %arg0, %c0_i32 : i32, i32
  }
  func.func @transform_2(%arg0: i32) -> (i32, i32) {
    %c0_i32 = arith.constant 0 : i32
    %c0_i32_0 = arith.constant 0 : i32
    %c0_i32_1 = arith.constant 0 : i32
    return %c0_i32, %c0_i32_0 : i32, i32
  }
  func.func @transform_3(%arg0: i32) -> (i32, i32) {
    %c0_i32 = arith.constant 0 : i32
    %c0_i32_0 = arith.constant 0 : i32
    %c0_i32_1 = arith.constant 0 : i32
    return %c0_i32, %c0_i32_0 : i32, i32
  }
  func.func @transform_4(%arg0: i32) -> (i32, i32) {
    %c0_i32 = arith.constant 0 : i32
    %c0_i32_0 = arith.constant 0 : i32
    %c0_i32_1 = arith.constant 0 : i32
    return %c0_i32, %c0_i32_0 : i32, i32
  }
  func.func @transform_5(%arg0: i32) -> (i32, i32) {
    %c0_i32 = arith.constant 0 : i32
    %c0_i32_0 = arith.constant 0 : i32
    %c0_i32_1 = arith.constant 0 : i32
    return %c0_i32, %c0_i32_0 : i32, i32
  }
  func.func @transform_6(%arg0: i32) -> (i32, i32) {
    %c0_i32 = arith.constant 0 : i32
    %c0_i32_0 = arith.constant 0 : i32
    %c0_i32_1 = arith.constant 0 : i32
    return %c0_i32, %c0_i32_0 : i32, i32
  }
  func.func @transform_7(%arg0: i32) -> (i32, i32) {
    %c0_i32 = arith.constant 0 : i32
    %c0_i32_0 = arith.constant 0 : i32
    %c0_i32_1 = arith.constant 0 : i32
    return %c0_i32, %c0_i32_0 : i32, i32
  }
  func.func @transform_8(%arg0: i32) -> (i32, i32) {
    %c0_i32 = arith.constant 0 : i32
    %c0_i32_0 = arith.constant 0 : i32
    %c0_i32_1 = arith.constant 0 : i32
    return %c0_i32, %c0_i32_0 : i32, i32
  }
  func.func @transform_9(%arg0: i32) -> (i32, i32) {
    %c0_i32 = arith.constant 0 : i32
    %c0_i32_0 = arith.constant 0 : i32
    %c0_i32_1 = arith.constant 0 : i32
    return %c0_i32, %c0_i32_0 : i32, i32
  }
  func.func @transform_10(%arg0: i32) -> (i32, i32) {
    %c0_i32 = arith.constant 0 : i32
    %c0_i32_0 = arith.constant 0 : i32
    %c0_i32_1 = arith.constant 0 : i32
    return %c0_i32, %c0_i32_0 : i32, i32
  }
  func.func @transform_11(%arg0: i32) -> (i32, i32) {
    %c0_i32 = arith.constant 0 : i32
    %c0_i32_0 = arith.constant 0 : i32
    %c0_i32_1 = arith.constant 0 : i32
    return %c0_i32, %c0_i32_0 : i32, i32
  }
  func.func @transform_12(%arg0: i32) -> (i32, i32) {
    %c0_i32 = arith.constant 0 : i32
    %c0_i32_0 = arith.constant 0 : i32
    %c0_i32_1 = arith.constant 0 : i32
    return %c0_i32, %c0_i32_0 : i32, i32
  }
  func.func @transform_13(%arg0: i32) -> (i32, i32) {
    %c0_i32 = arith.constant 0 : i32
    %c0_i32_0 = arith.constant 0 : i32
    %c0_i32_1 = arith.constant 0 : i32
    return %c0_i32, %c0_i32_0 : i32, i32
  }
  func.func @transform_14(%arg0: i32) -> (i32, i32) {
    %c0_i32 = arith.constant 0 : i32
    %c0_i32_0 = arith.constant 0 : i32
    return %arg0, %c0_i32 : i32, i32
  }
  func.func @transform_15(%arg0: i32) -> (i32, i32) {
    %c0_i32 = arith.constant 0 : i32
    %c0_i32_0 = arith.constant 0 : i32
    return %arg0, %c0_i32 : i32, i32
  }
  func.func @transform_16(%arg0: i32) -> (i32, i32) {
    %c0_i32 = arith.constant 0 : i32
    %c0_i32_0 = arith.constant 0 : i32
    return %arg0, %c0_i32 : i32, i32
  }
}

</mosaic_0001>

<llo_original>
// kernel: tpu_custom_call.1
$region0: #{tpu_custom_call.1}
  #allocation0 [shape = 'u32[]', space=smem, size = 0x4, offset = 0x4, fixed_abs, tag = 'smem constant byte address 0x4 - core index']
  #allocation1 [shape = 'u32[144,128]{1,0:T(1,128)}', space=vmem, size = 0x12000, scoped, tag = 'internal scratch']
  %s0 = inlined_call_operand.hbm [shape: bf16[8,128], index: 0, kind: input, shape index: {}]
  %s1 = inlined_call_operand.hbm [shape: f32[8,128], index: 1, kind: input, shape index: {}]
  %s2 = inlined_call_operand.hbm [shape: bf16[128,768], index: 2, kind: input, shape index: {}]
  %s3 = inlined_call_operand.hbm [shape: f32[1,768], index: 3, kind: input, shape index: {}]
  %s4 = inlined_call_operand.hbm [shape: bf16[768,768], index: 4, kind: input, shape index: {}]
  %s5 = inlined_call_operand.hbm [shape: f32[1,768], index: 5, kind: input, shape index: {}]
  %s6 = inlined_call_operand.hbm [shape: f32[768,256], index: 6, kind: input, shape index: {}]
  %s7 = inlined_call_operand.hbm [shape: f32[1,256], index: 7, kind: input, shape index: {}]
  %s8 = inlined_call_operand.hbm [shape: bf16[128,768], index: 8, kind: input, shape index: {}]
  %s9 = inlined_call_operand.hbm [shape: f32[1,768], index: 9, kind: input, shape index: {}]
  %s10 = inlined_call_operand.hbm [shape: bf16[768,768], index: 10, kind: input, shape index: {}]
  %s11 = inlined_call_operand.hbm [shape: f32[1,768], index: 11, kind: input, shape index: {}]
  %s12 = inlined_call_operand.hbm [shape: bf16[768,128], index: 12, kind: input, shape index: {}]
  %s13 = inlined_call_operand.hbm [shape: f32[1,128], index: 13, kind: input, shape index: {}]
  %s14 = inlined_call_operand.hbm [shape: f32[8,128], index: 14, kind: output, shape index: {0}]
  %s15 = inlined_call_operand.hbm [shape: f32[8,128], index: 15, kind: output, shape index: {1}]
  %s16 = inlined_call_operand.hbm [shape: f32[8,128], index: 16, kind: output, shape index: {2}]
  %17 = xla_tuple %s14, %s15, %s16
  %s18 = sld [smem:[#allocation0]]
  $region138: #{tpu_custom_call.1} parent=0
    _
  %s20 = ssub.s32 1, %s18
  %s21 = scalar_select 0, %s20, %s18
  $region1: #{tpu_custom_call.1} parent=0
    #allocation2 [shape = 'u8[2048]{0}', space=vmem, size = 0x800, scoped, tag = 'input window, operand 0, single buffered']
    #allocation3 [shape = 's32[1]{0}', space=sflag, size = 0x4, scoped, tag = 'scoped memory for tpu_custom_call.1']
    #allocation4 [shape = 's32[1]{0}', space=sflag, size = 0x4, scoped, tag = 'scoped memory for tpu_custom_call.1']
    #allocation5 [shape = 'u8[4096]{0}', space=vmem, size = 0x1000, scoped, tag = 'input window, operand 1, single buffered']
    #allocation6 [shape = 's32[1]{0}', space=sflag, size = 0x4, scoped, tag = 'scoped memory for tpu_custom_call.1']
    #allocation7 [shape = 'u8[196608]{0}', space=vmem, size = 0x30000, scoped, tag = 'input window, operand 2, single buffered']
    #allocation8 [shape = 'u8[3072]{0}', space=vmem, size = 0xc00, scoped, tag = 'input window, operand 3, single buffered']
    #allocation9 [shape = 's32[1]{0}', space=sflag, size = 0x4, scoped, tag = 'scoped memory for tpu_custom_call.1']
    #allocation10 [shape = 'u8[1179648]{0}', space=vmem, size = 0x120000, scoped, tag = 'input window, operand 4, single buffered']
    #allocation11 [shape = 'u8[3072]{0}', space=vmem, size = 0xc00, scoped, tag = 'input window, operand 5, single buffered']
    #allocation12 [shape = 's32[1]{0}', space=sflag, size = 0x4, scoped, tag = 'scoped memory for tpu_custom_call.1']
    #allocation13 [shape = 'u8[786432]{0}', space=vmem, size = 0xc0000, scoped, tag = 'input window, operand 6, single buffered']
    #allocation14 [shape = 'u8[1024]{0}', space=vmem, size = 0x400, scoped, tag = 'input window, operand 7, single buffered']
    #allocation15 [shape = 's32[1]{0}', space=sflag, size = 0x4, scoped, tag = 'scoped memory for tpu_custom_call.1']
    #allocation16 [shape = 'u8[196608]{0}', space=vmem, size = 0x30000, scoped, tag = 'input window, operand 8, single buffered']
    #allocation17 [shape = 'u8[3072]{0}', space=vmem, size = 0xc00, scoped, tag = 'input window, operand 9, single buffered']
    #allocation18 [shape = 's32[1]{0}', space=sflag, size = 0x4, scoped, tag = 'scoped memory for tpu_custom_call.1']
    #allocation19 [shape = 'u8[1179648]{0}', space=vmem, size = 0x120000, scoped, tag = 'input window, operand 10, single buffered']
    #allocation20 [shape = 'u8[3072]{0}', space=vmem, size = 0xc00, scoped, tag = 'input window, operand 11, single buffered']
    #allocation21 [shape = 's32[1]{0}', space=sflag, size = 0x4, scoped, tag = 'scoped memory for tpu_custom_call.1']
    #allocation22 [shape = 'u8[196608]{0}', space=vmem, size = 0x30000, scoped, tag = 'input window, operand 12, single buffered']
    #allocation23 [shape = 'u8[512]{0}', space=vmem, size = 0x400, scoped, tag = 'input window, operand 13, single buffered']
    #allocation24 [shape = 's32[1]{0}', space=sflag, size = 0x4, scoped, tag = 'scoped memory for tpu_custom_call.1']
    #allocation25 [shape = 'u8[4096]{0}', space=vmem, size = 0x1000, scoped, tag = 'output window, operand 0, single buffered']
    #allocation26 [shape = 'u8[4096]{0}', space=vmem, size = 0x1000, scoped, tag = 'output window, operand 1, single buffered']
    #allocation27 [shape = 's32[1]{0}', space=sflag, size = 0x4, scoped, tag = 'scoped memory for tpu_custom_call.1']
    #allocation28 [shape = 'u8[4096]{0}', space=vmem, size = 0x1000, scoped, tag = 'output window, operand 2, single buffered']
    %22 = vsyncpa [#allocation3], 0
    %23 = vsyncpa [#allocation6], 0
    %24 = vsyncpa [#allocation9], 0
    %25 = vsyncpa [#allocation12], 0
    %26 = vsyncpa [#allocation15], 0
    %27 = vsyncpa [#allocation18], 0
    %28 = vsyncpa [#allocation21], 0
    %29 = vsyncpa [#allocation24], 0
    %30 = vsyncpa [#allocation4], 0
    %31 = vsyncpa [#allocation27], 0
    // Predicated region
    $region2: #{tpu_custom_call.1} parent=1 // pred_check
      _
    $region3: #{tpu_custom_call.1} parent=1 // pred_check_branch
      %33 = sbr.rel (0) target = $region5
    $region4: #{tpu_custom_call.1} parent=1 // pred_region
      %s35 = ssub.s32 64, 64
      %36 = vsyncadd [#allocation3], %s35
      %s38 = sshll.u32 [#allocation2], 4
      %s39 = int_to_ptr.vmem [resolvable:$true] %s38
      %41 = dma.hbm_to_vmem [thread:$0]  %s0, 64, %s39, [#allocation3]
    $region5: #{tpu_custom_call.1} parent=1 // pred_fallthru
      _
    // Predicated region
    $region6: #{tpu_custom_call.1} parent=1 // pred_check
      _
    $region7: #{tpu_custom_call.1} parent=1 // pred_check_branch
      %43 = sbr.rel (0) target = $region9
    $region8: #{tpu_custom_call.1} parent=1 // pred_region
      %s45 = ssub.s32 128, 128
      %46 = vsyncadd [#allocation6], %s45
      %s48 = sshll.u32 [#allocation5], 4
      %s49 = int_to_ptr.vmem [resolvable:$true] %s48
      %51 = dma.hbm_to_vmem [thread:$0]  %s1, 128, %s49, [#allocation6]
    $region9: #{tpu_custom_call.1} parent=1 // pred_fallthru
      _
    // Predicated region
    $region10: #{tpu_custom_call.1} parent=1 // pred_check
      _
    $region11: #{tpu_custom_call.1} parent=1 // pred_check_branch
      %53 = sbr.rel (0) target = $region13
    $region12: #{tpu_custom_call.1} parent=1 // pred_region
      %s55 = ssub.s32 6144, 6144
      %56 = vsyncadd [#allocation6], %s55
      %s57 = sshll.u32 [#allocation7], 4
      %s58 = int_to_ptr.vmem [resolvable:$true] %s57
      %63 = dma.hbm_to_vmem [thread:$0]  %s2, 6144, %s58, [#allocation6], 384, 384, 24
    $region13: #{tpu_custom_call.1} parent=1 // pred_fallthru
      _
    // Predicated region
    $region14: #{tpu_custom_call.1} parent=1 // pred_check
      _
    $region15: #{tpu_custom_call.1} parent=1 // pred_check_branch
      %65 = sbr.rel (0) target = $region17
    $region16: #{tpu_custom_call.1} parent=1 // pred_region
      %s67 = ssub.s32 96, 96
      %68 = vsyncadd [#allocation9], %s67
      %s70 = sshll.u32 [#allocation8], 4
      %s71 = int_to_ptr.vmem [resolvable:$true] %s70
      %73 = dma.hbm_to_vmem [thread:$0]  %s3, 96, %s71, [#allocation9]
    $region17: #{tpu_custom_call.1} parent=1 // pred_fallthru
      _
    // Predicated region
    $region18: #{tpu_custom_call.1} parent=1 // pred_check
      _
    $region19: #{tpu_custom_call.1} parent=1 // pred_check_branch
      %75 = sbr.rel (0) target = $region21
    $region20: #{tpu_custom_call.1} parent=1 // pred_region
      %s77 = ssub.s32 36864, 36864
      %78 = vsyncadd [#allocation9], %s77
      %s79 = sshll.u32 [#allocation10], 4
      %s80 = int_to_ptr.vmem [resolvable:$true] %s79
      %85 = dma.hbm_to_vmem [thread:$0]  %s4, 36864, %s80, [#allocation9], 384, 384, 24
    $region21: #{tpu_custom_call.1} parent=1 // pred_fallthru
      _
    // Predicated region
    $region22: #{tpu_custom_call.1} parent=1 // pred_check
      _
    $region23: #{tpu_custom_call.1} parent=1 // pred_check_branch
      %87 = sbr.rel (0) target = $region25
    $region24: #{tpu_custom_call.1} parent=1 // pred_region
      %s89 = ssub.s32 96, 96
      %90 = vsyncadd [#allocation12], %s89
      %s92 = sshll.u32 [#allocation11], 4
      %s93 = int_to_ptr.vmem [resolvable:$true] %s92
      %95 = dma.hbm_to_vmem [thread:$0]  %s5, 96, %s93, [#allocation12]
    $region25: #{tpu_custom_call.1} parent=1 // pred_fallthru
      _
    // Predicated region
    $region26: #{tpu_custom_call.1} parent=1 // pred_check
      _
    $region27: #{tpu_custom_call.1} parent=1 // pred_check_branch
      %97 = sbr.rel (0) target = $region29
    $region28: #{tpu_custom_call.1} parent=1 // pred_region
      %s99 = ssub.s32 24576, 24576
      %100 = vsyncadd [#allocation12], %s99
      %s101 = sshll.u32 [#allocation13], 4
      %s102 = int_to_ptr.vmem [resolvable:$true] %s101
      %107 = dma.hbm_to_vmem [thread:$0]  %s6, 24576, %s102, [#allocation12], 256, 256, 16
    $region29: #{tpu_custom_call.1} parent=1 // pred_fallthru
      _
    // Predicated region
    $region30: #{tpu_custom_call.1} parent=1 // pred_check
      _
    $region31: #{tpu_custom_call.1} parent=1 // pred_check_branch
      %109 = sbr.rel (0) target = $region33
    $region32: #{tpu_custom_call.1} parent=1 // pred_region
      %s111 = ssub.s32 32, 32
      %112 = vsyncadd [#allocation15], %s111
      %s114 = sshll.u32 [#allocation14], 4
      %s115 = int_to_ptr.vmem [resolvable:$true] %s114
      %117 = dma.hbm_to_vmem [thread:$0]  %s7, 32, %s115, [#allocation15]
    $region33: #{tpu_custom_call.1} parent=1 // pred_fallthru
      _
    // Predicated region
    $region34: #{tpu_custom_call.1} parent=1 // pred_check
      _
    $region35: #{tpu_custom_call.1} parent=1 // pred_check_branch
      %119 = sbr.rel (0) target = $region37
    $region36: #{tpu_custom_call.1} parent=1 // pred_region
      %s121 = ssub.s32 6144, 6144
      %122 = vsyncadd [#allocation15], %s121
      %s123 = sshll.u32 [#allocation16], 4
      %s124 = int_to_ptr.vmem [resolvable:$true] %s123
      %129 = dma.hbm_to_vmem [thread:$0]  %s8, 6144, %s124, [#allocation15], 384, 384, 24
    $region37: #{tpu_custom_call.1} parent=1 // pred_fallthru
      _
    // Predicated region
    $region38: #{tpu_custom_call.1} parent=1 // pred_check
      _
    $region39: #{tpu_custom_call.1} parent=1 // pred_check_branch
      %131 = sbr.rel (0) target = $region41
    $region40: #{tpu_custom_call.1} parent=1 // pred_region
      %s133 = ssub.s32 96, 96
      %134 = vsyncadd [#allocation18], %s133
      %s136 = sshll.u32 [#allocation17], 4
      %s137 = int_to_ptr.vmem [resolvable:$true] %s136
      %139 = dma.hbm_to_vmem [thread:$0]  %s9, 96, %s137, [#allocation18]
    $region41: #{tpu_custom_call.1} parent=1 // pred_fallthru
      _
    // Predicated region
    $region42: #{tpu_custom_call.1} parent=1 // pred_check
      _
    $region43: #{tpu_custom_call.1} parent=1 // pred_check_branch
      %141 = sbr.rel (0) target = $region45
    $region44: #{tpu_custom_call.1} parent=1 // pred_region
      %s143 = ssub.s32 36864, 36864
      %144 = vsyncadd [#allocation18], %s143
      %s145 = sshll.u32 [#allocation19], 4
      %s146 = int_to_ptr.vmem [resolvable:$true] %s145
      %151 = dma.hbm_to_vmem [thread:$0]  %s10, 36864, %s146, [#allocation18], 384, 384, 24
    $region45: #{tpu_custom_call.1} parent=1 // pred_fallthru
      _
    // Predicated region
    $region46: #{tpu_custom_call.1} parent=1 // pred_check
      _
    $region47: #{tpu_custom_call.1} parent=1 // pred_check_branch
      %153 = sbr.rel (0) target = $region49
    $region48: #{tpu_custom_call.1} parent=1 // pred_region
      %s155 = ssub.s32 96, 96
      %156 = vsyncadd [#allocation21], %s155
      %s158 = sshll.u32 [#allocation20], 4
      %s159 = int_to_ptr.vmem [resolvable:$true] %s158
      %161 = dma.hbm_to_vmem [thread:$0]  %s11, 96, %s159, [#allocation21]
    $region49: #{tpu_custom_call.1} parent=1 // pred_fallthru
      _
    // Predicated region
    $region50: #{tpu_custom_call.1} parent=1 // pred_check
      _
    $region51: #{tpu_custom_call.1} parent=1 // pred_check_branch
      %163 = sbr.rel (0) target = $region53
    $region52: #{tpu_custom_call.1} parent=1 // pred_region
      %s165 = ssub.s32 6144, 6144
      %166 = vsyncadd [#allocation21], %s165
      %s167 = sshll.u32 [#allocation22], 4
      %s168 = int_to_ptr.vmem [resolvable:$true] %s167
      %173 = dma.hbm_to_vmem [thread:$0]  %s12, 6144, %s168, [#allocation21], 64, 64, 4
    $region53: #{tpu_custom_call.1} parent=1 // pred_fallthru
      _
    // Predicated region
    $region54: #{tpu_custom_call.1} parent=1 // pred_check
      _
    $region55: #{tpu_custom_call.1} parent=1 // pred_check_branch
      %175 = sbr.rel (0) target = $region57
    $region56: #{tpu_custom_call.1} parent=1 // pred_region
      %s177 = ssub.s32 16, 16
      %178 = vsyncadd [#allocation24], %s177
      %s180 = sshll.u32 [#allocation23], 4
      %s181 = int_to_ptr.vmem [resolvable:$true] %s180
      %183 = dma.hbm_to_vmem [thread:$0]  %s13, 16, %s181, [#allocation24]
    $region57: #{tpu_custom_call.1} parent=1 // pred_fallthru
      _
    // Predicated region
    $region58: #{tpu_custom_call.1} parent=1 // pred_check
      _
    $region59: #{tpu_custom_call.1} parent=1 // pred_check_branch
      %185 = sbr.rel (0) target = $region61
    $region60: #{tpu_custom_call.1} parent=1 // pred_region
      %186 = dma.done [#allocation3], 64
    $region61: #{tpu_custom_call.1} parent=1 // pred_fallthru
      _
    // Predicated region
    $region62: #{tpu_custom_call.1} parent=1 // pred_check
      _
    $region63: #{tpu_custom_call.1} parent=1 // pred_check_branch
      %188 = sbr.rel (0) target = $region65
    $region64: #{tpu_custom_call.1} parent=1 // pred_region
      %189 = dma.done [#allocation6], 128
    $region65: #{tpu_custom_call.1} parent=1 // pred_fallthru
      _
    // Predicated region
    $region66: #{tpu_custom_call.1} parent=1 // pred_check
      _
    $region67: #{tpu_custom_call.1} parent=1 // pred_check_branch
      %191 = sbr.rel (0) target = $region69
    $region68: #{tpu_custom_call.1} parent=1 // pred_region
      %192 = dma.done [#allocation6], 6144
    $region69: #{tpu_custom_call.1} parent=1 // pred_fallthru
      _
    // Predicated region
    $region70: #{tpu_custom_call.1} parent=1 // pred_check
      _
    $region71: #{tpu_custom_call.1} parent=1 // pred_check_branch
      %194 = sbr.rel (0) target = $region73
    $region72: #{tpu_custom_call.1} parent=1 // pred_region
      %195 = dma.done [#allocation9], 96
    $region73: #{tpu_custom_call.1} parent=1 // pred_fallthru
      _
    // Predicated region
    $region74: #{tpu_custom_call.1} parent=1 // pred_check
      _
    $region75: #{tpu_custom_call.1} parent=1 // pred_check_branch
      %197 = sbr.rel (0) target = $region77
    $region76: #{tpu_custom_call.1} parent=1 // pred_region
      %198 = dma.done [#allocation9], 36864
    $region77: #{tpu_custom_call.1} parent=1 // pred_fallthru
      _
    // Predicated region
    $region78: #{tpu_custom_call.1} parent=1 // pred_check
      _
    $region79: #{tpu_custom_call.1} parent=1 // pred_check_branch
      %200 = sbr.rel (0) target = $region81
    $region80: #{tpu_custom_call.1} parent=1 // pred_region
      %201 = dma.done [#allocation12], 96
    $region81: #{tpu_custom_call.1} parent=1 // pred_fallthru
      _
    // Predicated region
    $region82: #{tpu_custom_call.1} parent=1 // pred_check
      _
    $region83: #{tpu_custom_call.1} parent=1 // pred_check_branch
      %203 = sbr.rel (0) target = $region85
    $region84: #{tpu_custom_call.1} parent=1 // pred_region
      %204 = dma.done [#allocation12], 24576
    $region85: #{tpu_custom_call.1} parent=1 // pred_fallthru
      _
    // Predicated region
    $region86: #{tpu_custom_call.1} parent=1 // pred_check
      _
    $region87: #{tpu_custom_call.1} parent=1 // pred_check_branch
      %206 = sbr.rel (0) target = $region89
    $region88: #{tpu_custom_call.1} parent=1 // pred_region
      %207 = dma.done [#allocation15], 32
    $region89: #{tpu_custom_call.1} parent=1 // pred_fallthru
      _
    // Predicated region
    $region90: #{tpu_custom_call.1} parent=1 // pred_check
      _
    $region91: #{tpu_custom_call.1} parent=1 // pred_check_branch
      %209 = sbr.rel (0) target = $region93
    $region92: #{tpu_custom_call.1} parent=1 // pred_region
      %210 = dma.done [#allocation15], 6144
    $region93: #{tpu_custom_call.1} parent=1 // pred_fallthru
      _
    // Predicated region
    $region94: #{tpu_custom_call.1} parent=1 // pred_check
      _
    $region95: #{tpu_custom_call.1} parent=1 // pred_check_branch
      %212 = sbr.rel (0) target = $region97
    $region96: #{tpu_custom_call.1} parent=1 // pred_region
      %213 = dma.done [#allocation18], 96
    $region97: #{tpu_custom_call.1} parent=1 // pred_fallthru
      _
    // Predicated region
    $region98: #{tpu_custom_call.1} parent=1 // pred_check
      _
    $region99: #{tpu_custom_call.1} parent=1 // pred_check_branch
      %215 = sbr.rel (0) target = $region101
    $region100: #{tpu_custom_call.1} parent=1 // pred_region
      %216 = dma.done [#allocation18], 36864
    $region101: #{tpu_custom_call.1} parent=1 // pred_fallthru
      _
    // Predicated region
    $region102: #{tpu_custom_call.1} parent=1 // pred_check
      _
    $region103: #{tpu_custom_call.1} parent=1 // pred_check_branch
      %218 = sbr.rel (0) target = $region105
    $region104: #{tpu_custom_call.1} parent=1 // pred_region
      %219 = dma.done [#allocation21], 96
    $region105: #{tpu_custom_call.1} parent=1 // pred_fallthru
      _
    // Predicated region
    $region106: #{tpu_custom_call.1} parent=1 // pred_check
      _
    $region107: #{tpu_custom_call.1} parent=1 // pred_check_branch
      %221 = sbr.rel (0) target = $region109
    $region108: #{tpu_custom_call.1} parent=1 // pred_region
      %222 = dma.done [#allocation21], 6144
    $region109: #{tpu_custom_call.1} parent=1 // pred_fallthru
      _
    // Predicated region
    $region110: #{tpu_custom_call.1} parent=1 // pred_check
      _
    $region111: #{tpu_custom_call.1} parent=1 // pred_check_branch
      %224 = sbr.rel (0) target = $region113
    $region112: #{tpu_custom_call.1} parent=1 // pred_region
      %225 = dma.done [#allocation24], 16
    $region113: #{tpu_custom_call.1} parent=1 // pred_fallthru
      _
    %v227 = vld [vmem:[#allocation2] sm:$0xf]
    %v228 = vld [vmem:[#allocation7] sm:$0xff]
    %v229 = vld [vmem:[#allocation7 + $0x8] sm:$0xff]
    %v230 = vld [vmem:[#allocation7 + $0x10] sm:$0xff]
    %v231 = vld [vmem:[#allocation7 + $0x18] sm:$0xff]
    %v232 = vld [vmem:[#allocation7 + $0x20] sm:$0xff]
    %v233 = vld [vmem:[#allocation7 + $0x28] sm:$0xff]
    %v234 = vld [vmem:[#allocation7 + $0x30] sm:$0xff]
    %v235 = vld [vmem:[#allocation7 + $0x38] sm:$0xff]
    %v236 = vld [vmem:[#allocation7 + $0x40] sm:$0xff]
    %v237 = vld [vmem:[#allocation7 + $0x48] sm:$0xff]
    %v238 = vld [vmem:[#allocation7 + $0x50] sm:$0xff]
    %v239 = vld [vmem:[#allocation7 + $0x58] sm:$0xff]
    %v240 = vld [vmem:[#allocation7 + $0x60] sm:$0xff]
    %v241 = vld [vmem:[#allocation7 + $0x68] sm:$0xff]
    %v242 = vld [vmem:[#allocation7 + $0x70] sm:$0xff]
    %v243 = vld [vmem:[#allocation7 + $0x78] sm:$0xff]
    %v244 = vld [vmem:[#allocation7 + $0x80] sm:$0xff]
    %v245 = vld [vmem:[#allocation7 + $0x88] sm:$0xff]
    %v246 = vld [vmem:[#allocation7 + $0x90] sm:$0xff]
    %v247 = vld [vmem:[#allocation7 + $0x98] sm:$0xff]
    %v248 = vld [vmem:[#allocation7 + $0xa0] sm:$0xff]
    %v249 = vld [vmem:[#allocation7 + $0xa8] sm:$0xff]
    %v250 = vld [vmem:[#allocation7 + $0xb0] sm:$0xff]
    %v251 = vld [vmem:[#allocation7 + $0xb8] sm:$0xff]
    %v252 = vld [vmem:[#allocation7 + $0xc0] sm:$0xff]
    %v253 = vld [vmem:[#allocation7 + $0xc8] sm:$0xff]
    %v254 = vld [vmem:[#allocation7 + $0xd0] sm:$0xff]
    %v255 = vld [vmem:[#allocation7 + $0xd8] sm:$0xff]
    %v256 = vld [vmem:[#allocation7 + $0xe0] sm:$0xff]
    %v257 = vld [vmem:[#allocation7 + $0xe8] sm:$0xff]
    %v258 = vld [vmem:[#allocation7 + $0xf0] sm:$0xff]
    %v259 = vld [vmem:[#allocation7 + $0xf8] sm:$0xff]
    %v260 = vld [vmem:[#allocation7 + $0x100] sm:$0xff]
    %v261 = vld [vmem:[#allocation7 + $0x108] sm:$0xff]
    %v262 = vld [vmem:[#allocation7 + $0x110] sm:$0xff]
    %v263 = vld [vmem:[#allocation7 + $0x118] sm:$0xff]
    %v264 = vld [vmem:[#allocation7 + $0x120] sm:$0xff]
    %v265 = vld [vmem:[#allocation7 + $0x128] sm:$0xff]
    %v266 = vld [vmem:[#allocation7 + $0x130] sm:$0xff]
    %v267 = vld [vmem:[#allocation7 + $0x138] sm:$0xff]
    %v268 = vld [vmem:[#allocation7 + $0x140] sm:$0xff]
    %v269 = vld [vmem:[#allocation7 + $0x148] sm:$0xff]
    %v270 = vld [vmem:[#allocation7 + $0x150] sm:$0xff]
    %v271 = vld [vmem:[#allocation7 + $0x158] sm:$0xff]
    %v272 = vld [vmem:[#allocation7 + $0x160] sm:$0xff]
    %v273 = vld [vmem:[#allocation7 + $0x168] sm:$0xff]
    %v274 = vld [vmem:[#allocation7 + $0x170] sm:$0xff]
    %v275 = vld [vmem:[#allocation7 + $0x178] sm:$0xff]
    %v276 = vld [vmem:[#allocation8] sm:$0x3f]
    %v278 = vlaneseq
    %v279 = vshrl.u32 %v278, 7
    %v280 = vsub.s32 0, %v279
    %v281 = vrot.slane %v276, %v280
    %v282 = vlaneseq
    %v283 = vshrl.u32 %v282, 7
    %v284 = vsub.s32 1, %v283
    %v285 = vrot.slane %v276, %v284
    %v286 = vlaneseq
    %v287 = vshrl.u32 %v286, 7
    %v288 = vsub.s32 2, %v287
    %v289 = vrot.slane %v276, %v288
    %v290 = vlaneseq
    %v291 = vshrl.u32 %v290, 7
    %v292 = vsub.s32 3, %v291
    %v293 = vrot.slane %v276, %v292
    %v294 = vlaneseq
    %v295 = vshrl.u32 %v294, 7
    %v296 = vsub.s32 4, %v295
    %v297 = vrot.slane %v276, %v296
    %v298 = vlaneseq
    %v299 = vshrl.u32 %v298, 7
    %v300 = vsub.s32 5, %v299
    %v301 = vrot.slane %v276, %v300
    %v356 = vunpack.c.l.b16 %v228
    %v357 = vunpack.c.h.b16 %v228
    %v358 = vunpack.c.l.b16 %v229
    %v359 = vunpack.c.h.b16 %v229
    %v360 = vunpack.c.l.b16 %v230
    %v361 = vunpack.c.h.b16 %v230
    %v362 = vunpack.c.l.b16 %v231
    %v363 = vunpack.c.h.b16 %v231
    %v364 = vunpack.c.l.b16 %v232
    %v365 = vunpack.c.h.b16 %v232
    %v366 = vunpack.c.l.b16 %v233
    %v367 = vunpack.c.h.b16 %v233
    %v368 = vunpack.c.l.b16 %v234
    %v369 = vunpack.c.h.b16 %v234
    %v370 = vunpack.c.l.b16 %v235
    %v371 = vunpack.c.h.b16 %v235
    %v372 = vunpack.c.l.b16 %v236
    %v373 = vunpack.c.h.b16 %v236
    %v374 = vunpack.c.l.b16 %v237
    %v375 = vunpack.c.h.b16 %v237
    %v376 = vunpack.c.l.b16 %v238
    %v377 = vunpack.c.h.b16 %v238
    %v378 = vunpack.c.l.b16 %v239
    %v379 = vunpack.c.h.b16 %v239
    %v380 = vunpack.c.l.b16 %v240
    %v381 = vunpack.c.h.b16 %v240
    %v382 = vunpack.c.l.b16 %v241
    %v383 = vunpack.c.h.b16 %v241
    %v384 = vunpack.c.l.b16 %v242
    %v385 = vunpack.c.h.b16 %v242
    %v386 = vunpack.c.l.b16 %v243
    %v387 = vunpack.c.h.b16 %v243
    %v388 = vunpack.c.l.b16 %v244
    %v389 = vunpack.c.h.b16 %v244
    %v390 = vunpack.c.l.b16 %v245
    %v391 = vunpack.c.h.b16 %v245
    %v392 = vunpack.c.l.b16 %v246
    %v393 = vunpack.c.h.b16 %v246
    %v394 = vunpack.c.l.b16 %v247
    %v395 = vunpack.c.h.b16 %v247
    %v396 = vunpack.c.l.b16 %v248
    %v397 = vunpack.c.h.b16 %v248
    %v398 = vunpack.c.l.b16 %v249
    %v399 = vunpack.c.h.b16 %v249
    %v400 = vunpack.c.l.b16 %v250
    %v401 = vunpack.c.h.b16 %v250
    %v402 = vunpack.c.l.b16 %v251
    %v403 = vunpack.c.h.b16 %v251
    %v404 = vunpack.c.l.b16 %v252
    %v405 = vunpack.c.h.b16 %v252
    %v406 = vunpack.c.l.b16 %v253
    %v407 = vunpack.c.h.b16 %v253
    %v408 = vunpack.c.l.b16 %v254
    %v409 = vunpack.c.h.b16 %v254
    %v410 = vunpack.c.l.b16 %v255
    %v411 = vunpack.c.h.b16 %v255
    %v412 = vunpack.c.l.b16 %v256
    %v413 = vunpack.c.h.b16 %v256
    %v414 = vunpack.c.l.b16 %v257
    %v415 = vunpack.c.h.b16 %v257
    %v416 = vunpack.c.l.b16 %v258
    %v417 = vunpack.c.h.b16 %v258
    %v418 = vunpack.c.l.b16 %v259
    %v419 = vunpack.c.h.b16 %v259
    %v420 = vunpack.c.l.b16 %v260
    %v421 = vunpack.c.h.b16 %v260
    %v422 = vunpack.c.l.b16 %v261
    %v423 = vunpack.c.h.b16 %v261
    %v424 = vunpack.c.l.b16 %v262
    %v425 = vunpack.c.h.b16 %v262
    %v426 = vunpack.c.l.b16 %v263
    %v427 = vunpack.c.h.b16 %v263
    %v428 = vunpack.c.l.b16 %v264
    %v429 = vunpack.c.h.b16 %v264
    %v430 = vunpack.c.l.b16 %v265
    %v431 = vunpack.c.h.b16 %v265
    %v432 = vunpack.c.l.b16 %v266
    %v433 = vunpack.c.h.b16 %v266
    %v434 = vunpack.c.l.b16 %v267
    %v435 = vunpack.c.h.b16 %v267
    %v436 = vunpack.c.l.b16 %v268
    %v437 = vunpack.c.h.b16 %v268
    %v438 = vunpack.c.l.b16 %v269
    %v439 = vunpack.c.h.b16 %v269
    %v440 = vunpack.c.l.b16 %v270
    %v441 = vunpack.c.h.b16 %v270
    %v442 = vunpack.c.l.b16 %v271
    %v443 = vunpack.c.h.b16 %v271
    %v444 = vunpack.c.l.b16 %v272
    %v445 = vunpack.c.h.b16 %v272
    %v446 = vunpack.c.l.b16 %v273
    %v447 = vunpack.c.h.b16 %v273
    %v448 = vunpack.c.l.b16 %v274
    %v449 = vunpack.c.h.b16 %v274
    %v450 = vunpack.c.l.b16 %v275
    %v451 = vunpack.c.h.b16 %v275
    %v452 = vpack.c.b16 %v362, %v356
    %v453 = vpack.c.b16 %v363, %v357
    %v454 = vpack.c.b16 %v364, %v358
    %v455 = vpack.c.b16 %v365, %v359
    %v456 = vpack.c.b16 %v366, %v360
    %v457 = vpack.c.b16 %v367, %v361
    %v458 = vpack.c.b16 %v374, %v368
    %v459 = vpack.c.b16 %v375, %v369
    %v460 = vpack.c.b16 %v376, %v370
    %v461 = vpack.c.b16 %v377, %v371
    %v462 = vpack.c.b16 %v378, %v372
    %v463 = vpack.c.b16 %v379, %v373
    %v464 = vpack.c.b16 %v386, %v380
    %v465 = vpack.c.b16 %v387, %v381
    %v466 = vpack.c.b16 %v388, %v382
    %v467 = vpack.c.b16 %v389, %v383
    %v468 = vpack.c.b16 %v390, %v384
    %v469 = vpack.c.b16 %v391, %v385
    %v470 = vpack.c.b16 %v398, %v392
    %v471 = vpack.c.b16 %v399, %v393
    %v472 = vpack.c.b16 %v400, %v394
    %v473 = vpack.c.b16 %v401, %v395
    %v474 = vpack.c.b16 %v402, %v396
    %v475 = vpack.c.b16 %v403, %v397
    %v476 = vpack.c.b16 %v410, %v404
    %v477 = vpack.c.b16 %v411, %v405
    %v478 = vpack.c.b16 %v412, %v406
    %v479 = vpack.c.b16 %v413, %v407
    %v480 = vpack.c.b16 %v414, %v408
    %v481 = vpack.c.b16 %v415, %v409
    %v482 = vpack.c.b16 %v422, %v416
    %v483 = vpack.c.b16 %v423, %v417
    %v484 = vpack.c.b16 %v424, %v418
    %v485 = vpack.c.b16 %v425, %v419
    %v486 = vpack.c.b16 %v426, %v420
    %v487 = vpack.c.b16 %v427, %v421
    %v488 = vpack.c.b16 %v434, %v428
    %v489 = vpack.c.b16 %v435, %v429
    %v490 = vpack.c.b16 %v436, %v430
    %v491 = vpack.c.b16 %v437, %v431
    %v492 = vpack.c.b16 %v438, %v432
    %v493 = vpack.c.b16 %v439, %v433
    %v494 = vpack.c.b16 %v446, %v440
    %v495 = vpack.c.b16 %v447, %v441
    %v496 = vpack.c.b16 %v448, %v442
    %v497 = vpack.c.b16 %v449, %v443
    %v498 = vpack.c.b16 %v450, %v444
    %v499 = vpack.c.b16 %v451, %v445
    %548 = vmatprep.subr.bf16.mxu0 %v453
    %549 = vmatpush1.bf16.msra.mxu0 %v452
    %550 = vmatprep.subr.bf16.mxu0 %v459
    %551 = vmatpush1.bf16.msra.mxu0 %v458
    %552 = vmatprep.subr.bf16.mxu0 %v465
    %553 = vmatpush1.bf16.msra.mxu0 %v464
    %554 = vmatprep.subr.bf16.mxu0 %v471
    %555 = vmatpush1.bf16.msra.mxu0 %v470
    %556 = vmatprep.subr.bf16.mxu0 %v477
    %557 = vmatpush1.bf16.msra.mxu0 %v476
    %558 = vmatprep.subr.bf16.mxu0 %v483
    %559 = vmatpush1.bf16.msra.mxu0 %v482
    %560 = vmatprep.subr.bf16.mxu0 %v489
    %561 = vmatpush1.bf16.msra.mxu0 %v488
    %562 = vmatprep.subr.bf16.mxu0 %v495
    %563 = vmatpush1.bf16.msra.mxu0 %v494
    %564 = vmatprep.subr.bf16.mxu0 0
    %565 = vmatpush1.bf16.msra.mxu0 0
    %566 = vmatprep.subr.bf16.mxu0 0
    %567 = vmatpush1.bf16.msra.mxu0 0
    %568 = vmatprep.subr.bf16.mxu0 0
    %569 = vmatpush1.bf16.msra.mxu0 0
    %570 = vmatprep.subr.bf16.mxu0 0
    %571 = vmatpush1.bf16.msra.mxu0 0
    %572 = vmatprep.subr.bf16.mxu0 0
    %573 = vmatpush1.bf16.msra.mxu0 0
    %574 = vmatprep.subr.bf16.mxu0 0
    %575 = vmatpush1.bf16.msra.mxu0 0
    %576 = vmatprep.subr.bf16.mxu0 0
    %577 = vmatpush1.bf16.msra.mxu0 0
    %578 = vmatprep.subr.bf16.mxu0 0
    %579 = vmatpush1.bf16.msra.mxu0 0
    %580 = vmatprep.mubr.bf16.mxu0 0
    %581 = vmatmul.mubr.bf16.gmra.mrb[0].mxu0 %v227
    %v582 = vpop.f32.mrb[0].mxu0
    %v583 = vadd.f32 %v281, %v582
    %v584 = vpop.f32.mrb[0].mxu0
    %v585 = vadd.f32 %v285, %v584
    %v586 = vpop.f32.mrb[0].mxu0
    %v587 = vpop.f32.mrb[0].mxu0
    %588 = vdwg.mxu0
    %589 = vmatprep.subr.bf16.mxu0 %v455
    %590 = vmatpush1.bf16.msra.mxu0 %v454
    %591 = vmatprep.subr.bf16.mxu0 %v461
    %592 = vmatpush1.bf16.msra.mxu0 %v460
    %593 = vmatprep.subr.bf16.mxu0 %v467
    %594 = vmatpush1.bf16.msra.mxu0 %v466
    %595 = vmatprep.subr.bf16.mxu0 %v473
    %596 = vmatpush1.bf16.msra.mxu0 %v472
    %597 = vmatprep.subr.bf16.mxu0 %v479
    %598 = vmatpush1.bf16.msra.mxu0 %v478
    %599 = vmatprep.subr.bf16.mxu0 %v485
    %600 = vmatpush1.bf16.msra.mxu0 %v484
    %601 = vmatprep.subr.bf16.mxu0 %v491
    %602 = vmatpush1.bf16.msra.mxu0 %v490
    %603 = vmatprep.subr.bf16.mxu0 %v497
    %604 = vmatpush1.bf16.msra.mxu0 %v496
    %605 = vmatprep.subr.bf16.mxu0 0
    %606 = vmatpush1.bf16.msra.mxu0 0
    %607 = vmatprep.subr.bf16.mxu0 0
    %608 = vmatpush1.bf16.msra.mxu0 0
    %609 = vmatprep.subr.bf16.mxu0 0
    %610 = vmatpush1.bf16.msra.mxu0 0
    %611 = vmatprep.subr.bf16.mxu0 0
    %612 = vmatpush1.bf16.msra.mxu0 0
    %613 = vmatprep.subr.bf16.mxu0 0
    %614 = vmatpush1.bf16.msra.mxu0 0
    %615 = vmatprep.subr.bf16.mxu0 0
    %616 = vmatpush1.bf16.msra.mxu0 0
    %617 = vmatprep.subr.bf16.mxu0 0
    %618 = vmatpush1.bf16.msra.mxu0 0
    %619 = vmatprep.subr.bf16.mxu0 0
    %620 = vmatpush1.bf16.msra.mxu0 0
    %621 = vmatprep.mubr.bf16.mxu0 0
    %622 = vmatmul.mubr.bf16.gmra.mrb[0].mxu0 %v227
    %v623 = vpop.f32.mrb[0].mxu0
    %v624 = vadd.f32 %v289, %v623
    %v625 = vpop.f32.mrb[0].mxu0
    %v626 = vadd.f32 %v293, %v625
    %v627 = vpop.f32.mrb[0].mxu0
    %v628 = vpop.f32.mrb[0].mxu0
    %629 = vdwg.mxu0
    %630 = vmatprep.subr.bf16.mxu0 %v457
    %631 = vmatpush1.bf16.msra.mxu0 %v456
    %632 = vmatprep.subr.bf16.mxu0 %v463
    %633 = vmatpush1.bf16.msra.mxu0 %v462
    %634 = vmatprep.subr.bf16.mxu0 %v469
    %635 = vmatpush1.bf16.msra.mxu0 %v468
    %636 = vmatprep.subr.bf16.mxu0 %v475
    %637 = vmatpush1.bf16.msra.mxu0 %v474
    %638 = vmatprep.subr.bf16.mxu0 %v481
    %639 = vmatpush1.bf16.msra.mxu0 %v480
    %640 = vmatprep.subr.bf16.mxu0 %v487
    %641 = vmatpush1.bf16.msra.mxu0 %v486
    %642 = vmatprep.subr.bf16.mxu0 %v493
    %643 = vmatpush1.bf16.msra.mxu0 %v492
    %644 = vmatprep.subr.bf16.mxu0 %v499
    %645 = vmatpush1.bf16.msra.mxu0 %v498
    %646 = vmatprep.subr.bf16.mxu0 0
    %647 = vmatpush1.bf16.msra.mxu0 0
    %648 = vmatprep.subr.bf16.mxu0 0
    %649 = vmatpush1.bf16.msra.mxu0 0
    %650 = vmatprep.subr.bf16.mxu0 0
    %651 = vmatpush1.bf16.msra.mxu0 0
    %652 = vmatprep.subr.bf16.mxu0 0
    %653 = vmatpush1.bf16.msra.mxu0 0
    %654 = vmatprep.subr.bf16.mxu0 0
    %655 = vmatpush1.bf16.msra.mxu0 0
    %656 = vmatprep.subr.bf16.mxu0 0
    %657 = vmatpush1.bf16.msra.mxu0 0
    %658 = vmatprep.subr.bf16.mxu0 0
    %659 = vmatpush1.bf16.msra.mxu0 0
    %660 = vmatprep.subr.bf16.mxu0 0
    %661 = vmatpush1.bf16.msra.mxu0 0
    %662 = vmatprep.mubr.bf16.mxu0 0
    %663 = vmatmul.mubr.bf16.gmra.mrb[0].mxu0 %v227
    %v664 = vpop.f32.mrb[0].mxu0
    %v665 = vadd.f32 %v297, %v664
    %v666 = vpop.f32.mrb[0].mxu0
    %v667 = vadd.f32 %v301, %v666
    %v668 = vpop.f32.mrb[0].mxu0
    %v669 = vpop.f32.mrb[0].mxu0
    %670 = vdwg.mxu0
    %v671 = vmax.f32 %v583, 0.0
    %v672 = vmax.f32 %v585, 0.0
    %v673 = vmax.f32 %v624, 0.0
    %v674 = vmax.f32 %v626, 0.0
    %v675 = vmax.f32 %v665, 0.0
    %v676 = vmax.f32 %v667, 0.0
    %v677 = vpack.c.bf16 %v671, %v671
    %v678 = vpack.c.bf16 %v672, %v672
    %v679 = vpack.c.bf16 %v673, %v673
    %v680 = vpack.c.bf16 %v674, %v674
    %v681 = vpack.c.bf16 %v675, %v675
    %v682 = vpack.c.bf16 %v676, %v676
    %v683 = vld [vmem:[#allocation10] sm:$0xff]
    %v684 = vld [vmem:[#allocation10 + $0x8] sm:$0xff]
    %v685 = vld [vmem:[#allocation10 + $0x10] sm:$0xff]
    %v686 = vld [vmem:[#allocation10 + $0x18] sm:$0xff]
    %v687 = vld [vmem:[#allocation10 + $0x20] sm:$0xff]
    %v688 = vld [vmem:[#allocation10 + $0x28] sm:$0xff]
    %v689 = vld [vmem:[#allocation10 + $0x30] sm:$0xff]
    %v690 = vld [vmem:[#allocation10 + $0x38] sm:$0xff]
    %v691 = vld [vmem:[#allocation10 + $0x40] sm:$0xff]
    %v692 = vld [vmem:[#allocation10 + $0x48] sm:$0xff]
    %v693 = vld [vmem:[#allocation10 + $0x50] sm:$0xff]
    %v694 = vld [vmem:[#allocation10 + $0x58] sm:$0xff]
    %v695 = vld [vmem:[#allocation10 + $0x60] sm:$0xff]
    %v696 = vld [vmem:[#allocation10 + $0x68] sm:$0xff]
    %v697 = vld [vmem:[#allocation10 + $0x70] sm:$0xff]
    %v698 = vld [vmem:[#allocation10 + $0x78] sm:$0xff]
    %v699 = vld [vmem:[#allocation10 + $0x80] sm:$0xff]
    %v700 = vld [vmem:[#allocation10 + $0x88] sm:$0xff]
    %v701 = vld [vmem:[#allocation10 + $0x90] sm:$0xff]
    %v702 = vld [vmem:[#allocation10 + $0x98] sm:$0xff]
    %v703 = vld [vmem:[#allocation10 + $0xa0] sm:$0xff]
    %v704 = vld [vmem:[#allocation10 + $0xa8] sm:$0xff]
    %v705 = vld [vmem:[#allocation10 + $0xb0] sm:$0xff]
    %v706 = vld [vmem:[#allocation10 + $0xb8] sm:$0xff]
    %v707 = vld [vmem:[#allocation10 + $0xc0] sm:$0xff]
    %v708 = vld [vmem:[#allocation10 + $0xc8] sm:$0xff]
    %v709 = vld [vmem:[#allocation10 + $0xd0] sm:$0xff]
    %v710 = vld [vmem:[#allocation10 + $0xd8] sm:$0xff]
    %v711 = vld [vmem:[#allocation10 + $0xe0] sm:$0xff]
    %v712 = vld [vmem:[#allocation10 + $0xe8] sm:$0xff]
    %v713 = vld [vmem:[#allocation10 + $0xf0] sm:$0xff]
    %v714 = vld [vmem:[#allocation10 + $0xf8] sm:$0xff]
    %v715 = vld [vmem:[#allocation10 + $0x100] sm:$0xff]
    %v716 = vld [vmem:[#allocation10 + $0x108] sm:$0xff]
    %v717 = vld [vmem:[#allocation10 + $0x110] sm:$0xff]
    %v718 = vld [vmem:[#allocation10 + $0x118] sm:$0xff]
    %v719 = vld [vmem:[#allocation10 + $0x120] sm:$0xff]
    %v720 = vld [vmem:[#allocation10 + $0x128] sm:$0xff]
    %v721 = vld [vmem:[#allocation10 + $0x130] sm:$0xff]
    %v722 = vld [vmem:[#allocation10 + $0x138] sm:$0xff]
    %v723 = vld [vmem:[#allocation10 + $0x140] sm:$0xff]
    %v724 = vld [vmem:[#allocation10 + $0x148] sm:$0xff]
    %v725 = vld [vmem:[#allocation10 + $0x150] sm:$0xff]
    %v726 = vld [vmem:[#allocation10 + $0x158] sm:$0xff]
    %v727 = vld [vmem:[#allocation10 + $0x160] sm:$0xff]
    %v728 = vld [vmem:[#allocation10 + $0x168] sm:$0xff]
    %v729 = vld [vmem:[#allocation10 + $0x170] sm:$0xff]
    %v730 = vld [vmem:[#allocation10 + $0x178] sm:$0xff]
    %v731 = vld [vmem:[#allocation10 + $0x180] sm:$0xff]
    %v732 = vld [vmem:[#allocation10 + $0x188] sm:$0xff]
    %v733 = vld [vmem:[#allocation10 + $0x190] sm:$0xff]
    %v734 = vld [vmem:[#allocation10 + $0x198] sm:$0xff]
    %v735 = vld [vmem:[#allocation10 + $0x1a0] sm:$0xff]
    %v736 = vld [vmem:[#allocation10 + $0x1a8] sm:$0xff]
    %v737 = vld [vmem:[#allocation10 + $0x1b0] sm:$0xff]
    %v738 = vld [vmem:[#allocation10 + $0x1b8] sm:$0xff]
    %v739 = vld [vmem:[#allocation10 + $0x1c0] sm:$0xff]
    %v740 = vld [vmem:[#allocation10 + $0x1c8] sm:$0xff]
    %v741 = vld [vmem:[#allocation10 + $0x1d0] sm:$0xff]
    %v742 = vld [vmem:[#allocation10 + $0x1d8] sm:$0xff]
    %v743 = vld [vmem:[#allocation10 + $0x1e0] sm:$0xff]
    %v744 = vld [vmem:[#allocation10 + $0x1e8] sm:$0xff]
    %v745 = vld [vmem:[#allocation10 + $0x1f0] sm:$0xff]
    %v746 = vld [vmem:[#allocation10 + $0x1f8] sm:$0xff]
    %v747 = vld [vmem:[#allocation10 + $0x200] sm:$0xff]
    %v748 = vld [vmem:[#allocation10 + $0x208] sm:$0xff]
    %v749 = vld [vmem:[#allocation10 + $0x210] sm:$0xff]
    %v750 = vld [vmem:[#allocation10 + $0x218] sm:$0xff]
    %v751 = vld [vmem:[#allocation10 + $0x220] sm:$0xff]
    %v752 = vld [vmem:[#allocation10 + $0x228] sm:$0xff]
    %v753 = vld [vmem:[#allocation10 + $0x230] sm:$0xff]
    %v754 = vld [vmem:[#allocation10 + $0x238] sm:$0xff]
    %v755 = vld [vmem:[#allocation10 + $0x240] sm:$0xff]
    %v756 = vld [vmem:[#allocation10 + $0x248] sm:$0xff]
    %v757 = vld [vmem:[#allocation10 + $0x250] sm:$0xff]
    %v758 = vld [vmem:[#allocation10 + $0x258] sm:$0xff]
    %v759 = vld [vmem:[#allocation10 + $0x260] sm:$0xff]
    %v760 = vld [vmem:[#allocation10 + $0x268] sm:$0xff]
    %v761 = vld [vmem:[#allocation10 + $0x270] sm:$0xff]
    %v762 = vld [vmem:[#allocation10 + $0x278] sm:$0xff]
    %v763 = vld [vmem:[#allocation10 + $0x280] sm:$0xff]
    %v764 = vld [vmem:[#allocation10 + $0x288] sm:$0xff]
    %v765 = vld [vmem:[#allocation10 + $0x290] sm:$0xff]
    %v766 = vld [vmem:[#allocation10 + $0x298] sm:$0xff]
    %v767 = vld [vmem:[#allocation10 + $0x2a0] sm:$0xff]
    %v768 = vld [vmem:[#allocation10 + $0x2a8] sm:$0xff]
    %v769 = vld [vmem:[#allocation10 + $0x2b0] sm:$0xff]
    %v770 = vld [vmem:[#allocation10 + $0x2b8] sm:$0xff]
    %v771 = vld [vmem:[#allocation10 + $0x2c0] sm:$0xff]
    %v772 = vld [vmem:[#allocation10 + $0x2c8] sm:$0xff]
    %v773 = vld [vmem:[#allocation10 + $0x2d0] sm:$0xff]
    %v774 = vld [vmem:[#allocation10 + $0x2d8] sm:$0xff]
    %v775 = vld [vmem:[#allocation10 + $0x2e0] sm:$0xff]
    %v776 = vld [vmem:[#allocation10 + $0x2e8] sm:$0xff]
    %v777 = vld [vmem:[#allocation10 + $0x2f0] sm:$0xff]
    %v778 = vld [vmem:[#allocation10 + $0x2f8] sm:$0xff]
    %v779 = vld [vmem:[#allocation10 + $0x300] sm:$0xff]
    %v780 = vld [vmem:[#allocation10 + $0x308] sm:$0xff]
    %v781 = vld [vmem:[#allocation10 + $0x310] sm:$0xff]
    %v782 = vld [vmem:[#allocation10 + $0x318] sm:$0xff]
    %v783 = vld [vmem:[#allocation10 + $0x320] sm:$0xff]
    %v784 = vld [vmem:[#allocation10 + $0x328] sm:$0xff]
    %v785 = vld [vmem:[#allocation10 + $0x330] sm:$0xff]
    %v786 = vld [vmem:[#allocation10 + $0x338] sm:$0xff]
    %v787 = vld [vmem:[#allocation10 + $0x340] sm:$0xff]
    %v788 = vld [vmem:[#allocation10 + $0x348] sm:$0xff]
    %v789 = vld [vmem:[#allocation10 + $0x350] sm:$0xff]
    %v790 = vld [vmem:[#allocation10 + $0x358] sm:$0xff]
    %v791 = vld [vmem:[#allocation10 + $0x360] sm:$0xff]
    %v792 = vld [vmem:[#allocation10 + $0x368] sm:$0xff]
    %v793 = vld [vmem:[#allocation10 + $0x370] sm:$0xff]
    %v794 = vld [vmem:[#allocation10 + $0x378] sm:$0xff]
    %v795 = vld [vmem:[#allocation10 + $0x380] sm:$0xff]
    %v796 = vld [vmem:[#allocation10 + $0x388] sm:$0xff]
    %v797 = vld [vmem:[#allocation10 + $0x390] sm:$0xff]
    %v798 = vld [vmem:[#allocation10 + $0x398] sm:$0xff]
    %v799 = vld [vmem:[#allocation10 + $0x3a0] sm:$0xff]
    %v800 = vld [vmem:[#allocation10 + $0x3a8] sm:$0xff]
    %v801 = vld [vmem:[#allocation10 + $0x3b0] sm:$0xff]
    %v802 = vld [vmem:[#allocation10 + $0x3b8] sm:$0xff]
    %v803 = vld [vmem:[#allocation10 + $0x3c0] sm:$0xff]
    %v804 = vld [vmem:[#allocation10 + $0x3c8] sm:$0xff]
    %v805 = vld [vmem:[#allocation10 + $0x3d0] sm:$0xff]
    %v806 = vld [vmem:[#allocation10 + $0x3d8] sm:$0xff]
    %v807 = vld [vmem:[#allocation10 + $0x3e0] sm:$0xff]
    %v808 = vld [vmem:[#allocation10 + $0x3e8] sm:$0xff]
    %v809 = vld [vmem:[#allocation10 + $0x3f0] sm:$0xff]
    %v810 = vld [vmem:[#allocation10 + $0x3f8] sm:$0xff]
    %v811 = vld [vmem:[#allocation10 + $0x400] sm:$0xff]
    %v812 = vld [vmem:[#allocation10 + $0x408] sm:$0xff]
    %v813 = vld [vmem:[#allocation10 + $0x410] sm:$0xff]
    %v814 = vld [vmem:[#allocation10 + $0x418] sm:$0xff]
    %v815 = vld [vmem:[#allocation10 + $0x420] sm:$0xff]
    %v816 = vld [vmem:[#allocation10 + $0x428] sm:$0xff]
    %v817 = vld [vmem:[#allocation10 + $0x430] sm:$0xff]
    %v818 = vld [vmem:[#allocation10 + $0x438] sm:$0xff]
    %v819 = vld [vmem:[#allocation10 + $0x440] sm:$0xff]
    %v820 = vld [vmem:[#allocation10 + $0x448] sm:$0xff]
    %v821 = vld [vmem:[#allocation10 + $0x450] sm:$0xff]
    %v822 = vld [vmem:[#allocation10 + $0x458] sm:$0xff]
    %v823 = vld [vmem:[#allocation10 + $0x460] sm:$0xff]
    %v824 = vld [vmem:[#allocation10 + $0x468] sm:$0xff]
    %v825 = vld [vmem:[#allocation10 + $0x470] sm:$0xff]
    %v826 = vld [vmem:[#allocation10 + $0x478] sm:$0xff]
    %v827 = vld [vmem:[#allocation10 + $0x480] sm:$0xff]
    %v828 = vld [vmem:[#allocation10 + $0x488] sm:$0xff]
    %v829 = vld [vmem:[#allocation10 + $0x490] sm:$0xff]
    %v830 = vld [vmem:[#allocation10 + $0x498] sm:$0xff]
    %v831 = vld [vmem:[#allocation10 + $0x4a0] sm:$0xff]
    %v832 = vld [vmem:[#allocation10 + $0x4a8] sm:$0xff]
    %v833 = vld [vmem:[#allocation10 + $0x4b0] sm:$0xff]
    %v834 = vld [vmem:[#allocation10 + $0x4b8] sm:$0xff]
    %v835 = vld [vmem:[#allocation10 + $0x4c0] sm:$0xff]
    %v836 = vld [vmem:[#allocation10 + $0x4c8] sm:$0xff]
    %v837 = vld [vmem:[#allocation10 + $0x4d0] sm:$0xff]
    %v838 = vld [vmem:[#allocation10 + $0x4d8] sm:$0xff]
    %v839 = vld [vmem:[#allocation10 + $0x4e0] sm:$0xff]
    %v840 = vld [vmem:[#allocation10 + $0x4e8] sm:$0xff]
    %v841 = vld [vmem:[#allocation10 + $0x4f0] sm:$0xff]
    %v842 = vld [vmem:[#allocation10 + $0x4f8] sm:$0xff]
    %v843 = vld [vmem:[#allocation10 + $0x500] sm:$0xff]
    %v844 = vld [vmem:[#allocation10 + $0x508] sm:$0xff]
    %v845 = vld [vmem:[#allocation10 + $0x510] sm:$0xff]
    %v846 = vld [vmem:[#allocation10 + $0x518] sm:$0xff]
    %v847 = vld [vmem:[#allocation10 + $0x520] sm:$0xff]
    %v848 = vld [vmem:[#allocation10 + $0x528] sm:$0xff]
    %v849 = vld [vmem:[#allocation10 + $0x530] sm:$0xff]
    %v850 = vld [vmem:[#allocation10 + $0x538] sm:$0xff]
    %v851 = vld [vmem:[#allocation10 + $0x540] sm:$0xff]
    %v852 = vld [vmem:[#allocation10 + $0x548] sm:$0xff]
    %v853 = vld [vmem:[#allocation10 + $0x550] sm:$0xff]
    %v854 = vld [vmem:[#allocation10 + $0x558] sm:$0xff]
    %v855 = vld [vmem:[#allocation10 + $0x560] sm:$0xff]
    %v856 = vld [vmem:[#allocation10 + $0x568] sm:$0xff]
    %v857 = vld [vmem:[#allocation10 + $0x570] sm:$0xff]
    %v858 = vld [vmem:[#allocation10 + $0x578] sm:$0xff]
    %v859 = vld [vmem:[#allocation10 + $0x580] sm:$0xff]
    %v860 = vld [vmem:[#allocation10 + $0x588] sm:$0xff]
    %v861 = vld [vmem:[#allocation10 + $0x590] sm:$0xff]
    %v862 = vld [vmem:[#allocation10 + $0x598] sm:$0xff]
    %v863 = vld [vmem:[#allocation10 + $0x5a0] sm:$0xff]
    %v864 = vld [vmem:[#allocation10 + $0x5a8] sm:$0xff]
    %v865 = vld [vmem:[#allocation10 + $0x5b0] sm:$0xff]
    %v866 = vld [vmem:[#allocation10 + $0x5b8] sm:$0xff]
    %v867 = vld [vmem:[#allocation10 + $0x5c0] sm:$0xff]
    %v868 = vld [vmem:[#allocation10 + $0x5c8] sm:$0xff]
    %v869 = vld [vmem:[#allocation10 + $0x5d0] sm:$0xff]
    %v870 = vld [vmem:[#allocation10 + $0x5d8] sm:$0xff]
    %v871 = vld [vmem:[#allocation10 + $0x5e0] sm:$0xff]
    %v872 = vld [vmem:[#allocation10 + $0x5e8] sm:$0xff]
    %v873 = vld [vmem:[#allocation10 + $0x5f0] sm:$0xff]
    %v874 = vld [vmem:[#allocation10 + $0x5f8] sm:$0xff]
    %v875 = vld [vmem:[#allocation10 + $0x600] sm:$0xff]
    %v876 = vld [vmem:[#allocation10 + $0x608] sm:$0xff]
    %v877 = vld [vmem:[#allocation10 + $0x610] sm:$0xff]
    %v878 = vld [vmem:[#allocation10 + $0x618] sm:$0xff]
    %v879 = vld [vmem:[#allocation10 + $0x620] sm:$0xff]
    %v880 = vld [vmem:[#allocation10 + $0x628] sm:$0xff]
    %v881 = vld [vmem:[#allocation10 + $0x630] sm:$0xff]
    %v882 = vld [vmem:[#allocation10 + $0x638] sm:$0xff]
    %v883 = vld [vmem:[#allocation10 + $0x640] sm:$0xff]
    %v884 = vld [vmem:[#allocation10 + $0x648] sm:$0xff]
    %v885 = vld [vmem:[#allocation10 + $0x650] sm:$0xff]
    %v886 = vld [vmem:[#allocation10 + $0x658] sm:$0xff]
    %v887 = vld [vmem:[#allocation10 + $0x660] sm:$0xff]
    %v888 = vld [vmem:[#allocation10 + $0x668] sm:$0xff]
    %v889 = vld [vmem:[#allocation10 + $0x670] sm:$0xff]
    %v890 = vld [vmem:[#allocation10 + $0x678] sm:$0xff]
    %v891 = vld [vmem:[#allocation10 + $0x680] sm:$0xff]
    %v892 = vld [vmem:[#allocation10 + $0x688] sm:$0xff]
    %v893 = vld [vmem:[#allocation10 + $0x690] sm:$0xff]
    %v894 = vld [vmem:[#allocation10 + $0x698] sm:$0xff]
    %v895 = vld [vmem:[#allocation10 + $0x6a0] sm:$0xff]
    %v896 = vld [vmem:[#allocation10 + $0x6a8] sm:$0xff]
    %v897 = vld [vmem:[#allocation10 + $0x6b0] sm:$0xff]
    %v898 = vld [vmem:[#allocation10 + $0x6b8] sm:$0xff]
    %v899 = vld [vmem:[#allocation10 + $0x6c0] sm:$0xff]
    %v900 = vld [vmem:[#allocation10 + $0x6c8] sm:$0xff]
    %v901 = vld [vmem:[#allocation10 + $0x6d0] sm:$0xff]
    %v902 = vld [vmem:[#allocation10 + $0x6d8] sm:$0xff]
    %v903 = vld [vmem:[#allocation10 + $0x6e0] sm:$0xff]
    %v904 = vld [vmem:[#allocation10 + $0x6e8] sm:$0xff]
    %v905 = vld [vmem:[#allocation10 + $0x6f0] sm:$0xff]
    %v906 = vld [vmem:[#allocation10 + $0x6f8] sm:$0xff]
    %v907 = vld [vmem:[#allocation10 + $0x700] sm:$0xff]
    %v908 = vld [vmem:[#allocation10 + $0x708] sm:$0xff]
    %v909 = vld [vmem:[#allocation10 + $0x710] sm:$0xff]
    %v910 = vld [vmem:[#allocation10 + $0x718] sm:$0xff]
    %v911 = vld [vmem:[#allocation10 + $0x720] sm:$0xff]
    %v912 = vld [vmem:[#allocation10 + $0x728] sm:$0xff]
    %v913 = vld [vmem:[#allocation10 + $0x730] sm:$0xff]
    %v914 = vld [vmem:[#allocation10 + $0x738] sm:$0xff]
    %v915 = vld [vmem:[#allocation10 + $0x740] sm:$0xff]
    %v916 = vld [vmem:[#allocation10 + $0x748] sm:$0xff]
    %v917 = vld [vmem:[#allocation10 + $0x750] sm:$0xff]
    %v918 = vld [vmem:[#allocation10 + $0x758] sm:$0xff]
    %v919 = vld [vmem:[#allocation10 + $0x760] sm:$0xff]
    %v920 = vld [vmem:[#allocation10 + $0x768] sm:$0xff]
    %v921 = vld [vmem:[#allocation10 + $0x770] sm:$0xff]
    %v922 = vld [vmem:[#allocation10 + $0x778] sm:$0xff]
    %v923 = vld [vmem:[#allocation10 + $0x780] sm:$0xff]
    %v924 = vld [vmem:[#allocation10 + $0x788] sm:$0xff]
    %v925 = vld [vmem:[#allocation10 + $0x790] sm:$0xff]
    %v926 = vld [vmem:[#allocation10 + $0x798] sm:$0xff]
    %v927 = vld [vmem:[#allocation10 + $0x7a0] sm:$0xff]
    %v928 = vld [vmem:[#allocation10 + $0x7a8] sm:$0xff]
    %v929 = vld [vmem:[#allocation10 + $0x7b0] sm:$0xff]
    %v930 = vld [vmem:[#allocation10 + $0x7b8] sm:$0xff]
    %v931 = vld [vmem:[#allocation10 + $0x7c0] sm:$0xff]
    %v932 = vld [vmem:[#allocation10 + $0x7c8] sm:$0xff]
    %v933 = vld [vmem:[#allocation10 + $0x7d0] sm:$0xff]
    %v934 = vld [vmem:[#allocation10 + $0x7d8] sm:$0xff]
    %v935 = vld [vmem:[#allocation10 + $0x7e0] sm:$0xff]
    %v936 = vld [vmem:[#allocation10 + $0x7e8] sm:$0xff]
    %v937 = vld [vmem:[#allocation10 + $0x7f0] sm:$0xff]
    %v938 = vld [vmem:[#allocation10 + $0x7f8] sm:$0xff]
    %v939 = vld [vmem:[#allocation10 + $0x800] sm:$0xff]
    %v940 = vld [vmem:[#allocation10 + $0x808] sm:$0xff]
    %v941 = vld [vmem:[#allocation10 + $0x810] sm:$0xff]
    %v942 = vld [vmem:[#allocation10 + $0x818] sm:$0xff]
    %v943 = vld [vmem:[#allocation10 + $0x820] sm:$0xff]
    %v944 = vld [vmem:[#allocation10 + $0x828] sm:$0xff]
    %v945 = vld [vmem:[#allocation10 + $0x830] sm:$0xff]
    %v946 = vld [vmem:[#allocation10 + $0x838] sm:$0xff]
    %v947 = vld [vmem:[#allocation10 + $0x840] sm:$0xff]
    %v948 = vld [vmem:[#allocation10 + $0x848] sm:$0xff]
    %v949 = vld [vmem:[#allocation10 + $0x850] sm:$0xff]
    %v950 = vld [vmem:[#allocation10 + $0x858] sm:$0xff]
    %v951 = vld [vmem:[#allocation10 + $0x860] sm:$0xff]
    %v952 = vld [vmem:[#allocation10 + $0x868] sm:$0xff]
    %v953 = vld [vmem:[#allocation10 + $0x870] sm:$0xff]
    %v954 = vld [vmem:[#allocation10 + $0x878] sm:$0xff]
    %v955 = vld [vmem:[#allocation10 + $0x880] sm:$0xff]
    %v956 = vld [vmem:[#allocation10 + $0x888] sm:$0xff]
    %v957 = vld [vmem:[#allocation10 + $0x890] sm:$0xff]
    %v958 = vld [vmem:[#allocation10 + $0x898] sm:$0xff]
    %v959 = vld [vmem:[#allocation10 + $0x8a0] sm:$0xff]
    %v960 = vld [vmem:[#allocation10 + $0x8a8] sm:$0xff]
    %v961 = vld [vmem:[#allocation10 + $0x8b0] sm:$0xff]
    %v962 = vld [vmem:[#allocation10 + $0x8b8] sm:$0xff]
    %v963 = vld [vmem:[#allocation10 + $0x8c0] sm:$0xff]
    %v964 = vld [vmem:[#allocation10 + $0x8c8] sm:$0xff]
    %v965 = vld [vmem:[#allocation10 + $0x8d0] sm:$0xff]
    %v966 = vld [vmem:[#allocation10 + $0x8d8] sm:$0xff]
    %v967 = vld [vmem:[#allocation10 + $0x8e0] sm:$0xff]
    %v968 = vld [vmem:[#allocation10 + $0x8e8] sm:$0xff]
    %v969 = vld [vmem:[#allocation10 + $0x8f0] sm:$0xff]
    %v970 = vld [vmem:[#allocation10 + $0x8f8] sm:$0xff]
    %v971 = vld [vmem:[#allocation11] sm:$0x3f]
    %v973 = vlaneseq
    %v974 = vshrl.u32 %v973, 7
    %v975 = vsub.s32 0, %v974
    %v976 = vrot.slane %v971, %v975
    %v977 = vlaneseq
    %v978 = vshrl.u32 %v977, 7
    %v979 = vsub.s32 1, %v978
    %v980 = vrot.slane %v971, %v979
    %v981 = vlaneseq
    %v982 = vshrl.u32 %v981, 7
    %v983 = vsub.s32 2, %v982
    %v984 = vrot.slane %v971, %v983
    %v985 = vlaneseq
    %v986 = vshrl.u32 %v985, 7
    %v987 = vsub.s32 3, %v986
    %v988 = vrot.slane %v971, %v987
    %v989 = vlaneseq
    %v990 = vshrl.u32 %v989, 7
    %v991 = vsub.s32 4, %v990
    %v992 = vrot.slane %v971, %v991
    %v993 = vlaneseq
    %v994 = vshrl.u32 %v993, 7
    %v995 = vsub.s32 5, %v994
    %v996 = vrot.slane %v971, %v995
    %v1291 = vunpack.c.l.b16 %v683
    %v1292 = vunpack.c.h.b16 %v683
    %v1293 = vunpack.c.l.b16 %v684
    %v1294 = vunpack.c.h.b16 %v684
    %v1295 = vunpack.c.l.b16 %v685
    %v1296 = vunpack.c.h.b16 %v685
    %v1297 = vunpack.c.l.b16 %v686
    %v1298 = vunpack.c.h.b16 %v686
    %v1299 = vunpack.c.l.b16 %v687
    %v1300 = vunpack.c.h.b16 %v687
    %v1301 = vunpack.c.l.b16 %v688
    %v1302 = vunpack.c.h.b16 %v688
    %v1303 = vunpack.c.l.b16 %v689
    %v1304 = vunpack.c.h.b16 %v689
    %v1305 = vunpack.c.l.b16 %v690
    %v1306 = vunpack.c.h.b16 %v690
    %v1307 = vunpack.c.l.b16 %v691
    %v1308 = vunpack.c.h.b16 %v691
    %v1309 = vunpack.c.l.b16 %v692
    %v1310 = vunpack.c.h.b16 %v692
    %v1311 = vunpack.c.l.b16 %v693
    %v1312 = vunpack.c.h.b16 %v693
    %v1313 = vunpack.c.l.b16 %v694
    %v1314 = vunpack.c.h.b16 %v694
    %v1315 = vunpack.c.l.b16 %v695
    %v1316 = vunpack.c.h.b16 %v695
    %v1317 = vunpack.c.l.b16 %v696
    %v1318 = vunpack.c.h.b16 %v696
    %v1319 = vunpack.c.l.b16 %v697
    %v1320 = vunpack.c.h.b16 %v697
    %v1321 = vunpack.c.l.b16 %v698
    %v1322 = vunpack.c.h.b16 %v698
    %v1323 = vunpack.c.l.b16 %v699
    %v1324 = vunpack.c.h.b16 %v699
    %v1325 = vunpack.c.l.b16 %v700
    %v1326 = vunpack.c.h.b16 %v700
    %v1327 = vunpack.c.l.b16 %v701
    %v1328 = vunpack.c.h.b16 %v701
    %v1329 = vunpack.c.l.b16 %v702
    %v1330 = vunpack.c.h.b16 %v702
    %v1331 = vunpack.c.l.b16 %v703
    %v1332 = vunpack.c.h.b16 %v703
    %v1333 = vunpack.c.l.b16 %v704
    %v1334 = vunpack.c.h.b16 %v704
    %v1335 = vunpack.c.l.b16 %v705
    %v1336 = vunpack.c.h.b16 %v705
    %v1337 = vunpack.c.l.b16 %v706
    %v1338 = vunpack.c.h.b16 %v706
    %v1339 = vunpack.c.l.b16 %v707
    %v1340 = vunpack.c.h.b16 %v707
    %v1341 = vunpack.c.l.b16 %v708
    %v1342 = vunpack.c.h.b16 %v708
    %v1343 = vunpack.c.l.b16 %v709
    %v1344 = vunpack.c.h.b16 %v709
    %v1345 = vunpack.c.l.b16 %v710
    %v1346 = vunpack.c.h.b16 %v710
    %v1347 = vunpack.c.l.b16 %v711
    %v1348 = vunpack.c.h.b16 %v711
    %v1349 = vunpack.c.l.b16 %v712
    %v1350 = vunpack.c.h.b16 %v712
    %v1351 = vunpack.c.l.b16 %v713
    %v1352 = vunpack.c.h.b16 %v713
    %v1353 = vunpack.c.l.b16 %v714
    %v1354 = vunpack.c.h.b16 %v714
    %v1355 = vunpack.c.l.b16 %v715
    %v1356 = vunpack.c.h.b16 %v715
    %v1357 = vunpack.c.l.b16 %v716
    %v1358 = vunpack.c.h.b16 %v716
    %v1359 = vunpack.c.l.b16 %v717
    %v1360 = vunpack.c.h.b16 %v717
    %v1361 = vunpack.c.l.b16 %v718
    %v1362 = vunpack.c.h.b16 %v718
    %v1363 = vunpack.c.l.b16 %v719
    %v1364 = vunpack.c.h.b16 %v719
    %v1365 = vunpack.c.l.b16 %v720
    %v1366 = vunpack.c.h.b16 %v720
    %v1367 = vunpack.c.l.b16 %v721
    %v1368 = vunpack.c.h.b16 %v721
    %v1369 = vunpack.c.l.b16 %v722
    %v1370 = vunpack.c.h.b16 %v722
    %v1371 = vunpack.c.l.b16 %v723
    %v1372 = vunpack.c.h.b16 %v723
    %v1373 = vunpack.c.l.b16 %v724
    %v1374 = vunpack.c.h.b16 %v724
    %v1375 = vunpack.c.l.b16 %v725
    %v1376 = vunpack.c.h.b16 %v725
    %v1377 = vunpack.c.l.b16 %v726
    %v1378 = vunpack.c.h.b16 %v726
    %v1379 = vunpack.c.l.b16 %v727
    %v1380 = vunpack.c.h.b16 %v727
    %v1381 = vunpack.c.l.b16 %v728
    %v1382 = vunpack.c.h.b16 %v728
    %v1383 = vunpack.c.l.b16 %v729
    %v1384 = vunpack.c.h.b16 %v729
    %v1385 = vunpack.c.l.b16 %v730
    %v1386 = vunpack.c.h.b16 %v730
    %v1387 = vunpack.c.l.b16 %v731
    %v1388 = vunpack.c.h.b16 %v731
    %v1389 = vunpack.c.l.b16 %v732
    %v1390 = vunpack.c.h.b16 %v732
    %v1391 = vunpack.c.l.b16 %v733
    %v1392 = vunpack.c.h.b16 %v733
    %v1393 = vunpack.c.l.b16 %v734
    %v1394 = vunpack.c.h.b16 %v734
    %v1395 = vunpack.c.l.b16 %v735
    %v1396 = vunpack.c.h.b16 %v735
    %v1397 = vunpack.c.l.b16 %v736
    %v1398 = vunpack.c.h.b16 %v736
    %v1399 = vunpack.c.l.b16 %v737
    %v1400 = vunpack.c.h.b16 %v737
    %v1401 = vunpack.c.l.b16 %v738
    %v1402 = vunpack.c.h.b16 %v738
    %v1403 = vunpack.c.l.b16 %v739
    %v1404 = vunpack.c.h.b16 %v739
    %v1405 = vunpack.c.l.b16 %v740
    %v1406 = vunpack.c.h.b16 %v740
    %v1407 = vunpack.c.l.b16 %v741
    %v1408 = vunpack.c.h.b16 %v741
    %v1409 = vunpack.c.l.b16 %v742
    %v1410 = vunpack.c.h.b16 %v742
    %v1411 = vunpack.c.l.b16 %v743
    %v1412 = vunpack.c.h.b16 %v743
    %v1413 = vunpack.c.l.b16 %v744
    %v1414 = vunpack.c.h.b16 %v744
    %v1415 = vunpack.c.l.b16 %v745
    %v1416 = vunpack.c.h.b16 %v745
    %v1417 = vunpack.c.l.b16 %v746
    %v1418 = vunpack.c.h.b16 %v746
    %v1419 = vunpack.c.l.b16 %v747
    %v1420 = vunpack.c.h.b16 %v747
    %v1421 = vunpack.c.l.b16 %v748
    %v1422 = vunpack.c.h.b16 %v748
    %v1423 = vunpack.c.l.b16 %v749
    %v1424 = vunpack.c.h.b16 %v749
    %v1425 = vunpack.c.l.b16 %v750
    %v1426 = vunpack.c.h.b16 %v750
    %v1427 = vunpack.c.l.b16 %v751
    %v1428 = vunpack.c.h.b16 %v751
    %v1429 = vunpack.c.l.b16 %v752
    %v1430 = vunpack.c.h.b16 %v752
    %v1431 = vunpack.c.l.b16 %v753
    %v1432 = vunpack.c.h.b16 %v753
    %v1433 = vunpack.c.l.b16 %v754
    %v1434 = vunpack.c.h.b16 %v754
    %v1435 = vunpack.c.l.b16 %v755
    %v1436 = vunpack.c.h.b16 %v755
    %v1437 = vunpack.c.l.b16 %v756
    %v1438 = vunpack.c.h.b16 %v756
    %v1439 = vunpack.c.l.b16 %v757
    %v1440 = vunpack.c.h.b16 %v757
    %v1441 = vunpack.c.l.b16 %v758
    %v1442 = vunpack.c.h.b16 %v758
    %v1443 = vunpack.c.l.b16 %v759
    %v1444 = vunpack.c.h.b16 %v759
    %v1445 = vunpack.c.l.b16 %v760
    %v1446 = vunpack.c.h.b16 %v760
    %v1447 = vunpack.c.l.b16 %v761
    %v1448 = vunpack.c.h.b16 %v761
    %v1449 = vunpack.c.l.b16 %v762
    %v1450 = vunpack.c.h.b16 %v762
    %v1451 = vunpack.c.l.b16 %v763
    %v1452 = vunpack.c.h.b16 %v763
    %v1453 = vunpack.c.l.b16 %v764
    %v1454 = vunpack.c.h.b16 %v764
    %v1455 = vunpack.c.l.b16 %v765
    %v1456 = vunpack.c.h.b16 %v765
    %v1457 = vunpack.c.l.b16 %v766
    %v1458 = vunpack.c.h.b16 %v766
    %v1459 = vunpack.c.l.b16 %v767
    %v1460 = vunpack.c.h.b16 %v767
    %v1461 = vunpack.c.l.b16 %v768
    %v1462 = vunpack.c.h.b16 %v768
    %v1463 = vunpack.c.l.b16 %v769
    %v1464 = vunpack.c.h.b16 %v769
    %v1465 = vunpack.c.l.b16 %v770
    %v1466 = vunpack.c.h.b16 %v770
    %v1467 = vunpack.c.l.b16 %v771
    %v1468 = vunpack.c.h.b16 %v771
    %v1469 = vunpack.c.l.b16 %v772
    %v1470 = vunpack.c.h.b16 %v772
    %v1471 = vunpack.c.l.b16 %v773
    %v1472 = vunpack.c.h.b16 %v773
    %v1473 = vunpack.c.l.b16 %v774
    %v1474 = vunpack.c.h.b16 %v774
    %v1475 = vunpack.c.l.b16 %v775
    %v1476 = vunpack.c.h.b16 %v775
    %v1477 = vunpack.c.l.b16 %v776
    %v1478 = vunpack.c.h.b16 %v776
    %v1479 = vunpack.c.l.b16 %v777
    %v1480 = vunpack.c.h.b16 %v777
    %v1481 = vunpack.c.l.b16 %v778
    %v1482 = vunpack.c.h.b16 %v778
    %v1483 = vunpack.c.l.b16 %v779
    %v1484 = vunpack.c.h.b16 %v779
    %v1485 = vunpack.c.l.b16 %v780
    %v1486 = vunpack.c.h.b16 %v780
    %v1487 = vunpack.c.l.b16 %v781
    %v1488 = vunpack.c.h.b16 %v781
    %v1489 = vunpack.c.l.b16 %v782
    %v1490 = vunpack.c.h.b16 %v782
    %v1491 = vunpack.c.l.b16 %v783
    %v1492 = vunpack.c.h.b16 %v783
    %v1493 = vunpack.c.l.b16 %v784
    %v1494 = vunpack.c.h.b16 %v784
    %v1495 = vunpack.c.l.b16 %v785
    %v1496 = vunpack.c.h.b16 %v785
    %v1497 = vunpack.c.l.b16 %v786
    %v1498 = vunpack.c.h.b16 %v786
    %v1499 = vunpack.c.l.b16 %v787
    %v1500 = vunpack.c.h.b16 %v787
    %v1501 = vunpack.c.l.b16 %v788
    %v1502 = vunpack.c.h.b16 %v788
    %v1503 = vunpack.c.l.b16 %v789
    %v1504 = vunpack.c.h.b16 %v789
    %v1505 = vunpack.c.l.b16 %v790
    %v1506 = vunpack.c.h.b16 %v790
    %v1507 = vunpack.c.l.b16 %v791
    %v1508 = vunpack.c.h.b16 %v791
    %v1509 = vunpack.c.l.b16 %v792
    %v1510 = vunpack.c.h.b16 %v792
    %v1511 = vunpack.c.l.b16 %v793
    %v1512 = vunpack.c.h.b16 %v793
    %v1513 = vunpack.c.l.b16 %v794
    %v1514 = vunpack.c.h.b16 %v794
    %v1515 = vunpack.c.l.b16 %v795
    %v1516 = vunpack.c.h.b16 %v795
    %v1517 = vunpack.c.l.b16 %v796
    %v1518 = vunpack.c.h.b16 %v796
    %v1519 = vunpack.c.l.b16 %v797
    %v1520 = vunpack.c.h.b16 %v797
    %v1521 = vunpack.c.l.b16 %v798
    %v1522 = vunpack.c.h.b16 %v798
    %v1523 = vunpack.c.l.b16 %v799
    %v1524 = vunpack.c.h.b16 %v799
    %v1525 = vunpack.c.l.b16 %v800
    %v1526 = vunpack.c.h.b16 %v800
    %v1527 = vunpack.c.l.b16 %v801
    %v1528 = vunpack.c.h.b16 %v801
    %v1529 = vunpack.c.l.b16 %v802
    %v1530 = vunpack.c.h.b16 %v802
    %v1531 = vunpack.c.l.b16 %v803
    %v1532 = vunpack.c.h.b16 %v803
    %v1533 = vunpack.c.l.b16 %v804
    %v1534 = vunpack.c.h.b16 %v804
    %v1535 = vunpack.c.l.b16 %v805
    %v1536 = vunpack.c.h.b16 %v805
    %v1537 = vunpack.c.l.b16 %v806
    %v1538 = vunpack.c.h.b16 %v806
    %v1539 = vunpack.c.l.b16 %v807
    %v1540 = vunpack.c.h.b16 %v807
    %v1541 = vunpack.c.l.b16 %v808
    %v1542 = vunpack.c.h.b16 %v808
    %v1543 = vunpack.c.l.b16 %v809
    %v1544 = vunpack.c.h.b16 %v809
    %v1545 = vunpack.c.l.b16 %v810
    %v1546 = vunpack.c.h.b16 %v810
    %v1547 = vunpack.c.l.b16 %v811
    %v1548 = vunpack.c.h.b16 %v811
    %v1549 = vunpack.c.l.b16 %v812
    %v1550 = vunpack.c.h.b16 %v812
    %v1551 = vunpack.c.l.b16 %v813
    %v1552 = vunpack.c.h.b16 %v813
    %v1553 = vunpack.c.l.b16 %v814
    %v1554 = vunpack.c.h.b16 %v814
    %v1555 = vunpack.c.l.b16 %v815
    %v1556 = vunpack.c.h.b16 %v815
    %v1557 = vunpack.c.l.b16 %v816
    %v1558 = vunpack.c.h.b16 %v816
    %v1559 = vunpack.c.l.b16 %v817
    %v1560 = vunpack.c.h.b16 %v817
    %v1561 = vunpack.c.l.b16 %v818
    %v1562 = vunpack.c.h.b16 %v818
    %v1563 = vunpack.c.l.b16 %v819
    %v1564 = vunpack.c.h.b16 %v819
    %v1565 = vunpack.c.l.b16 %v820
    %v1566 = vunpack.c.h.b16 %v820
    %v1567 = vunpack.c.l.b16 %v821
    %v1568 = vunpack.c.h.b16 %v821
    %v1569 = vunpack.c.l.b16 %v822
    %v1570 = vunpack.c.h.b16 %v822
    %v1571 = vunpack.c.l.b16 %v823
    %v1572 = vunpack.c.h.b16 %v823
    %v1573 = vunpack.c.l.b16 %v824
    %v1574 = vunpack.c.h.b16 %v824
    %v1575 = vunpack.c.l.b16 %v825
    %v1576 = vunpack.c.h.b16 %v825
    %v1577 = vunpack.c.l.b16 %v826
    %v1578 = vunpack.c.h.b16 %v826
    %v1579 = vunpack.c.l.b16 %v827
    %v1580 = vunpack.c.h.b16 %v827
    %v1581 = vunpack.c.l.b16 %v828
    %v1582 = vunpack.c.h.b16 %v828
    %v1583 = vunpack.c.l.b16 %v829
    %v1584 = vunpack.c.h.b16 %v829
    %v1585 = vunpack.c.l.b16 %v830
    %v1586 = vunpack.c.h.b16 %v830
    %v1587 = vunpack.c.l.b16 %v831
    %v1588 = vunpack.c.h.b16 %v831
    %v1589 = vunpack.c.l.b16 %v832
    %v1590 = vunpack.c.h.b16 %v832
    %v1591 = vunpack.c.l.b16 %v833
    %v1592 = vunpack.c.h.b16 %v833
    %v1593 = vunpack.c.l.b16 %v834
    %v1594 = vunpack.c.h.b16 %v834
    %v1595 = vunpack.c.l.b16 %v835
    %v1596 = vunpack.c.h.b16 %v835
    %v1597 = vunpack.c.l.b16 %v836
    %v1598 = vunpack.c.h.b16 %v836
    %v1599 = vunpack.c.l.b16 %v837
    %v1600 = vunpack.c.h.b16 %v837
    %v1601 = vunpack.c.l.b16 %v838
    %v1602 = vunpack.c.h.b16 %v838
    %v1603 = vunpack.c.l.b16 %v839
    %v1604 = vunpack.c.h.b16 %v839
    %v1605 = vunpack.c.l.b16 %v840
    %v1606 = vunpack.c.h.b16 %v840
    %v1607 = vunpack.c.l.b16 %v841
    %v1608 = vunpack.c.h.b16 %v841
    %v1609 = vunpack.c.l.b16 %v842
    %v1610 = vunpack.c.h.b16 %v842
    %v1611 = vunpack.c.l.b16 %v843
    %v1612 = vunpack.c.h.b16 %v843
    %v1613 = vunpack.c.l.b16 %v844
    %v1614 = vunpack.c.h.b16 %v844
    %v1615 = vunpack.c.l.b16 %v845
    %v1616 = vunpack.c.h.b16 %v845
    %v1617 = vunpack.c.l.b16 %v846
    %v1618 = vunpack.c.h.b16 %v846
    %v1619 = vunpack.c.l.b16 %v847
    %v1620 = vunpack.c.h.b16 %v847
    %v1621 = vunpack.c.l.b16 %v848
    %v1622 = vunpack.c.h.b16 %v848
    %v1623 = vunpack.c.l.b16 %v849
    %v1624 = vunpack.c.h.b16 %v849
    %v1625 = vunpack.c.l.b16 %v850
    %v1626 = vunpack.c.h.b16 %v850
    %v1627 = vunpack.c.l.b16 %v851
    %v1628 = vunpack.c.h.b16 %v851
    %v1629 = vunpack.c.l.b16 %v852
    %v1630 = vunpack.c.h.b16 %v852
    %v1631 = vunpack.c.l.b16 %v853
    %v1632 = vunpack.c.h.b16 %v853
    %v1633 = vunpack.c.l.b16 %v854
    %v1634 = vunpack.c.h.b16 %v854
    %v1635 = vunpack.c.l.b16 %v855
    %v1636 = vunpack.c.h.b16 %v855
    %v1637 = vunpack.c.l.b16 %v856
    %v1638 = vunpack.c.h.b16 %v856
    %v1639 = vunpack.c.l.b16 %v857
    %v1640 = vunpack.c.h.b16 %v857
    %v1641 = vunpack.c.l.b16 %v858
    %v1642 = vunpack.c.h.b16 %v858
    %v1643 = vunpack.c.l.b16 %v859
    %v1644 = vunpack.c.h.b16 %v859
    %v1645 = vunpack.c.l.b16 %v860
    %v1646 = vunpack.c.h.b16 %v860
    %v1647 = vunpack.c.l.b16 %v861
    %v1648 = vunpack.c.h.b16 %v861
    %v1649 = vunpack.c.l.b16 %v862
    %v1650 = vunpack.c.h.b16 %v862
    %v1651 = vunpack.c.l.b16 %v863
    %v1652 = vunpack.c.h.b16 %v863
    %v1653 = vunpack.c.l.b16 %v864
    %v1654 = vunpack.c.h.b16 %v864
    %v1655 = vunpack.c.l.b16 %v865
    %v1656 = vunpack.c.h.b16 %v865
    %v1657 = vunpack.c.l.b16 %v866
    %v1658 = vunpack.c.h.b16 %v866
    %v1659 = vunpack.c.l.b16 %v867
    %v1660 = vunpack.c.h.b16 %v867
    %v1661 = vunpack.c.l.b16 %v868
    %v1662 = vunpack.c.h.b16 %v868
    %v1663 = vunpack.c.l.b16 %v869
    %v1664 = vunpack.c.h.b16 %v869
    %v1665 = vunpack.c.l.b16 %v870
    %v1666 = vunpack.c.h.b16 %v870
    %v1667 = vunpack.c.l.b16 %v871
    %v1668 = vunpack.c.h.b16 %v871
    %v1669 = vunpack.c.l.b16 %v872
    %v1670 = vunpack.c.h.b16 %v872
    %v1671 = vunpack.c.l.b16 %v873
    %v1672 = vunpack.c.h.b16 %v873
    %v1673 = vunpack.c.l.b16 %v874
    %v1674 = vunpack.c.h.b16 %v874
    %v1675 = vunpack.c.l.b16 %v875
    %v1676 = vunpack.c.h.b16 %v875
    %v1677 = vunpack.c.l.b16 %v876
    %v1678 = vunpack.c.h.b16 %v876
    %v1679 = vunpack.c.l.b16 %v877
    %v1680 = vunpack.c.h.b16 %v877
    %v1681 = vunpack.c.l.b16 %v878
    %v1682 = vunpack.c.h.b16 %v878
    %v1683 = vunpack.c.l.b16 %v879
    %v1684 = vunpack.c.h.b16 %v879
    %v1685 = vunpack.c.l.b16 %v880
    %v1686 = vunpack.c.h.b16 %v880
    %v1687 = vunpack.c.l.b16 %v881
    %v1688 = vunpack.c.h.b16 %v881
    %v1689 = vunpack.c.l.b16 %v882
    %v1690 = vunpack.c.h.b16 %v882
    %v1691 = vunpack.c.l.b16 %v883
    %v1692 = vunpack.c.h.b16 %v883
    %v1693 = vunpack.c.l.b16 %v884
    %v1694 = vunpack.c.h.b16 %v884
    %v1695 = vunpack.c.l.b16 %v885
    %v1696 = vunpack.c.h.b16 %v885
    %v1697 = vunpack.c.l.b16 %v886
    %v1698 = vunpack.c.h.b16 %v886
    %v1699 = vunpack.c.l.b16 %v887
    %v1700 = vunpack.c.h.b16 %v887
    %v1701 = vunpack.c.l.b16 %v888
    %v1702 = vunpack.c.h.b16 %v888
    %v1703 = vunpack.c.l.b16 %v889
    %v1704 = vunpack.c.h.b16 %v889
    %v1705 = vunpack.c.l.b16 %v890
    %v1706 = vunpack.c.h.b16 %v890
    %v1707 = vunpack.c.l.b16 %v891
    %v1708 = vunpack.c.h.b16 %v891
    %v1709 = vunpack.c.l.b16 %v892
    %v1710 = vunpack.c.h.b16 %v892
    %v1711 = vunpack.c.l.b16 %v893
    %v1712 = vunpack.c.h.b16 %v893
    %v1713 = vunpack.c.l.b16 %v894
    %v1714 = vunpack.c.h.b16 %v894
    %v1715 = vunpack.c.l.b16 %v895
    %v1716 = vunpack.c.h.b16 %v895
    %v1717 = vunpack.c.l.b16 %v896
    %v1718 = vunpack.c.h.b16 %v896
    %v1719 = vunpack.c.l.b16 %v897
    %v1720 = vunpack.c.h.b16 %v897
    %v1721 = vunpack.c.l.b16 %v898
    %v1722 = vunpack.c.h.b16 %v898
    %v1723 = vunpack.c.l.b16 %v899
    %v1724 = vunpack.c.h.b16 %v899
    %v1725 = vunpack.c.l.b16 %v900
    %v1726 = vunpack.c.h.b16 %v900
    %v1727 = vunpack.c.l.b16 %v901
    %v1728 = vunpack.c.h.b16 %v901
    %v1729 = vunpack.c.l.b16 %v902
    %v1730 = vunpack.c.h.b16 %v902
    %v1731 = vunpack.c.l.b16 %v903
    %v1732 = vunpack.c.h.b16 %v903
    %v1733 = vunpack.c.l.b16 %v904
    %v1734 = vunpack.c.h.b16 %v904
    %v1735 = vunpack.c.l.b16 %v905
    %v1736 = vunpack.c.h.b16 %v905
    %v1737 = vunpack.c.l.b16 %v906
    %v1738 = vunpack.c.h.b16 %v906
    %v1739 = vunpack.c.l.b16 %v907
    %v1740 = vunpack.c.h.b16 %v907
    %v1741 = vunpack.c.l.b16 %v908
    %v1742 = vunpack.c.h.b16 %v908
    %v1743 = vunpack.c.l.b16 %v909
    %v1744 = vunpack.c.h.b16 %v909
    %v1745 = vunpack.c.l.b16 %v910
    %v1746 = vunpack.c.h.b16 %v910
    %v1747 = vunpack.c.l.b16 %v911
    %v1748 = vunpack.c.h.b16 %v911
    %v1749 = vunpack.c.l.b16 %v912
    %v1750 = vunpack.c.h.b16 %v912
    %v1751 = vunpack.c.l.b16 %v913
    %v1752 = vunpack.c.h.b16 %v913
    %v1753 = vunpack.c.l.b16 %v914
    %v1754 = vunpack.c.h.b16 %v914
    %v1755 = vunpack.c.l.b16 %v915
    %v1756 = vunpack.c.h.b16 %v915
    %v1757 = vunpack.c.l.b16 %v916
    %v1758 = vunpack.c.h.b16 %v916
    %v1759 = vunpack.c.l.b16 %v917
    %v1760 = vunpack.c.h.b16 %v917
    %v1761 = vunpack.c.l.b16 %v918
    %v1762 = vunpack.c.h.b16 %v918
    %v1763 = vunpack.c.l.b16 %v919
    %v1764 = vunpack.c.h.b16 %v919
    %v1765 = vunpack.c.l.b16 %v920
    %v1766 = vunpack.c.h.b16 %v920
    %v1767 = vunpack.c.l.b16 %v921
    %v1768 = vunpack.c.h.b16 %v921
    %v1769 = vunpack.c.l.b16 %v922
    %v1770 = vunpack.c.h.b16 %v922
    %v1771 = vunpack.c.l.b16 %v923
    %v1772 = vunpack.c.h.b16 %v923
    %v1773 = vunpack.c.l.b16 %v924
    %v1774 = vunpack.c.h.b16 %v924
    %v1775 = vunpack.c.l.b16 %v925
    %v1776 = vunpack.c.h.b16 %v925
    %v1777 = vunpack.c.l.b16 %v926
    %v1778 = vunpack.c.h.b16 %v926
    %v1779 = vunpack.c.l.b16 %v927
    %v1780 = vunpack.c.h.b16 %v927
    %v1781 = vunpack.c.l.b16 %v928
    %v1782 = vunpack.c.h.b16 %v928
    %v1783 = vunpack.c.l.b16 %v929
    %v1784 = vunpack.c.h.b16 %v929
    %v1785 = vunpack.c.l.b16 %v930
    %v1786 = vunpack.c.h.b16 %v930
    %v1787 = vunpack.c.l.b16 %v931
    %v1788 = vunpack.c.h.b16 %v931
    %v1789 = vunpack.c.l.b16 %v932
    %v1790 = vunpack.c.h.b16 %v932
    %v1791 = vunpack.c.l.b16 %v933
    %v1792 = vunpack.c.h.b16 %v933
    %v1793 = vunpack.c.l.b16 %v934
    %v1794 = vunpack.c.h.b16 %v934
    %v1795 = vunpack.c.l.b16 %v935
    %v1796 = vunpack.c.h.b16 %v935
    %v1797 = vunpack.c.l.b16 %v936
    %v1798 = vunpack.c.h.b16 %v936
    %v1799 = vunpack.c.l.b16 %v937
    %v1800 = vunpack.c.h.b16 %v937
    %v1801 = vunpack.c.l.b16 %v938
    %v1802 = vunpack.c.h.b16 %v938
    %v1803 = vunpack.c.l.b16 %v939
    %v1804 = vunpack.c.h.b16 %v939
    %v1805 = vunpack.c.l.b16 %v940
    %v1806 = vunpack.c.h.b16 %v940
    %v1807 = vunpack.c.l.b16 %v941
    %v1808 = vunpack.c.h.b16 %v941
    %v1809 = vunpack.c.l.b16 %v942
    %v1810 = vunpack.c.h.b16 %v942
    %v1811 = vunpack.c.l.b16 %v943
    %v1812 = vunpack.c.h.b16 %v943
    %v1813 = vunpack.c.l.b16 %v944
    %v1814 = vunpack.c.h.b16 %v944
    %v1815 = vunpack.c.l.b16 %v945
    %v1816 = vunpack.c.h.b16 %v945
    %v1817 = vunpack.c.l.b16 %v946
    %v1818 = vunpack.c.h.b16 %v946
    %v1819 = vunpack.c.l.b16 %v947
    %v1820 = vunpack.c.h.b16 %v947
    %v1821 = vunpack.c.l.b16 %v948
    %v1822 = vunpack.c.h.b16 %v948
    %v1823 = vunpack.c.l.b16 %v949
    %v1824 = vunpack.c.h.b16 %v949
    %v1825 = vunpack.c.l.b16 %v950
    %v1826 = vunpack.c.h.b16 %v950
    %v1827 = vunpack.c.l.b16 %v951
    %v1828 = vunpack.c.h.b16 %v951
    %v1829 = vunpack.c.l.b16 %v952
    %v1830 = vunpack.c.h.b16 %v952
    %v1831 = vunpack.c.l.b16 %v953
    %v1832 = vunpack.c.h.b16 %v953
    %v1833 = vunpack.c.l.b16 %v954
    %v1834 = vunpack.c.h.b16 %v954
    %v1835 = vunpack.c.l.b16 %v955
    %v1836 = vunpack.c.h.b16 %v955
    %v1837 = vunpack.c.l.b16 %v956
    %v1838 = vunpack.c.h.b16 %v956
    %v1839 = vunpack.c.l.b16 %v957
    %v1840 = vunpack.c.h.b16 %v957
    %v1841 = vunpack.c.l.b16 %v958
    %v1842 = vunpack.c.h.b16 %v958
    %v1843 = vunpack.c.l.b16 %v959
    %v1844 = vunpack.c.h.b16 %v959
    %v1845 = vunpack.c.l.b16 %v960
    %v1846 = vunpack.c.h.b16 %v960
    %v1847 = vunpack.c.l.b16 %v961
    %v1848 = vunpack.c.h.b16 %v961
    %v1849 = vunpack.c.l.b16 %v962
    %v1850 = vunpack.c.h.b16 %v962
    %v1851 = vunpack.c.l.b16 %v963
    %v1852 = vunpack.c.h.b16 %v963
    %v1853 = vunpack.c.l.b16 %v964
    %v1854 = vunpack.c.h.b16 %v964
    %v1855 = vunpack.c.l.b16 %v965
    %v1856 = vunpack.c.h.b16 %v965
    %v1857 = vunpack.c.l.b16 %v966
    %v1858 = vunpack.c.h.b16 %v966
    %v1859 = vunpack.c.l.b16 %v967
    %v1860 = vunpack.c.h.b16 %v967
    %v1861 = vunpack.c.l.b16 %v968
    %v1862 = vunpack.c.h.b16 %v968
    %v1863 = vunpack.c.l.b16 %v969
    %v1864 = vunpack.c.h.b16 %v969
    %v1865 = vunpack.c.l.b16 %v970
    %v1866 = vunpack.c.h.b16 %v970
    %v1867 = vpack.c.b16 %v1297, %v1291
    %v1868 = vpack.c.b16 %v1298, %v1292
    %v1869 = vpack.c.b16 %v1299, %v1293
    %v1870 = vpack.c.b16 %v1300, %v1294
    %v1871 = vpack.c.b16 %v1301, %v1295
    %v1872 = vpack.c.b16 %v1302, %v1296
    %v1873 = vpack.c.b16 %v1309, %v1303
    %v1874 = vpack.c.b16 %v1310, %v1304
    %v1875 = vpack.c.b16 %v1311, %v1305
    %v1876 = vpack.c.b16 %v1312, %v1306
    %v1877 = vpack.c.b16 %v1313, %v1307
    %v1878 = vpack.c.b16 %v1314, %v1308
    %v1879 = vpack.c.b16 %v1321, %v1315
    %v1880 = vpack.c.b16 %v1322, %v1316
    %v1881 = vpack.c.b16 %v1323, %v1317
    %v1882 = vpack.c.b16 %v1324, %v1318
    %v1883 = vpack.c.b16 %v1325, %v1319
    %v1884 = vpack.c.b16 %v1326, %v1320
    %v1885 = vpack.c.b16 %v1333, %v1327
    %v1886 = vpack.c.b16 %v1334, %v1328
    %v1887 = vpack.c.b16 %v1335, %v1329
    %v1888 = vpack.c.b16 %v1336, %v1330
    %v1889 = vpack.c.b16 %v1337, %v1331
    %v1890 = vpack.c.b16 %v1338, %v1332
    %v1891 = vpack.c.b16 %v1345, %v1339
    %v1892 = vpack.c.b16 %v1346, %v1340
    %v1893 = vpack.c.b16 %v1347, %v1341
    %v1894 = vpack.c.b16 %v1348, %v1342
    %v1895 = vpack.c.b16 %v1349, %v1343
    %v1896 = vpack.c.b16 %v1350, %v1344
    %v1897 = vpack.c.b16 %v1357, %v1351
    %v1898 = vpack.c.b16 %v1358, %v1352
    %v1899 = vpack.c.b16 %v1359, %v1353
    %v1900 = vpack.c.b16 %v1360, %v1354
    %v1901 = vpack.c.b16 %v1361, %v1355
    %v1902 = vpack.c.b16 %v1362, %v1356
    %v1903 = vpack.c.b16 %v1369, %v1363
    %v1904 = vpack.c.b16 %v1370, %v1364
    %v1905 = vpack.c.b16 %v1371, %v1365
    %v1906 = vpack.c.b16 %v1372, %v1366
    %v1907 = vpack.c.b16 %v1373, %v1367
    %v1908 = vpack.c.b16 %v1374, %v1368
    %v1909 = vpack.c.b16 %v1381, %v1375
    %v1910 = vpack.c.b16 %v1382, %v1376
    %v1911 = vpack.c.b16 %v1383, %v1377
    %v1912 = vpack.c.b16 %v1384, %v1378
    %v1913 = vpack.c.b16 %v1385, %v1379
    %v1914 = vpack.c.b16 %v1386, %v1380
    %v1915 = vpack.c.b16 %v1393, %v1387
    %v1916 = vpack.c.b16 %v1394, %v1388
    %v1917 = vpack.c.b16 %v1395, %v1389
    %v1918 = vpack.c.b16 %v1396, %v1390
    %v1919 = vpack.c.b16 %v1397, %v1391
    %v1920 = vpack.c.b16 %v1398, %v1392
    %v1921 = vpack.c.b16 %v1405, %v1399
    %v1922 = vpack.c.b16 %v1406, %v1400
    %v1923 = vpack.c.b16 %v1407, %v1401
    %v1924 = vpack.c.b16 %v1408, %v1402
    %v1925 = vpack.c.b16 %v1409, %v1403
    %v1926 = vpack.c.b16 %v1410, %v1404
    %v1927 = vpack.c.b16 %v1417, %v1411
    %v1928 = vpack.c.b16 %v1418, %v1412
    %v1929 = vpack.c.b16 %v1419, %v1413
    %v1930 = vpack.c.b16 %v1420, %v1414
    %v1931 = vpack.c.b16 %v1421, %v1415
    %v1932 = vpack.c.b16 %v1422, %v1416
    %v1933 = vpack.c.b16 %v1429, %v1423
    %v1934 = vpack.c.b16 %v1430, %v1424
    %v1935 = vpack.c.b16 %v1431, %v1425
    %v1936 = vpack.c.b16 %v1432, %v1426
    %v1937 = vpack.c.b16 %v1433, %v1427
    %v1938 = vpack.c.b16 %v1434, %v1428
    %v1939 = vpack.c.b16 %v1441, %v1435
    %v1940 = vpack.c.b16 %v1442, %v1436
    %v1941 = vpack.c.b16 %v1443, %v1437
    %v1942 = vpack.c.b16 %v1444, %v1438
    %v1943 = vpack.c.b16 %v1445, %v1439
    %v1944 = vpack.c.b16 %v1446, %v1440
    %v1945 = vpack.c.b16 %v1453, %v1447
    %v1946 = vpack.c.b16 %v1454, %v1448
    %v1947 = vpack.c.b16 %v1455, %v1449
    %v1948 = vpack.c.b16 %v1456, %v1450
    %v1949 = vpack.c.b16 %v1457, %v1451
    %v1950 = vpack.c.b16 %v1458, %v1452
    %v1951 = vpack.c.b16 %v1465, %v1459
    %v1952 = vpack.c.b16 %v1466, %v1460
    %v1953 = vpack.c.b16 %v1467, %v1461
    %v1954 = vpack.c.b16 %v1468, %v1462
    %v1955 = vpack.c.b16 %v1469, %v1463
    %v1956 = vpack.c.b16 %v1470, %v1464
    %v1957 = vpack.c.b16 %v1477, %v1471
    %v1958 = vpack.c.b16 %v1478, %v1472
    %v1959 = vpack.c.b16 %v1479, %v1473
    %v1960 = vpack.c.b16 %v1480, %v1474
    %v1961 = vpack.c.b16 %v1481, %v1475
    %v1962 = vpack.c.b16 %v1482, %v1476
    %v1963 = vpack.c.b16 %v1489, %v1483
    %v1964 = vpack.c.b16 %v1490, %v1484
    %v1965 = vpack.c.b16 %v1491, %v1485
    %v1966 = vpack.c.b16 %v1492, %v1486
    %v1967 = vpack.c.b16 %v1493, %v1487
    %v1968 = vpack.c.b16 %v1494, %v1488
    %v1969 = vpack.c.b16 %v1501, %v1495
    %v1970 = vpack.c.b16 %v1502, %v1496
    %v1971 = vpack.c.b16 %v1503, %v1497
    %v1972 = vpack.c.b16 %v1504, %v1498
    %v1973 = vpack.c.b16 %v1505, %v1499
    %v1974 = vpack.c.b16 %v1506, %v1500
    %v1975 = vpack.c.b16 %v1513, %v1507
    %v1976 = vpack.c.b16 %v1514, %v1508
    %v1977 = vpack.c.b16 %v1515, %v1509
    %v1978 = vpack.c.b16 %v1516, %v1510
    %v1979 = vpack.c.b16 %v1517, %v1511
    %v1980 = vpack.c.b16 %v1518, %v1512
    %v1981 = vpack.c.b16 %v1525, %v1519
    %v1982 = vpack.c.b16 %v1526, %v1520
    %v1983 = vpack.c.b16 %v1527, %v1521
    %v1984 = vpack.c.b16 %v1528, %v1522
    %v1985 = vpack.c.b16 %v1529, %v1523
    %v1986 = vpack.c.b16 %v1530, %v1524
    %v1987 = vpack.c.b16 %v1537, %v1531
    %v1988 = vpack.c.b16 %v1538, %v1532
    %v1989 = vpack.c.b16 %v1539, %v1533
    %v1990 = vpack.c.b16 %v1540, %v1534
    %v1991 = vpack.c.b16 %v1541, %v1535
    %v1992 = vpack.c.b16 %v1542, %v1536
    %v1993 = vpack.c.b16 %v1549, %v1543
    %v1994 = vpack.c.b16 %v1550, %v1544
    %v1995 = vpack.c.b16 %v1551, %v1545
    %v1996 = vpack.c.b16 %v1552, %v1546
    %v1997 = vpack.c.b16 %v1553, %v1547
    %v1998 = vpack.c.b16 %v1554, %v1548
    %v1999 = vpack.c.b16 %v1561, %v1555
    %v2000 = vpack.c.b16 %v1562, %v1556
    %v2001 = vpack.c.b16 %v1563, %v1557
    %v2002 = vpack.c.b16 %v1564, %v1558
    %v2003 = vpack.c.b16 %v1565, %v1559
    %v2004 = vpack.c.b16 %v1566, %v1560
    %v2005 = vpack.c.b16 %v1573, %v1567
    %v2006 = vpack.c.b16 %v1574, %v1568
    %v2007 = vpack.c.b16 %v1575, %v1569
    %v2008 = vpack.c.b16 %v1576, %v1570
    %v2009 = vpack.c.b16 %v1577, %v1571
    %v2010 = vpack.c.b16 %v1578, %v1572
    %v2011 = vpack.c.b16 %v1585, %v1579
    %v2012 = vpack.c.b16 %v1586, %v1580
    %v2013 = vpack.c.b16 %v1587, %v1581
    %v2014 = vpack.c.b16 %v1588, %v1582
    %v2015 = vpack.c.b16 %v1589, %v1583
    %v2016 = vpack.c.b16 %v1590, %v1584
    %v2017 = vpack.c.b16 %v1597, %v1591
    %v2018 = vpack.c.b16 %v1598, %v1592
    %v2019 = vpack.c.b16 %v1599, %v1593
    %v2020 = vpack.c.b16 %v1600, %v1594
    %v2021 = vpack.c.b16 %v1601, %v1595
    %v2022 = vpack.c.b16 %v1602, %v1596
    %v2023 = vpack.c.b16 %v1609, %v1603
    %v2024 = vpack.c.b16 %v1610, %v1604
    %v2025 = vpack.c.b16 %v1611, %v1605
    %v2026 = vpack.c.b16 %v1612, %v1606
    %v2027 = vpack.c.b16 %v1613, %v1607
    %v2028 = vpack.c.b16 %v1614, %v1608
    %v2029 = vpack.c.b16 %v1621, %v1615
    %v2030 = vpack.c.b16 %v1622, %v1616
    %v2031 = vpack.c.b16 %v1623, %v1617
    %v2032 = vpack.c.b16 %v1624, %v1618
    %v2033 = vpack.c.b16 %v1625, %v1619
    %v2034 = vpack.c.b16 %v1626, %v1620
    %v2035 = vpack.c.b16 %v1633, %v1627
    %v2036 = vpack.c.b16 %v1634, %v1628
    %v2037 = vpack.c.b16 %v1635, %v1629
    %v2038 = vpack.c.b16 %v1636, %v1630
    %v2039 = vpack.c.b16 %v1637, %v1631
    %v2040 = vpack.c.b16 %v1638, %v1632
    %v2041 = vpack.c.b16 %v1645, %v1639
    %v2042 = vpack.c.b16 %v1646, %v1640
    %v2043 = vpack.c.b16 %v1647, %v1641
    %v2044 = vpack.c.b16 %v1648, %v1642
    %v2045 = vpack.c.b16 %v1649, %v1643
    %v2046 = vpack.c.b16 %v1650, %v1644
    %v2047 = vpack.c.b16 %v1657, %v1651
    %v2048 = vpack.c.b16 %v1658, %v1652
    %v2049 = vpack.c.b16 %v1659, %v1653
    %v2050 = vpack.c.b16 %v1660, %v1654
    %v2051 = vpack.c.b16 %v1661, %v1655
    %v2052 = vpack.c.b16 %v1662, %v1656
    %v2053 = vpack.c.b16 %v1669, %v1663
    %v2054 = vpack.c.b16 %v1670, %v1664
    %v2055 = vpack.c.b16 %v1671, %v1665
    %v2056 = vpack.c.b16 %v1672, %v1666
    %v2057 = vpack.c.b16 %v1673, %v1667
    %v2058 = vpack.c.b16 %v1674, %v1668
    %v2059 = vpack.c.b16 %v1681, %v1675
    %v2060 = vpack.c.b16 %v1682, %v1676
    %v2061 = vpack.c.b16 %v1683, %v1677
    %v2062 = vpack.c.b16 %v1684, %v1678
    %v2063 = vpack.c.b16 %v1685, %v1679
    %v2064 = vpack.c.b16 %v1686, %v1680
    %v2065 = vpack.c.b16 %v1693, %v1687
    %v2066 = vpack.c.b16 %v1694, %v1688
    %v2067 = vpack.c.b16 %v1695, %v1689
    %v2068 = vpack.c.b16 %v1696, %v1690
    %v2069 = vpack.c.b16 %v1697, %v1691
    %v2070 = vpack.c.b16 %v1698, %v1692
    %v2071 = vpack.c.b16 %v1705, %v1699
    %v2072 = vpack.c.b16 %v1706, %v1700
    %v2073 = vpack.c.b16 %v1707, %v1701
    %v2074 = vpack.c.b16 %v1708, %v1702
    %v2075 = vpack.c.b16 %v1709, %v1703
    %v2076 = vpack.c.b16 %v1710, %v1704
    %v2077 = vpack.c.b16 %v1717, %v1711
    %v2078 = vpack.c.b16 %v1718, %v1712
    %v2079 = vpack.c.b16 %v1719, %v1713
    %v2080 = vpack.c.b16 %v1720, %v1714
    %v2081 = vpack.c.b16 %v1721, %v1715
    %v2082 = vpack.c.b16 %v1722, %v1716
    %v2083 = vpack.c.b16 %v1729, %v1723
    %v2084 = vpack.c.b16 %v1730, %v1724
    %v2085 = vpack.c.b16 %v1731, %v1725
    %v2086 = vpack.c.b16 %v1732, %v1726
    %v2087 = vpack.c.b16 %v1733, %v1727
    %v2088 = vpack.c.b16 %v1734, %v1728
    %v2089 = vpack.c.b16 %v1741, %v1735
    %v2090 = vpack.c.b16 %v1742, %v1736
    %v2091 = vpack.c.b16 %v1743, %v1737
    %v2092 = vpack.c.b16 %v1744, %v1738
    %v2093 = vpack.c.b16 %v1745, %v1739
    %v2094 = vpack.c.b16 %v1746, %v1740
    %v2095 = vpack.c.b16 %v1753, %v1747
    %v2096 = vpack.c.b16 %v1754, %v1748
    %v2097 = vpack.c.b16 %v1755, %v1749
    %v2098 = vpack.c.b16 %v1756, %v1750
    %v2099 = vpack.c.b16 %v1757, %v1751
    %v2100 = vpack.c.b16 %v1758, %v1752
    %v2101 = vpack.c.b16 %v1765, %v1759
    %v2102 = vpack.c.b16 %v1766, %v1760
    %v2103 = vpack.c.b16 %v1767, %v1761
    %v2104 = vpack.c.b16 %v1768, %v1762
    %v2105 = vpack.c.b16 %v1769, %v1763
    %v2106 = vpack.c.b16 %v1770, %v1764
    %v2107 = vpack.c.b16 %v1777, %v1771
    %v2108 = vpack.c.b16 %v1778, %v1772
    %v2109 = vpack.c.b16 %v1779, %v1773
    %v2110 = vpack.c.b16 %v1780, %v1774
    %v2111 = vpack.c.b16 %v1781, %v1775
    %v2112 = vpack.c.b16 %v1782, %v1776
    %v2113 = vpack.c.b16 %v1789, %v1783
    %v2114 = vpack.c.b16 %v1790, %v1784
    %v2115 = vpack.c.b16 %v1791, %v1785
    %v2116 = vpack.c.b16 %v1792, %v1786
    %v2117 = vpack.c.b16 %v1793, %v1787
    %v2118 = vpack.c.b16 %v1794, %v1788
    %v2119 = vpack.c.b16 %v1801, %v1795
    %v2120 = vpack.c.b16 %v1802, %v1796
    %v2121 = vpack.c.b16 %v1803, %v1797
    %v2122 = vpack.c.b16 %v1804, %v1798
    %v2123 = vpack.c.b16 %v1805, %v1799
    %v2124 = vpack.c.b16 %v1806, %v1800
    %v2125 = vpack.c.b16 %v1813, %v1807
    %v2126 = vpack.c.b16 %v1814, %v1808
    %v2127 = vpack.c.b16 %v1815, %v1809
    %v2128 = vpack.c.b16 %v1816, %v1810
    %v2129 = vpack.c.b16 %v1817, %v1811
    %v2130 = vpack.c.b16 %v1818, %v1812
    %v2131 = vpack.c.b16 %v1825, %v1819
    %v2132 = vpack.c.b16 %v1826, %v1820
    %v2133 = vpack.c.b16 %v1827, %v1821
    %v2134 = vpack.c.b16 %v1828, %v1822
    %v2135 = vpack.c.b16 %v1829, %v1823
    %v2136 = vpack.c.b16 %v1830, %v1824
    %v2137 = vpack.c.b16 %v1837, %v1831
    %v2138 = vpack.c.b16 %v1838, %v1832
    %v2139 = vpack.c.b16 %v1839, %v1833
    %v2140 = vpack.c.b16 %v1840, %v1834
    %v2141 = vpack.c.b16 %v1841, %v1835
    %v2142 = vpack.c.b16 %v1842, %v1836
    %v2143 = vpack.c.b16 %v1849, %v1843
    %v2144 = vpack.c.b16 %v1850, %v1844
    %v2145 = vpack.c.b16 %v1851, %v1845
    %v2146 = vpack.c.b16 %v1852, %v1846
    %v2147 = vpack.c.b16 %v1853, %v1847
    %v2148 = vpack.c.b16 %v1854, %v1848
    %v2149 = vpack.c.b16 %v1861, %v1855
    %v2150 = vpack.c.b16 %v1862, %v1856
    %v2151 = vpack.c.b16 %v1863, %v1857
    %v2152 = vpack.c.b16 %v1864, %v1858
    %v2153 = vpack.c.b16 %v1865, %v1859
    %v2154 = vpack.c.b16 %v1866, %v1860
    %2443 = vmatprep.subr.bf16.mxu0 %v1868
    %2444 = vmatpush1.bf16.msra.mxu0 %v1867
    %2445 = vmatprep.subr.bf16.mxu0 %v1874
    %2446 = vmatpush1.bf16.msra.mxu0 %v1873
    %2447 = vmatprep.subr.bf16.mxu0 %v1880
    %2448 = vmatpush1.bf16.msra.mxu0 %v1879
    %2449 = vmatprep.subr.bf16.mxu0 %v1886
    %2450 = vmatpush1.bf16.msra.mxu0 %v1885
    %2451 = vmatprep.subr.bf16.mxu0 %v1892
    %2452 = vmatpush1.bf16.msra.mxu0 %v1891
    %2453 = vmatprep.subr.bf16.mxu0 %v1898
    %2454 = vmatpush1.bf16.msra.mxu0 %v1897
    %2455 = vmatprep.subr.bf16.mxu0 %v1904
    %2456 = vmatpush1.bf16.msra.mxu0 %v1903
    %2457 = vmatprep.subr.bf16.mxu0 %v1910
    %2458 = vmatpush1.bf16.msra.mxu0 %v1909
    %2459 = vmatprep.subr.bf16.mxu0 %v1916
    %2460 = vmatpush1.bf16.msra.mxu0 %v1915
    %2461 = vmatprep.subr.bf16.mxu0 %v1922
    %2462 = vmatpush1.bf16.msra.mxu0 %v1921
    %2463 = vmatprep.subr.bf16.mxu0 %v1928
    %2464 = vmatpush1.bf16.msra.mxu0 %v1927
    %2465 = vmatprep.subr.bf16.mxu0 %v1934
    %2466 = vmatpush1.bf16.msra.mxu0 %v1933
    %2467 = vmatprep.subr.bf16.mxu0 %v1940
    %2468 = vmatpush1.bf16.msra.mxu0 %v1939
    %2469 = vmatprep.subr.bf16.mxu0 %v1946
    %2470 = vmatpush1.bf16.msra.mxu0 %v1945
    %2471 = vmatprep.subr.bf16.mxu0 %v1952
    %2472 = vmatpush1.bf16.msra.mxu0 %v1951
    %2473 = vmatprep.subr.bf16.mxu0 %v1958
    %2474 = vmatpush1.bf16.msra.mxu0 %v1957
    %2475 = vmatprep.mubr.bf16.mxu0 %v678
    %2476 = vmatmul.mubr.bf16.gmra.mrb[0].mxu0 %v677
    %v2477 = vpop.f32.mrb[0].mxu0
    %v2478 = vadd.f32 %v976, %v2477
    %v2479 = vpop.f32.mrb[0].mxu0
    %v2480 = vadd.f32 %v980, %v2479
    %v2481 = vpop.f32.mrb[0].mxu0
    %v2482 = vpop.f32.mrb[0].mxu0
    %2483 = vdwg.mxu0
    %2484 = vmatprep.subr.bf16.mxu0 %v1964
    %2485 = vmatpush1.bf16.msra.mxu0 %v1963
    %2486 = vmatprep.subr.bf16.mxu0 %v1970
    %2487 = vmatpush1.bf16.msra.mxu0 %v1969
    %2488 = vmatprep.subr.bf16.mxu0 %v1976
    %2489 = vmatpush1.bf16.msra.mxu0 %v1975
    %2490 = vmatprep.subr.bf16.mxu0 %v1982
    %2491 = vmatpush1.bf16.msra.mxu0 %v1981
    %2492 = vmatprep.subr.bf16.mxu0 %v1988
    %2493 = vmatpush1.bf16.msra.mxu0 %v1987
    %2494 = vmatprep.subr.bf16.mxu0 %v1994
    %2495 = vmatpush1.bf16.msra.mxu0 %v1993
    %2496 = vmatprep.subr.bf16.mxu0 %v2000
    %2497 = vmatpush1.bf16.msra.mxu0 %v1999
    %2498 = vmatprep.subr.bf16.mxu0 %v2006
    %2499 = vmatpush1.bf16.msra.mxu0 %v2005
    %2500 = vmatprep.subr.bf16.mxu0 %v2012
    %2501 = vmatpush1.bf16.msra.mxu0 %v2011
    %2502 = vmatprep.subr.bf16.mxu0 %v2018
    %2503 = vmatpush1.bf16.msra.mxu0 %v2017
    %2504 = vmatprep.subr.bf16.mxu0 %v2024
    %2505 = vmatpush1.bf16.msra.mxu0 %v2023
    %2506 = vmatprep.subr.bf16.mxu0 %v2030
    %2507 = vmatpush1.bf16.msra.mxu0 %v2029
    %2508 = vmatprep.subr.bf16.mxu0 %v2036
    %2509 = vmatpush1.bf16.msra.mxu0 %v2035
    %2510 = vmatprep.subr.bf16.mxu0 %v2042
    %2511 = vmatpush1.bf16.msra.mxu0 %v2041
    %2512 = vmatprep.subr.bf16.mxu0 %v2048
    %2513 = vmatpush1.bf16.msra.mxu0 %v2047
    %2514 = vmatprep.subr.bf16.mxu0 %v2054
    %2515 = vmatpush1.bf16.msra.mxu0 %v2053
    %2516 = vmatprep.mubr.bf16.mxu0 %v680
    %2517 = vmatmul.mubr.bf16.gmra.mrb[0].mxu0 %v679
    %v2518 = vpop.f32.mrb[0].mxu0
    %v2519 = vadd.f32 %v2478, %v2518
    %v2520 = vpop.f32.mrb[0].mxu0
    %v2521 = vadd.f32 %v2480, %v2520
    %v2522 = vpop.f32.mrb[0].mxu0
    %v2523 = vpop.f32.mrb[0].mxu0
    %2524 = vdwg.mxu0
    %2525 = vmatprep.subr.bf16.mxu0 %v2060
    %2526 = vmatpush1.bf16.msra.mxu0 %v2059
    %2527 = vmatprep.subr.bf16.mxu0 %v2066
    %2528 = vmatpush1.bf16.msra.mxu0 %v2065
    %2529 = vmatprep.subr.bf16.mxu0 %v2072
    %2530 = vmatpush1.bf16.msra.mxu0 %v2071
    %2531 = vmatprep.subr.bf16.mxu0 %v2078
    %2532 = vmatpush1.bf16.msra.mxu0 %v2077
    %2533 = vmatprep.subr.bf16.mxu0 %v2084
    %2534 = vmatpush1.bf16.msra.mxu0 %v2083
    %2535 = vmatprep.subr.bf16.mxu0 %v2090
    %2536 = vmatpush1.bf16.msra.mxu0 %v2089
    %2537 = vmatprep.subr.bf16.mxu0 %v2096
    %2538 = vmatpush1.bf16.msra.mxu0 %v2095
    %2539 = vmatprep.subr.bf16.mxu0 %v2102
    %2540 = vmatpush1.bf16.msra.mxu0 %v2101
    %2541 = vmatprep.subr.bf16.mxu0 %v2108
    %2542 = vmatpush1.bf16.msra.mxu0 %v2107
    %2543 = vmatprep.subr.bf16.mxu0 %v2114
    %2544 = vmatpush1.bf16.msra.mxu0 %v2113
    %2545 = vmatprep.subr.bf16.mxu0 %v2120
    %2546 = vmatpush1.bf16.msra.mxu0 %v2119
    %2547 = vmatprep.subr.bf16.mxu0 %v2126
    %2548 = vmatpush1.bf16.msra.mxu0 %v2125
    %2549 = vmatprep.subr.bf16.mxu0 %v2132
    %2550 = vmatpush1.bf16.msra.mxu0 %v2131
    %2551 = vmatprep.subr.bf16.mxu0 %v2138
    %2552 = vmatpush1.bf16.msra.mxu0 %v2137
    %2553 = vmatprep.subr.bf16.mxu0 %v2144
    %2554 = vmatpush1.bf16.msra.mxu0 %v2143
    %2555 = vmatprep.subr.bf16.mxu0 %v2150
    %2556 = vmatpush1.bf16.msra.mxu0 %v2149
    %2557 = vmatprep.mubr.bf16.mxu0 %v682
    %2558 = vmatmul.mubr.bf16.gmra.mrb[0].mxu0 %v681
    %v2559 = vpop.f32.mrb[0].mxu0
    %v2560 = vadd.f32 %v2519, %v2559
    %v2561 = vpop.f32.mrb[0].mxu0
    %v2562 = vadd.f32 %v2521, %v2561
    %v2563 = vpop.f32.mrb[0].mxu0
    %v2564 = vpop.f32.mrb[0].mxu0
    %2565 = vdwg.mxu0
    %2566 = vmatprep.subr.bf16.mxu0 %v1870
    %2567 = vmatpush1.bf16.msra.mxu0 %v1869
    %2568 = vmatprep.subr.bf16.mxu0 %v1876
    %2569 = vmatpush1.bf16.msra.mxu0 %v1875
    %2570 = vmatprep.subr.bf16.mxu0 %v1882
    %2571 = vmatpush1.bf16.msra.mxu0 %v1881
    %2572 = vmatprep.subr.bf16.mxu0 %v1888
    %2573 = vmatpush1.bf16.msra.mxu0 %v1887
    %2574 = vmatprep.subr.bf16.mxu0 %v1894
    %2575 = vmatpush1.bf16.msra.mxu0 %v1893
    %2576 = vmatprep.subr.bf16.mxu0 %v1900
    %2577 = vmatpush1.bf16.msra.mxu0 %v1899
    %2578 = vmatprep.subr.bf16.mxu0 %v1906
    %2579 = vmatpush1.bf16.msra.mxu0 %v1905
    %2580 = vmatprep.subr.bf16.mxu0 %v1912
    %2581 = vmatpush1.bf16.msra.mxu0 %v1911
    %2582 = vmatprep.subr.bf16.mxu0 %v1918
    %2583 = vmatpush1.bf16.msra.mxu0 %v1917
    %2584 = vmatprep.subr.bf16.mxu0 %v1924
    %2585 = vmatpush1.bf16.msra.mxu0 %v1923
    %2586 = vmatprep.subr.bf16.mxu0 %v1930
    %2587 = vmatpush1.bf16.msra.mxu0 %v1929
    %2588 = vmatprep.subr.bf16.mxu0 %v1936
    %2589 = vmatpush1.bf16.msra.mxu0 %v1935
    %2590 = vmatprep.subr.bf16.mxu0 %v1942
    %2591 = vmatpush1.bf16.msra.mxu0 %v1941
    %2592 = vmatprep.subr.bf16.mxu0 %v1948
    %2593 = vmatpush1.bf16.msra.mxu0 %v1947
    %2594 = vmatprep.subr.bf16.mxu0 %v1954
    %2595 = vmatpush1.bf16.msra.mxu0 %v1953
    %2596 = vmatprep.subr.bf16.mxu0 %v1960
    %2597 = vmatpush1.bf16.msra.mxu0 %v1959
    %2598 = vmatprep.mubr.bf16.mxu0 %v678
    %2599 = vmatmul.mubr.bf16.gmra.mrb[0].mxu0 %v677
    %v2600 = vpop.f32.mrb[0].mxu0
    %v2601 = vadd.f32 %v984, %v2600
    %v2602 = vpop.f32.mrb[0].mxu0
    %v2603 = vadd.f32 %v988, %v2602
    %v2604 = vpop.f32.mrb[0].mxu0
    %v2605 = vpop.f32.mrb[0].mxu0
    %2606 = vdwg.mxu0
    %2607 = vmatprep.subr.bf16.mxu0 %v1966
    %2608 = vmatpush1.bf16.msra.mxu0 %v1965
    %2609 = vmatprep.subr.bf16.mxu0 %v1972
    %2610 = vmatpush1.bf16.msra.mxu0 %v1971
    %2611 = vmatprep.subr.bf16.mxu0 %v1978
    %2612 = vmatpush1.bf16.msra.mxu0 %v1977
    %2613 = vmatprep.subr.bf16.mxu0 %v1984
    %2614 = vmatpush1.bf16.msra.mxu0 %v1983
    %2615 = vmatprep.subr.bf16.mxu0 %v1990
    %2616 = vmatpush1.bf16.msra.mxu0 %v1989
    %2617 = vmatprep.subr.bf16.mxu0 %v1996
    %2618 = vmatpush1.bf16.msra.mxu0 %v1995
    %2619 = vmatprep.subr.bf16.mxu0 %v2002
    %2620 = vmatpush1.bf16.msra.mxu0 %v2001
    %2621 = vmatprep.subr.bf16.mxu0 %v2008
    %2622 = vmatpush1.bf16.msra.mxu0 %v2007
    %2623 = vmatprep.subr.bf16.mxu0 %v2014
    %2624 = vmatpush1.bf16.msra.mxu0 %v2013
    %2625 = vmatprep.subr.bf16.mxu0 %v2020
    %2626 = vmatpush1.bf16.msra.mxu0 %v2019
    %2627 = vmatprep.subr.bf16.mxu0 %v2026
    %2628 = vmatpush1.bf16.msra.mxu0 %v2025
    %2629 = vmatprep.subr.bf16.mxu0 %v2032
    %2630 = vmatpush1.bf16.msra.mxu0 %v2031
    %2631 = vmatprep.subr.bf16.mxu0 %v2038
    %2632 = vmatpush1.bf16.msra.mxu0 %v2037
    %2633 = vmatprep.subr.bf16.mxu0 %v2044
    %2634 = vmatpush1.bf16.msra.mxu0 %v2043
    %2635 = vmatprep.subr.bf16.mxu0 %v2050
    %2636 = vmatpush1.bf16.msra.mxu0 %v2049
    %2637 = vmatprep.subr.bf16.mxu0 %v2056
    %2638 = vmatpush1.bf16.msra.mxu0 %v2055
    %2639 = vmatprep.mubr.bf16.mxu0 %v680
    %2640 = vmatmul.mubr.bf16.gmra.mrb[0].mxu0 %v679
    %v2641 = vpop.f32.mrb[0].mxu0
    %v2642 = vadd.f32 %v2601, %v2641
    %v2643 = vpop.f32.mrb[0].mxu0
    %v2644 = vadd.f32 %v2603, %v2643
    %v2645 = vpop.f32.mrb[0].mxu0
    %v2646 = vpop.f32.mrb[0].mxu0
    %2647 = vdwg.mxu0
    %2648 = vmatprep.subr.bf16.mxu0 %v2062
    %2649 = vmatpush1.bf16.msra.mxu0 %v2061
    %2650 = vmatprep.subr.bf16.mxu0 %v2068
    %2651 = vmatpush1.bf16.msra.mxu0 %v2067
    %2652 = vmatprep.subr.bf16.mxu0 %v2074
    %2653 = vmatpush1.bf16.msra.mxu0 %v2073
    %2654 = vmatprep.subr.bf16.mxu0 %v2080
    %2655 = vmatpush1.bf16.msra.mxu0 %v2079
    %2656 = vmatprep.subr.bf16.mxu0 %v2086
    %2657 = vmatpush1.bf16.msra.mxu0 %v2085
    %2658 = vmatprep.subr.bf16.mxu0 %v2092
    %2659 = vmatpush1.bf16.msra.mxu0 %v2091
    %2660 = vmatprep.subr.bf16.mxu0 %v2098
    %2661 = vmatpush1.bf16.msra.mxu0 %v2097
    %2662 = vmatprep.subr.bf16.mxu0 %v2104
    %2663 = vmatpush1.bf16.msra.mxu0 %v2103
    %2664 = vmatprep.subr.bf16.mxu0 %v2110
    %2665 = vmatpush1.bf16.msra.mxu0 %v2109
    %2666 = vmatprep.subr.bf16.mxu0 %v2116
    %2667 = vmatpush1.bf16.msra.mxu0 %v2115
    %2668 = vmatprep.subr.bf16.mxu0 %v2122
    %2669 = vmatpush1.bf16.msra.mxu0 %v2121
    %2670 = vmatprep.subr.bf16.mxu0 %v2128
    %2671 = vmatpush1.bf16.msra.mxu0 %v2127
    %2672 = vmatprep.subr.bf16.mxu0 %v2134
    %2673 = vmatpush1.bf16.msra.mxu0 %v2133
    %2674 = vmatprep.subr.bf16.mxu0 %v2140
    %2675 = vmatpush1.bf16.msra.mxu0 %v2139
    %2676 = vmatprep.subr.bf16.mxu0 %v2146
    %2677 = vmatpush1.bf16.msra.mxu0 %v2145
    %2678 = vmatprep.subr.bf16.mxu0 %v2152
    %2679 = vmatpush1.bf16.msra.mxu0 %v2151
    %2680 = vmatprep.mubr.bf16.mxu0 %v682
    %2681 = vmatmul.mubr.bf16.gmra.mrb[0].mxu0 %v681
    %v2682 = vpop.f32.mrb[0].mxu0
    %v2683 = vadd.f32 %v2642, %v2682
    %v2684 = vpop.f32.mrb[0].mxu0
    %v2685 = vadd.f32 %v2644, %v2684
    %v2686 = vpop.f32.mrb[0].mxu0
    %v2687 = vpop.f32.mrb[0].mxu0
    %2688 = vdwg.mxu0
    %2689 = vmatprep.subr.bf16.mxu0 %v1872
    %2690 = vmatpush1.bf16.msra.mxu0 %v1871
    %2691 = vmatprep.subr.bf16.mxu0 %v1878
    %2692 = vmatpush1.bf16.msra.mxu0 %v1877
    %2693 = vmatprep.subr.bf16.mxu0 %v1884
    %2694 = vmatpush1.bf16.msra.mxu0 %v1883
    %2695 = vmatprep.subr.bf16.mxu0 %v1890
    %2696 = vmatpush1.bf16.msra.mxu0 %v1889
    %2697 = vmatprep.subr.bf16.mxu0 %v1896
    %2698 = vmatpush1.bf16.msra.mxu0 %v1895
    %2699 = vmatprep.subr.bf16.mxu0 %v1902
    %2700 = vmatpush1.bf16.msra.mxu0 %v1901
    %2701 = vmatprep.subr.bf16.mxu0 %v1908
    %2702 = vmatpush1.bf16.msra.mxu0 %v1907
    %2703 = vmatprep.subr.bf16.mxu0 %v1914
    %2704 = vmatpush1.bf16.msra.mxu0 %v1913
    %2705 = vmatprep.subr.bf16.mxu0 %v1920
    %2706 = vmatpush1.bf16.msra.mxu0 %v1919
    %2707 = vmatprep.subr.bf16.mxu0 %v1926
    %2708 = vmatpush1.bf16.msra.mxu0 %v1925
    %2709 = vmatprep.subr.bf16.mxu0 %v1932
    %2710 = vmatpush1.bf16.msra.mxu0 %v1931
    %2711 = vmatprep.subr.bf16.mxu0 %v1938
    %2712 = vmatpush1.bf16.msra.mxu0 %v1937
    %2713 = vmatprep.subr.bf16.mxu0 %v1944
    %2714 = vmatpush1.bf16.msra.mxu0 %v1943
    %2715 = vmatprep.subr.bf16.mxu0 %v1950
    %2716 = vmatpush1.bf16.msra.mxu0 %v1949
    %2717 = vmatprep.subr.bf16.mxu0 %v1956
    %2718 = vmatpush1.bf16.msra.mxu0 %v1955
    %2719 = vmatprep.subr.bf16.mxu0 %v1962
    %2720 = vmatpush1.bf16.msra.mxu0 %v1961
    %2721 = vmatprep.mubr.bf16.mxu0 %v678
    %2722 = vmatmul.mubr.bf16.gmra.mrb[0].mxu0 %v677
    %v2723 = vpop.f32.mrb[0].mxu0
    %v2724 = vadd.f32 %v992, %v2723
    %v2725 = vpop.f32.mrb[0].mxu0
    %v2726 = vadd.f32 %v996, %v2725
    %v2727 = vpop.f32.mrb[0].mxu0
    %v2728 = vpop.f32.mrb[0].mxu0
    %2729 = vdwg.mxu0
    %2730 = vmatprep.subr.bf16.mxu0 %v1968
    %2731 = vmatpush1.bf16.msra.mxu0 %v1967
    %2732 = vmatprep.subr.bf16.mxu0 %v1974
    %2733 = vmatpush1.bf16.msra.mxu0 %v1973
    %2734 = vmatprep.subr.bf16.mxu0 %v1980
    %2735 = vmatpush1.bf16.msra.mxu0 %v1979
    %2736 = vmatprep.subr.bf16.mxu0 %v1986
    %2737 = vmatpush1.bf16.msra.mxu0 %v1985
    %2738 = vmatprep.subr.bf16.mxu0 %v1992
    %2739 = vmatpush1.bf16.msra.mxu0 %v1991
    %2740 = vmatprep.subr.bf16.mxu0 %v1998
    %2741 = vmatpush1.bf16.msra.mxu0 %v1997
    %2742 = vmatprep.subr.bf16.mxu0 %v2004
    %2743 = vmatpush1.bf16.msra.mxu0 %v2003
    %2744 = vmatprep.subr.bf16.mxu0 %v2010
    %2745 = vmatpush1.bf16.msra.mxu0 %v2009
    %2746 = vmatprep.subr.bf16.mxu0 %v2016
    %2747 = vmatpush1.bf16.msra.mxu0 %v2015
    %2748 = vmatprep.subr.bf16.mxu0 %v2022
    %2749 = vmatpush1.bf16.msra.mxu0 %v2021
    %2750 = vmatprep.subr.bf16.mxu0 %v2028
    %2751 = vmatpush1.bf16.msra.mxu0 %v2027
    %2752 = vmatprep.subr.bf16.mxu0 %v2034
    %2753 = vmatpush1.bf16.msra.mxu0 %v2033
    %2754 = vmatprep.subr.bf16.mxu0 %v2040
    %2755 = vmatpush1.bf16.msra.mxu0 %v2039
    %2756 = vmatprep.subr.bf16.mxu0 %v2046
    %2757 = vmatpush1.bf16.msra.mxu0 %v2045
    %2758 = vmatprep.subr.bf16.mxu0 %v2052
    %2759 = vmatpush1.bf16.msra.mxu0 %v2051
    %2760 = vmatprep.subr.bf16.mxu0 %v2058
    %2761 = vmatpush1.bf16.msra.mxu0 %v2057
    %2762 = vmatprep.mubr.bf16.mxu0 %v680
    %2763 = vmatmul.mubr.bf16.gmra.mrb[0].mxu0 %v679
    %v2764 = vpop.f32.mrb[0].mxu0
    %v2765 = vadd.f32 %v2724, %v2764
    %v2766 = vpop.f32.mrb[0].mxu0
    %v2767 = vadd.f32 %v2726, %v2766
    %v2768 = vpop.f32.mrb[0].mxu0
    %v2769 = vpop.f32.mrb[0].mxu0
    %2770 = vdwg.mxu0
    %2771 = vmatprep.subr.bf16.mxu0 %v2064
    %2772 = vmatpush1.bf16.msra.mxu0 %v2063
    %2773 = vmatprep.subr.bf16.mxu0 %v2070
    %2774 = vmatpush1.bf16.msra.mxu0 %v2069
    %2775 = vmatprep.subr.bf16.mxu0 %v2076
    %2776 = vmatpush1.bf16.msra.mxu0 %v2075
    %2777 = vmatprep.subr.bf16.mxu0 %v2082
    %2778 = vmatpush1.bf16.msra.mxu0 %v2081
    %2779 = vmatprep.subr.bf16.mxu0 %v2088
    %2780 = vmatpush1.bf16.msra.mxu0 %v2087
    %2781 = vmatprep.subr.bf16.mxu0 %v2094
    %2782 = vmatpush1.bf16.msra.mxu0 %v2093
    %2783 = vmatprep.subr.bf16.mxu0 %v2100
    %2784 = vmatpush1.bf16.msra.mxu0 %v2099
    %2785 = vmatprep.subr.bf16.mxu0 %v2106
    %2786 = vmatpush1.bf16.msra.mxu0 %v2105
    %2787 = vmatprep.subr.bf16.mxu0 %v2112
    %2788 = vmatpush1.bf16.msra.mxu0 %v2111
    %2789 = vmatprep.subr.bf16.mxu0 %v2118
    %2790 = vmatpush1.bf16.msra.mxu0 %v2117
    %2791 = vmatprep.subr.bf16.mxu0 %v2124
    %2792 = vmatpush1.bf16.msra.mxu0 %v2123
    %2793 = vmatprep.subr.bf16.mxu0 %v2130
    %2794 = vmatpush1.bf16.msra.mxu0 %v2129
    %2795 = vmatprep.subr.bf16.mxu0 %v2136
    %2796 = vmatpush1.bf16.msra.mxu0 %v2135
    %2797 = vmatprep.subr.bf16.mxu0 %v2142
    %2798 = vmatpush1.bf16.msra.mxu0 %v2141
    %2799 = vmatprep.subr.bf16.mxu0 %v2148
    %2800 = vmatpush1.bf16.msra.mxu0 %v2147
    %2801 = vmatprep.subr.bf16.mxu0 %v2154
    %2802 = vmatpush1.bf16.msra.mxu0 %v2153
    %2803 = vmatprep.mubr.bf16.mxu0 %v682
    %2804 = vmatmul.mubr.bf16.gmra.mrb[0].mxu0 %v681
    %v2805 = vpop.f32.mrb[0].mxu0
    %v2806 = vadd.f32 %v2765, %v2805
    %v2807 = vpop.f32.mrb[0].mxu0
    %v2808 = vadd.f32 %v2767, %v2807
    %v2809 = vpop.f32.mrb[0].mxu0
    %v2810 = vpop.f32.mrb[0].mxu0
    %2811 = vdwg.mxu0
    %v2812 = vmax.f32 %v2560, 0.0
    %v2813 = vmax.f32 %v2562, 0.0
    %v2814 = vmax.f32 %v2683, 0.0
    %v2815 = vmax.f32 %v2685, 0.0
    %v2816 = vmax.f32 %v2806, 0.0
    %v2817 = vmax.f32 %v2808, 0.0
    %v2818 = vld [vmem:[#allocation13] sm:$0xff]
    %v2819 = vld [vmem:[#allocation13 + $0x8] sm:$0xff]
    %v2820 = vld [vmem:[#allocation13 + $0x10] sm:$0xff]
    %v2821 = vld [vmem:[#allocation13 + $0x18] sm:$0xff]
    %v2822 = vld [vmem:[#allocation13 + $0x20] sm:$0xff]
    %v2823 = vld [vmem:[#allocation13 + $0x28] sm:$0xff]
    %v2824 = vld [vmem:[#allocation13 + $0x30] sm:$0xff]
    %v2825 = vld [vmem:[#allocation13 + $0x38] sm:$0xff]
    %v2826 = vld [vmem:[#allocation13 + $0x40] sm:$0xff]
    %v2827 = vld [vmem:[#allocation13 + $0x48] sm:$0xff]
    %v2828 = vld [vmem:[#allocation13 + $0x50] sm:$0xff]
    %v2829 = vld [vmem:[#allocation13 + $0x58] sm:$0xff]
    %v2830 = vld [vmem:[#allocation13 + $0x60] sm:$0xff]
    %v2831 = vld [vmem:[#allocation13 + $0x68] sm:$0xff]
    %v2832 = vld [vmem:[#allocation13 + $0x70] sm:$0xff]
    %v2833 = vld [vmem:[#allocation13 + $0x78] sm:$0xff]
    %v2834 = vld [vmem:[#allocation13 + $0x80] sm:$0xff]
    %v2835 = vld [vmem:[#allocation13 + $0x88] sm:$0xff]
    %v2836 = vld [vmem:[#allocation13 + $0x90] sm:$0xff]
    %v2837 = vld [vmem:[#allocation13 + $0x98] sm:$0xff]
    %v2838 = vld [vmem:[#allocation13 + $0xa0] sm:$0xff]
    %v2839 = vld [vmem:[#allocation13 + $0xa8] sm:$0xff]
    %v2840 = vld [vmem:[#allocation13 + $0xb0] sm:$0xff]
    %v2841 = vld [vmem:[#allocation13 + $0xb8] sm:$0xff]
    %v2842 = vld [vmem:[#allocation13 + $0xc0] sm:$0xff]
    %v2843 = vld [vmem:[#allocation13 + $0xc8] sm:$0xff]
    %v2844 = vld [vmem:[#allocation13 + $0xd0] sm:$0xff]
    %v2845 = vld [vmem:[#allocation13 + $0xd8] sm:$0xff]
    %v2846 = vld [vmem:[#allocation13 + $0xe0] sm:$0xff]
    %v2847 = vld [vmem:[#allocation13 + $0xe8] sm:$0xff]
    %v2848 = vld [vmem:[#allocation13 + $0xf0] sm:$0xff]
    %v2849 = vld [vmem:[#allocation13 + $0xf8] sm:$0xff]
    %v2850 = vld [vmem:[#allocation13 + $0x100] sm:$0xff]
    %v2851 = vld [vmem:[#allocation13 + $0x108] sm:$0xff]
    %v2852 = vld [vmem:[#allocation13 + $0x110] sm:$0xff]
    %v2853 = vld [vmem:[#allocation13 + $0x118] sm:$0xff]
    %v2854 = vld [vmem:[#allocation13 + $0x120] sm:$0xff]
    %v2855 = vld [vmem:[#allocation13 + $0x128] sm:$0xff]
    %v2856 = vld [vmem:[#allocation13 + $0x130] sm:$0xff]
    %v2857 = vld [vmem:[#allocation13 + $0x138] sm:$0xff]
    %v2858 = vld [vmem:[#allocation13 + $0x140] sm:$0xff]
    %v2859 = vld [vmem:[#allocation13 + $0x148] sm:$0xff]
    %v2860 = vld [vmem:[#allocation13 + $0x150] sm:$0xff]
    %v2861 = vld [vmem:[#allocation13 + $0x158] sm:$0xff]
    %v2862 = vld [vmem:[#allocation13 + $0x160] sm:$0xff]
    %v2863 = vld [vmem:[#allocation13 + $0x168] sm:$0xff]
    %v2864 = vld [vmem:[#allocation13 + $0x170] sm:$0xff]
    %v2865 = vld [vmem:[#allocation13 + $0x178] sm:$0xff]
    %v2866 = vld [vmem:[#allocation13 + $0x180] sm:$0xff]
    %v2867 = vld [vmem:[#allocation13 + $0x188] sm:$0xff]
    %v2868 = vld [vmem:[#allocation13 + $0x190] sm:$0xff]
    %v2869 = vld [vmem:[#allocation13 + $0x198] sm:$0xff]
    %v2870 = vld [vmem:[#allocation13 + $0x1a0] sm:$0xff]
    %v2871 = vld [vmem:[#allocation13 + $0x1a8] sm:$0xff]
    %v2872 = vld [vmem:[#allocation13 + $0x1b0] sm:$0xff]
    %v2873 = vld [vmem:[#allocation13 + $0x1b8] sm:$0xff]
    %v2874 = vld [vmem:[#allocation13 + $0x1c0] sm:$0xff]
    %v2875 = vld [vmem:[#allocation13 + $0x1c8] sm:$0xff]
    %v2876 = vld [vmem:[#allocation13 + $0x1d0] sm:$0xff]
    %v2877 = vld [vmem:[#allocation13 + $0x1d8] sm:$0xff]
    %v2878 = vld [vmem:[#allocation13 + $0x1e0] sm:$0xff]
    %v2879 = vld [vmem:[#allocation13 + $0x1e8] sm:$0xff]
    %v2880 = vld [vmem:[#allocation13 + $0x1f0] sm:$0xff]
    %v2881 = vld [vmem:[#allocation13 + $0x1f8] sm:$0xff]
    %v2882 = vld [vmem:[#allocation13 + $0x200] sm:$0xff]
    %v2883 = vld [vmem:[#allocation13 + $0x208] sm:$0xff]
    %v2884 = vld [vmem:[#allocation13 + $0x210] sm:$0xff]
    %v2885 = vld [vmem:[#allocation13 + $0x218] sm:$0xff]
    %v2886 = vld [vmem:[#allocation13 + $0x220] sm:$0xff]
    %v2887 = vld [vmem:[#allocation13 + $0x228] sm:$0xff]
    %v2888 = vld [vmem:[#allocation13 + $0x230] sm:$0xff]
    %v2889 = vld [vmem:[#allocation13 + $0x238] sm:$0xff]
    %v2890 = vld [vmem:[#allocation13 + $0x240] sm:$0xff]
    %v2891 = vld [vmem:[#allocation13 + $0x248] sm:$0xff]
    %v2892 = vld [vmem:[#allocation13 + $0x250] sm:$0xff]
    %v2893 = vld [vmem:[#allocation13 + $0x258] sm:$0xff]
    %v2894 = vld [vmem:[#allocation13 + $0x260] sm:$0xff]
    %v2895 = vld [vmem:[#allocation13 + $0x268] sm:$0xff]
    %v2896 = vld [vmem:[#allocation13 + $0x270] sm:$0xff]
    %v2897 = vld [vmem:[#allocation13 + $0x278] sm:$0xff]
    %v2898 = vld [vmem:[#allocation13 + $0x280] sm:$0xff]
    %v2899 = vld [vmem:[#allocation13 + $0x288] sm:$0xff]
    %v2900 = vld [vmem:[#allocation13 + $0x290] sm:$0xff]
    %v2901 = vld [vmem:[#allocation13 + $0x298] sm:$0xff]
    %v2902 = vld [vmem:[#allocation13 + $0x2a0] sm:$0xff]
    %v2903 = vld [vmem:[#allocation13 + $0x2a8] sm:$0xff]
    %v2904 = vld [vmem:[#allocation13 + $0x2b0] sm:$0xff]
    %v2905 = vld [vmem:[#allocation13 + $0x2b8] sm:$0xff]
    %v2906 = vld [vmem:[#allocation13 + $0x2c0] sm:$0xff]
    %v2907 = vld [vmem:[#allocation13 + $0x2c8] sm:$0xff]
    %v2908 = vld [vmem:[#allocation13 + $0x2d0] sm:$0xff]
    %v2909 = vld [vmem:[#allocation13 + $0x2d8] sm:$0xff]
    %v2910 = vld [vmem:[#allocation13 + $0x2e0] sm:$0xff]
    %v2911 = vld [vmem:[#allocation13 + $0x2e8] sm:$0xff]
    %v2912 = vld [vmem:[#allocation13 + $0x2f0] sm:$0xff]
    %v2913 = vld [vmem:[#allocation13 + $0x2f8] sm:$0xff]
    %v2914 = vld [vmem:[#allocation13 + $0x300] sm:$0xff]
    %v2915 = vld [vmem:[#allocation13 + $0x308] sm:$0xff]
    %v2916 = vld [vmem:[#allocation13 + $0x310] sm:$0xff]
    %v2917 = vld [vmem:[#allocation13 + $0x318] sm:$0xff]
    %v2918 = vld [vmem:[#allocation13 + $0x320] sm:$0xff]
    %v2919 = vld [vmem:[#allocation13 + $0x328] sm:$0xff]
    %v2920 = vld [vmem:[#allocation13 + $0x330] sm:$0xff]
    %v2921 = vld [vmem:[#allocation13 + $0x338] sm:$0xff]
    %v2922 = vld [vmem:[#allocation13 + $0x340] sm:$0xff]
    %v2923 = vld [vmem:[#allocation13 + $0x348] sm:$0xff]
    %v2924 = vld [vmem:[#allocation13 + $0x350] sm:$0xff]
    %v2925 = vld [vmem:[#allocation13 + $0x358] sm:$0xff]
    %v2926 = vld [vmem:[#allocation13 + $0x360] sm:$0xff]
    %v2927 = vld [vmem:[#allocation13 + $0x368] sm:$0xff]
    %v2928 = vld [vmem:[#allocation13 + $0x370] sm:$0xff]
    %v2929 = vld [vmem:[#allocation13 + $0x378] sm:$0xff]
    %v2930 = vld [vmem:[#allocation13 + $0x380] sm:$0xff]
    %v2931 = vld [vmem:[#allocation13 + $0x388] sm:$0xff]
    %v2932 = vld [vmem:[#allocation13 + $0x390] sm:$0xff]
    %v2933 = vld [vmem:[#allocation13 + $0x398] sm:$0xff]
    %v2934 = vld [vmem:[#allocation13 + $0x3a0] sm:$0xff]
    %v2935 = vld [vmem:[#allocation13 + $0x3a8] sm:$0xff]
    %v2936 = vld [vmem:[#allocation13 + $0x3b0] sm:$0xff]
    %v2937 = vld [vmem:[#allocation13 + $0x3b8] sm:$0xff]
    %v2938 = vld [vmem:[#allocation13 + $0x3c0] sm:$0xff]
    %v2939 = vld [vmem:[#allocation13 + $0x3c8] sm:$0xff]
    %v2940 = vld [vmem:[#allocation13 + $0x3d0] sm:$0xff]
    %v2941 = vld [vmem:[#allocation13 + $0x3d8] sm:$0xff]
    %v2942 = vld [vmem:[#allocation13 + $0x3e0] sm:$0xff]
    %v2943 = vld [vmem:[#allocation13 + $0x3e8] sm:$0xff]
    %v2944 = vld [vmem:[#allocation13 + $0x3f0] sm:$0xff]
    %v2945 = vld [vmem:[#allocation13 + $0x3f8] sm:$0xff]
    %v2946 = vld [vmem:[#allocation13 + $0x400] sm:$0xff]
    %v2947 = vld [vmem:[#allocation13 + $0x408] sm:$0xff]
    %v2948 = vld [vmem:[#allocation13 + $0x410] sm:$0xff]
    %v2949 = vld [vmem:[#allocation13 + $0x418] sm:$0xff]
    %v2950 = vld [vmem:[#allocation13 + $0x420] sm:$0xff]
    %v2951 = vld [vmem:[#allocation13 + $0x428] sm:$0xff]
    %v2952 = vld [vmem:[#allocation13 + $0x430] sm:$0xff]
    %v2953 = vld [vmem:[#allocation13 + $0x438] sm:$0xff]
    %v2954 = vld [vmem:[#allocation13 + $0x440] sm:$0xff]
    %v2955 = vld [vmem:[#allocation13 + $0x448] sm:$0xff]
    %v2956 = vld [vmem:[#allocation13 + $0x450] sm:$0xff]
    %v2957 = vld [vmem:[#allocation13 + $0x458] sm:$0xff]
    %v2958 = vld [vmem:[#allocation13 + $0x460] sm:$0xff]
    %v2959 = vld [vmem:[#allocation13 + $0x468] sm:$0xff]
    %v2960 = vld [vmem:[#allocation13 + $0x470] sm:$0xff]
    %v2961 = vld [vmem:[#allocation13 + $0x478] sm:$0xff]
    %v2962 = vld [vmem:[#allocation13 + $0x480] sm:$0xff]
    %v2963 = vld [vmem:[#allocation13 + $0x488] sm:$0xff]
    %v2964 = vld [vmem:[#allocation13 + $0x490] sm:$0xff]
    %v2965 = vld [vmem:[#allocation13 + $0x498] sm:$0xff]
    %v2966 = vld [vmem:[#allocation13 + $0x4a0] sm:$0xff]
    %v2967 = vld [vmem:[#allocation13 + $0x4a8] sm:$0xff]
    %v2968 = vld [vmem:[#allocation13 + $0x4b0] sm:$0xff]
    %v2969 = vld [vmem:[#allocation13 + $0x4b8] sm:$0xff]
    %v2970 = vld [vmem:[#allocation13 + $0x4c0] sm:$0xff]
    %v2971 = vld [vmem:[#allocation13 + $0x4c8] sm:$0xff]
    %v2972 = vld [vmem:[#allocation13 + $0x4d0] sm:$0xff]
    %v2973 = vld [vmem:[#allocation13 + $0x4d8] sm:$0xff]
    %v2974 = vld [vmem:[#allocation13 + $0x4e0] sm:$0xff]
    %v2975 = vld [vmem:[#allocation13 + $0x4e8] sm:$0xff]
    %v2976 = vld [vmem:[#allocation13 + $0x4f0] sm:$0xff]
    %v2977 = vld [vmem:[#allocation13 + $0x4f8] sm:$0xff]
    %v2978 = vld [vmem:[#allocation13 + $0x500] sm:$0xff]
    %v2979 = vld [vmem:[#allocation13 + $0x508] sm:$0xff]
    %v2980 = vld [vmem:[#allocation13 + $0x510] sm:$0xff]
    %v2981 = vld [vmem:[#allocation13 + $0x518] sm:$0xff]
    %v2982 = vld [vmem:[#allocation13 + $0x520] sm:$0xff]
    %v2983 = vld [vmem:[#allocation13 + $0x528] sm:$0xff]
    %v2984 = vld [vmem:[#allocation13 + $0x530] sm:$0xff]
    %v2985 = vld [vmem:[#allocation13 + $0x538] sm:$0xff]
    %v2986 = vld [vmem:[#allocation13 + $0x540] sm:$0xff]
    %v2987 = vld [vmem:[#allocation13 + $0x548] sm:$0xff]
    %v2988 = vld [vmem:[#allocation13 + $0x550] sm:$0xff]
    %v2989 = vld [vmem:[#allocation13 + $0x558] sm:$0xff]
    %v2990 = vld [vmem:[#allocation13 + $0x560] sm:$0xff]
    %v2991 = vld [vmem:[#allocation13 + $0x568] sm:$0xff]
    %v2992 = vld [vmem:[#allocation13 + $0x570] sm:$0xff]
    %v2993 = vld [vmem:[#allocation13 + $0x578] sm:$0xff]
    %v2994 = vld [vmem:[#allocation13 + $0x580] sm:$0xff]
    %v2995 = vld [vmem:[#allocation13 + $0x588] sm:$0xff]
    %v2996 = vld [vmem:[#allocation13 + $0x590] sm:$0xff]
    %v2997 = vld [vmem:[#allocation13 + $0x598] sm:$0xff]
    %v2998 = vld [vmem:[#allocation13 + $0x5a0] sm:$0xff]
    %v2999 = vld [vmem:[#allocation13 + $0x5a8] sm:$0xff]
    %v3000 = vld [vmem:[#allocation13 + $0x5b0] sm:$0xff]
    %v3001 = vld [vmem:[#allocation13 + $0x5b8] sm:$0xff]
    %v3002 = vld [vmem:[#allocation13 + $0x5c0] sm:$0xff]
    %v3003 = vld [vmem:[#allocation13 + $0x5c8] sm:$0xff]
    %v3004 = vld [vmem:[#allocation13 + $0x5d0] sm:$0xff]
    %v3005 = vld [vmem:[#allocation13 + $0x5d8] sm:$0xff]
    %v3006 = vld [vmem:[#allocation13 + $0x5e0] sm:$0xff]
    %v3007 = vld [vmem:[#allocation13 + $0x5e8] sm:$0xff]
    %v3008 = vld [vmem:[#allocation13 + $0x5f0] sm:$0xff]
    %v3009 = vld [vmem:[#allocation13 + $0x5f8] sm:$0xff]
    %v3010 = vld [vmem:[#allocation14] sm:$0x3]
    %v3012 = vlaneseq
    %v3013 = vshrl.u32 %v3012, 7
    %v3014 = vsub.s32 0, %v3013
    %v3015 = vrot.slane %v3010, %v3014
    %v3016 = vlaneseq
    %v3017 = vshrl.u32 %v3016, 7
    %v3018 = vsub.s32 1, %v3017
    %v3019 = vrot.slane %v3010, %v3018
    %3022 = vmatprep.subr.mxu0 %v2819
    %3023 = vmatpush1.msra.mxu0 %v2818
    %3024 = vmatprep.subr.mxu0 %v2821
    %3025 = vmatpush1.msra.mxu0 %v2820
    %3026 = vmatprep.subr.mxu0 %v2823
    %3027 = vmatpush1.msra.mxu0 %v2822
    %3028 = vmatprep.subr.mxu0 %v2825
    %3029 = vmatpush1.msra.mxu0 %v2824
    %3030 = vmatprep.subr.mxu0 %v2827
    %3031 = vmatpush1.msra.mxu0 %v2826
    %3032 = vmatprep.subr.mxu0 %v2829
    %3033 = vmatpush1.msra.mxu0 %v2828
    %3034 = vmatprep.subr.mxu0 %v2831
    %3035 = vmatpush1.msra.mxu0 %v2830
    %3036 = vmatprep.subr.mxu0 %v2833
    %3037 = vmatpush1.msra.mxu0 %v2832
    %3038 = vmatprep.subr.mxu0 %v2835
    %3039 = vmatpush1.msra.mxu0 %v2834
    %3040 = vmatprep.subr.mxu0 %v2837
    %3041 = vmatpush1.msra.mxu0 %v2836
    %3042 = vmatprep.subr.mxu0 %v2839
    %3043 = vmatpush1.msra.mxu0 %v2838
    %3044 = vmatprep.subr.mxu0 %v2841
    %3045 = vmatpush1.msra.mxu0 %v2840
    %3046 = vmatprep.subr.mxu0 %v2843
    %3047 = vmatpush1.msra.mxu0 %v2842
    %3048 = vmatprep.subr.mxu0 %v2845
    %3049 = vmatpush1.msra.mxu0 %v2844
    %3050 = vmatprep.subr.mxu0 %v2847
    %3051 = vmatpush1.msra.mxu0 %v2846
    %3052 = vmatprep.subr.mxu0 %v2849
    %3053 = vmatpush1.msra.mxu0 %v2848
    %3054 = vmatprep.subr.mxu0 %v2851
    %3055 = vmatpush1.msra.mxu0 %v2850
    %3056 = vmatprep.subr.mxu0 %v2853
    %3057 = vmatpush1.msra.mxu0 %v2852
    %3058 = vmatprep.subr.mxu0 %v2855
    %3059 = vmatpush1.msra.mxu0 %v2854
    %3060 = vmatprep.subr.mxu0 %v2857
    %3061 = vmatpush1.msra.mxu0 %v2856
    %3062 = vmatprep.subr.mxu0 %v2859
    %3063 = vmatpush1.msra.mxu0 %v2858
    %3064 = vmatprep.subr.mxu0 %v2861
    %3065 = vmatpush1.msra.mxu0 %v2860
    %3066 = vmatprep.subr.mxu0 %v2863
    %3067 = vmatpush1.msra.mxu0 %v2862
    %3068 = vmatprep.subr.mxu0 %v2865
    %3069 = vmatpush1.msra.mxu0 %v2864
    %3070 = vmatprep.subr.mxu0 %v2867
    %3071 = vmatpush1.msra.mxu0 %v2866
    %3072 = vmatprep.subr.mxu0 %v2869
    %3073 = vmatpush1.msra.mxu0 %v2868
    %3074 = vmatprep.subr.mxu0 %v2871
    %3075 = vmatpush1.msra.mxu0 %v2870
    %3076 = vmatprep.subr.mxu0 %v2873
    %3077 = vmatpush1.msra.mxu0 %v2872
    %3078 = vmatprep.subr.mxu0 %v2875
    %3079 = vmatpush1.msra.mxu0 %v2874
    %3080 = vmatprep.subr.mxu0 %v2877
    %3081 = vmatpush1.msra.mxu0 %v2876
    %3082 = vmatprep.subr.mxu0 %v2879
    %3083 = vmatpush1.msra.mxu0 %v2878
    %3084 = vmatprep.subr.mxu0 %v2881
    %3085 = vmatpush1.msra.mxu0 %v2880
    %3086 = vmatprep.mubr.f32.mxu0 %v2813
    %3087 = vmatmul.mubr.f32.gmra.mrb[0].mxu0 %v2812
    %v3088 = vpop.f32.mrb[0].mxu0
    %v3089 = vadd.f32 %v3015, %v3088
    %v3090 = vpop.f32.mrb[0].mxu0
    %v3091 = vadd.f32 %v3019, %v3090
    %3092 = vdwg.mxu0
    %3093 = vmatprep.subr.mxu0 %v2883
    %3094 = vmatpush1.msra.mxu0 %v2882
    %3095 = vmatprep.subr.mxu0 %v2885
    %3096 = vmatpush1.msra.mxu0 %v2884
    %3097 = vmatprep.subr.mxu0 %v2887
    %3098 = vmatpush1.msra.mxu0 %v2886
    %3099 = vmatprep.subr.mxu0 %v2889
    %3100 = vmatpush1.msra.mxu0 %v2888
    %3101 = vmatprep.subr.mxu0 %v2891
    %3102 = vmatpush1.msra.mxu0 %v2890
    %3103 = vmatprep.subr.mxu0 %v2893
    %3104 = vmatpush1.msra.mxu0 %v2892
    %3105 = vmatprep.subr.mxu0 %v2895
    %3106 = vmatpush1.msra.mxu0 %v2894
    %3107 = vmatprep.subr.mxu0 %v2897
    %3108 = vmatpush1.msra.mxu0 %v2896
    %3109 = vmatprep.subr.mxu0 %v2899
    %3110 = vmatpush1.msra.mxu0 %v2898
    %3111 = vmatprep.subr.mxu0 %v2901
    %3112 = vmatpush1.msra.mxu0 %v2900
    %3113 = vmatprep.subr.mxu0 %v2903
    %3114 = vmatpush1.msra.mxu0 %v2902
    %3115 = vmatprep.subr.mxu0 %v2905
    %3116 = vmatpush1.msra.mxu0 %v2904
    %3117 = vmatprep.subr.mxu0 %v2907
    %3118 = vmatpush1.msra.mxu0 %v2906
    %3119 = vmatprep.subr.mxu0 %v2909
    %3120 = vmatpush1.msra.mxu0 %v2908
    %3121 = vmatprep.subr.mxu0 %v2911
    %3122 = vmatpush1.msra.mxu0 %v2910
    %3123 = vmatprep.subr.mxu0 %v2913
    %3124 = vmatpush1.msra.mxu0 %v2912
    %3125 = vmatprep.subr.mxu0 %v2915
    %3126 = vmatpush1.msra.mxu0 %v2914
    %3127 = vmatprep.subr.mxu0 %v2917
    %3128 = vmatpush1.msra.mxu0 %v2916
    %3129 = vmatprep.subr.mxu0 %v2919
    %3130 = vmatpush1.msra.mxu0 %v2918
    %3131 = vmatprep.subr.mxu0 %v2921
    %3132 = vmatpush1.msra.mxu0 %v2920
    %3133 = vmatprep.subr.mxu0 %v2923
    %3134 = vmatpush1.msra.mxu0 %v2922
    %3135 = vmatprep.subr.mxu0 %v2925
    %3136 = vmatpush1.msra.mxu0 %v2924
    %3137 = vmatprep.subr.mxu0 %v2927
    %3138 = vmatpush1.msra.mxu0 %v2926
    %3139 = vmatprep.subr.mxu0 %v2929
    %3140 = vmatpush1.msra.mxu0 %v2928
    %3141 = vmatprep.subr.mxu0 %v2931
    %3142 = vmatpush1.msra.mxu0 %v2930
    %3143 = vmatprep.subr.mxu0 %v2933
    %3144 = vmatpush1.msra.mxu0 %v2932
    %3145 = vmatprep.subr.mxu0 %v2935
    %3146 = vmatpush1.msra.mxu0 %v2934
    %3147 = vmatprep.subr.mxu0 %v2937
    %3148 = vmatpush1.msra.mxu0 %v2936
    %3149 = vmatprep.subr.mxu0 %v2939
    %3150 = vmatpush1.msra.mxu0 %v2938
    %3151 = vmatprep.subr.mxu0 %v2941
    %3152 = vmatpush1.msra.mxu0 %v2940
    %3153 = vmatprep.subr.mxu0 %v2943
    %3154 = vmatpush1.msra.mxu0 %v2942
    %3155 = vmatprep.subr.mxu0 %v2945
    %3156 = vmatpush1.msra.mxu0 %v2944
    %3157 = vmatprep.mubr.f32.mxu0 %v2815
    %3158 = vmatmul.mubr.f32.gmra.mrb[0].mxu0 %v2814
    %v3159 = vpop.f32.mrb[0].mxu0
    %v3160 = vadd.f32 %v3089, %v3159
    %v3161 = vpop.f32.mrb[0].mxu0
    %v3162 = vadd.f32 %v3091, %v3161
    %3163 = vdwg.mxu0
    %3164 = vmatprep.subr.mxu0 %v2947
    %3165 = vmatpush1.msra.mxu0 %v2946
    %3166 = vmatprep.subr.mxu0 %v2949
    %3167 = vmatpush1.msra.mxu0 %v2948
    %3168 = vmatprep.subr.mxu0 %v2951
    %3169 = vmatpush1.msra.mxu0 %v2950
    %3170 = vmatprep.subr.mxu0 %v2953
    %3171 = vmatpush1.msra.mxu0 %v2952
    %3172 = vmatprep.subr.mxu0 %v2955
    %3173 = vmatpush1.msra.mxu0 %v2954
    %3174 = vmatprep.subr.mxu0 %v2957
    %3175 = vmatpush1.msra.mxu0 %v2956
    %3176 = vmatprep.subr.mxu0 %v2959
    %3177 = vmatpush1.msra.mxu0 %v2958
    %3178 = vmatprep.subr.mxu0 %v2961
    %3179 = vmatpush1.msra.mxu0 %v2960
    %3180 = vmatprep.subr.mxu0 %v2963
    %3181 = vmatpush1.msra.mxu0 %v2962
    %3182 = vmatprep.subr.mxu0 %v2965
    %3183 = vmatpush1.msra.mxu0 %v2964
    %3184 = vmatprep.subr.mxu0 %v2967
    %3185 = vmatpush1.msra.mxu0 %v2966
    %3186 = vmatprep.subr.mxu0 %v2969
    %3187 = vmatpush1.msra.mxu0 %v2968
    %3188 = vmatprep.subr.mxu0 %v2971
    %3189 = vmatpush1.msra.mxu0 %v2970
    %3190 = vmatprep.subr.mxu0 %v2973
    %3191 = vmatpush1.msra.mxu0 %v2972
    %3192 = vmatprep.subr.mxu0 %v2975
    %3193 = vmatpush1.msra.mxu0 %v2974
    %3194 = vmatprep.subr.mxu0 %v2977
    %3195 = vmatpush1.msra.mxu0 %v2976
    %3196 = vmatprep.subr.mxu0 %v2979
    %3197 = vmatpush1.msra.mxu0 %v2978
    %3198 = vmatprep.subr.mxu0 %v2981
    %3199 = vmatpush1.msra.mxu0 %v2980
    %3200 = vmatprep.subr.mxu0 %v2983
    %3201 = vmatpush1.msra.mxu0 %v2982
    %3202 = vmatprep.subr.mxu0 %v2985
    %3203 = vmatpush1.msra.mxu0 %v2984
    %3204 = vmatprep.subr.mxu0 %v2987
    %3205 = vmatpush1.msra.mxu0 %v2986
    %3206 = vmatprep.subr.mxu0 %v2989
    %3207 = vmatpush1.msra.mxu0 %v2988
    %3208 = vmatprep.subr.mxu0 %v2991
    %3209 = vmatpush1.msra.mxu0 %v2990
    %3210 = vmatprep.subr.mxu0 %v2993
    %3211 = vmatpush1.msra.mxu0 %v2992
    %3212 = vmatprep.subr.mxu0 %v2995
    %3213 = vmatpush1.msra.mxu0 %v2994
    %3214 = vmatprep.subr.mxu0 %v2997
    %3215 = vmatpush1.msra.mxu0 %v2996
    %3216 = vmatprep.subr.mxu0 %v2999
    %3217 = vmatpush1.msra.mxu0 %v2998
    %3218 = vmatprep.subr.mxu0 %v3001
    %3219 = vmatpush1.msra.mxu0 %v3000
    %3220 = vmatprep.subr.mxu0 %v3003
    %3221 = vmatpush1.msra.mxu0 %v3002
    %3222 = vmatprep.subr.mxu0 %v3005
    %3223 = vmatpush1.msra.mxu0 %v3004
    %3224 = vmatprep.subr.mxu0 %v3007
    %3225 = vmatpush1.msra.mxu0 %v3006
    %3226 = vmatprep.subr.mxu0 %v3009
    %3227 = vmatpush1.msra.mxu0 %v3008
    %3228 = vmatprep.mubr.f32.mxu0 %v2817
    %3229 = vmatmul.mubr.f32.gmra.mrb[0].mxu0 %v2816
    %v3230 = vpop.f32.mrb[0].mxu0
    %v3231 = vadd.f32 %v3160, %v3230
    %v3232 = vpop.f32.mrb[0].mxu0
    %v3233 = vadd.f32 %v3162, %v3232
    %3234 = vdwg.mxu0
    %v3235 = vmax.f32 %v3233, -4.0
    %v3236 = vmin.f32 %v3235, 15.0
    %v3237 = vmul.f32 %v3236, 1.442695
    %v3238 = vpow.pop %v3237
    %v3239 = vld [vmem:[#allocation5] sm:$0xff]
    %v3240 = vmul.f32 %v3238, %v3239
    %v3241 = vadd.f32 %v3231, %v3240
    %v3242 = vpack.c.bf16 %v3241, %v3241
    %v3243 = vadd.bf16 %v3242, %v227
    %v3244 = vld [vmem:[#allocation16] sm:$0xff]
    %v3245 = vld [vmem:[#allocation16 + $0x8] sm:$0xff]
    %v3246 = vld [vmem:[#allocation16 + $0x10] sm:$0xff]
    %v3247 = vld [vmem:[#allocation16 + $0x18] sm:$0xff]
    %v3248 = vld [vmem:[#allocation16 + $0x20] sm:$0xff]
    %v3249 = vld [vmem:[#allocation16 + $0x28] sm:$0xff]
    %v3250 = vld [vmem:[#allocation16 + $0x30] sm:$0xff]
    %v3251 = vld [vmem:[#allocation16 + $0x38] sm:$0xff]
    %v3252 = vld [vmem:[#allocation16 + $0x40] sm:$0xff]
    %v3253 = vld [vmem:[#allocation16 + $0x48] sm:$0xff]
    %v3254 = vld [vmem:[#allocation16 + $0x50] sm:$0xff]
    %v3255 = vld [vmem:[#allocation16 + $0x58] sm:$0xff]
    %v3256 = vld [vmem:[#allocation16 + $0x60] sm:$0xff]
    %v3257 = vld [vmem:[#allocation16 + $0x68] sm:$0xff]
    %v3258 = vld [vmem:[#allocation16 + $0x70] sm:$0xff]
    %v3259 = vld [vmem:[#allocation16 + $0x78] sm:$0xff]
    %v3260 = vld [vmem:[#allocation16 + $0x80] sm:$0xff]
    %v3261 = vld [vmem:[#allocation16 + $0x88] sm:$0xff]
    %v3262 = vld [vmem:[#allocation16 + $0x90] sm:$0xff]
    %v3263 = vld [vmem:[#allocation16 + $0x98] sm:$0xff]
    %v3264 = vld [vmem:[#allocation16 + $0xa0] sm:$0xff]
    %v3265 = vld [vmem:[#allocation16 + $0xa8] sm:$0xff]
    %v3266 = vld [vmem:[#allocation16 + $0xb0] sm:$0xff]
    %v3267 = vld [vmem:[#allocation16 + $0xb8] sm:$0xff]
    %v3268 = vld [vmem:[#allocation16 + $0xc0] sm:$0xff]
    %v3269 = vld [vmem:[#allocation16 + $0xc8] sm:$0xff]
    %v3270 = vld [vmem:[#allocation16 + $0xd0] sm:$0xff]
    %v3271 = vld [vmem:[#allocation16 + $0xd8] sm:$0xff]
    %v3272 = vld [vmem:[#allocation16 + $0xe0] sm:$0xff]
    %v3273 = vld [vmem:[#allocation16 + $0xe8] sm:$0xff]
    %v3274 = vld [vmem:[#allocation16 + $0xf0] sm:$0xff]
    %v3275 = vld [vmem:[#allocation16 + $0xf8] sm:$0xff]
    %v3276 = vld [vmem:[#allocation16 + $0x100] sm:$0xff]
    %v3277 = vld [vmem:[#allocation16 + $0x108] sm:$0xff]
    %v3278 = vld [vmem:[#allocation16 + $0x110] sm:$0xff]
    %v3279 = vld [vmem:[#allocation16 + $0x118] sm:$0xff]
    %v3280 = vld [vmem:[#allocation16 + $0x120] sm:$0xff]
    %v3281 = vld [vmem:[#allocation16 + $0x128] sm:$0xff]
    %v3282 = vld [vmem:[#allocation16 + $0x130] sm:$0xff]
    %v3283 = vld [vmem:[#allocation16 + $0x138] sm:$0xff]
    %v3284 = vld [vmem:[#allocation16 + $0x140] sm:$0xff]
    %v3285 = vld [vmem:[#allocation16 + $0x148] sm:$0xff]
    %v3286 = vld [vmem:[#allocation16 + $0x150] sm:$0xff]
    %v3287 = vld [vmem:[#allocation16 + $0x158] sm:$0xff]
    %v3288 = vld [vmem:[#allocation16 + $0x160] sm:$0xff]
    %v3289 = vld [vmem:[#allocation16 + $0x168] sm:$0xff]
    %v3290 = vld [vmem:[#allocation16 + $0x170] sm:$0xff]
    %v3291 = vld [vmem:[#allocation16 + $0x178] sm:$0xff]
    %v3292 = vld [vmem:[#allocation17] sm:$0x3f]
    %v3294 = vlaneseq
    %v3295 = vshrl.u32 %v3294, 7
    %v3296 = vsub.s32 0, %v3295
    %v3297 = vrot.slane %v3292, %v3296
    %v3298 = vlaneseq
    %v3299 = vshrl.u32 %v3298, 7
    %v3300 = vsub.s32 1, %v3299
    %v3301 = vrot.slane %v3292, %v3300
    %v3302 = vlaneseq
    %v3303 = vshrl.u32 %v3302, 7
    %v3304 = vsub.s32 2, %v3303
    %v3305 = vrot.slane %v3292, %v3304
    %v3306 = vlaneseq
    %v3307 = vshrl.u32 %v3306, 7
    %v3308 = vsub.s32 3, %v3307
    %v3309 = vrot.slane %v3292, %v3308
    %v3310 = vlaneseq
    %v3311 = vshrl.u32 %v3310, 7
    %v3312 = vsub.s32 4, %v3311
    %v3313 = vrot.slane %v3292, %v3312
    %v3314 = vlaneseq
    %v3315 = vshrl.u32 %v3314, 7
    %v3316 = vsub.s32 5, %v3315
    %v3317 = vrot.slane %v3292, %v3316
    %v3372 = vunpack.c.l.b16 %v3244
    %v3373 = vunpack.c.h.b16 %v3244
    %v3374 = vunpack.c.l.b16 %v3245
    %v3375 = vunpack.c.h.b16 %v3245
    %v3376 = vunpack.c.l.b16 %v3246
    %v3377 = vunpack.c.h.b16 %v3246
    %v3378 = vunpack.c.l.b16 %v3247
    %v3379 = vunpack.c.h.b16 %v3247
    %v3380 = vunpack.c.l.b16 %v3248
    %v3381 = vunpack.c.h.b16 %v3248
    %v3382 = vunpack.c.l.b16 %v3249
    %v3383 = vunpack.c.h.b16 %v3249
    %v3384 = vunpack.c.l.b16 %v3250
    %v3385 = vunpack.c.h.b16 %v3250
    %v3386 = vunpack.c.l.b16 %v3251
    %v3387 = vunpack.c.h.b16 %v3251
    %v3388 = vunpack.c.l.b16 %v3252
    %v3389 = vunpack.c.h.b16 %v3252
    %v3390 = vunpack.c.l.b16 %v3253
    %v3391 = vunpack.c.h.b16 %v3253
    %v3392 = vunpack.c.l.b16 %v3254
    %v3393 = vunpack.c.h.b16 %v3254
    %v3394 = vunpack.c.l.b16 %v3255
    %v3395 = vunpack.c.h.b16 %v3255
    %v3396 = vunpack.c.l.b16 %v3256
    %v3397 = vunpack.c.h.b16 %v3256
    %v3398 = vunpack.c.l.b16 %v3257
    %v3399 = vunpack.c.h.b16 %v3257
    %v3400 = vunpack.c.l.b16 %v3258
    %v3401 = vunpack.c.h.b16 %v3258
    %v3402 = vunpack.c.l.b16 %v3259
    %v3403 = vunpack.c.h.b16 %v3259
    %v3404 = vunpack.c.l.b16 %v3260
    %v3405 = vunpack.c.h.b16 %v3260
    %v3406 = vunpack.c.l.b16 %v3261
    %v3407 = vunpack.c.h.b16 %v3261
    %v3408 = vunpack.c.l.b16 %v3262
    %v3409 = vunpack.c.h.b16 %v3262
    %v3410 = vunpack.c.l.b16 %v3263
    %v3411 = vunpack.c.h.b16 %v3263
    %v3412 = vunpack.c.l.b16 %v3264
    %v3413 = vunpack.c.h.b16 %v3264
    %v3414 = vunpack.c.l.b16 %v3265
    %v3415 = vunpack.c.h.b16 %v3265
    %v3416 = vunpack.c.l.b16 %v3266
    %v3417 = vunpack.c.h.b16 %v3266
    %v3418 = vunpack.c.l.b16 %v3267
    %v3419 = vunpack.c.h.b16 %v3267
    %v3420 = vunpack.c.l.b16 %v3268
    %v3421 = vunpack.c.h.b16 %v3268
    %v3422 = vunpack.c.l.b16 %v3269
    %v3423 = vunpack.c.h.b16 %v3269
    %v3424 = vunpack.c.l.b16 %v3270
    %v3425 = vunpack.c.h.b16 %v3270
    %v3426 = vunpack.c.l.b16 %v3271
    %v3427 = vunpack.c.h.b16 %v3271
    %v3428 = vunpack.c.l.b16 %v3272
    %v3429 = vunpack.c.h.b16 %v3272
    %v3430 = vunpack.c.l.b16 %v3273
    %v3431 = vunpack.c.h.b16 %v3273
    %v3432 = vunpack.c.l.b16 %v3274
    %v3433 = vunpack.c.h.b16 %v3274
    %v3434 = vunpack.c.l.b16 %v3275
    %v3435 = vunpack.c.h.b16 %v3275
    %v3436 = vunpack.c.l.b16 %v3276
    %v3437 = vunpack.c.h.b16 %v3276
    %v3438 = vunpack.c.l.b16 %v3277
    %v3439 = vunpack.c.h.b16 %v3277
    %v3440 = vunpack.c.l.b16 %v3278
    %v3441 = vunpack.c.h.b16 %v3278
    %v3442 = vunpack.c.l.b16 %v3279
    %v3443 = vunpack.c.h.b16 %v3279
    %v3444 = vunpack.c.l.b16 %v3280
    %v3445 = vunpack.c.h.b16 %v3280
    %v3446 = vunpack.c.l.b16 %v3281
    %v3447 = vunpack.c.h.b16 %v3281
    %v3448 = vunpack.c.l.b16 %v3282
    %v3449 = vunpack.c.h.b16 %v3282
    %v3450 = vunpack.c.l.b16 %v3283
    %v3451 = vunpack.c.h.b16 %v3283
    %v3452 = vunpack.c.l.b16 %v3284
    %v3453 = vunpack.c.h.b16 %v3284
    %v3454 = vunpack.c.l.b16 %v3285
    %v3455 = vunpack.c.h.b16 %v3285
    %v3456 = vunpack.c.l.b16 %v3286
    %v3457 = vunpack.c.h.b16 %v3286
    %v3458 = vunpack.c.l.b16 %v3287
    %v3459 = vunpack.c.h.b16 %v3287
    %v3460 = vunpack.c.l.b16 %v3288
    %v3461 = vunpack.c.h.b16 %v3288
    %v3462 = vunpack.c.l.b16 %v3289
    %v3463 = vunpack.c.h.b16 %v3289
    %v3464 = vunpack.c.l.b16 %v3290
    %v3465 = vunpack.c.h.b16 %v3290
    %v3466 = vunpack.c.l.b16 %v3291
    %v3467 = vunpack.c.h.b16 %v3291
    %v3468 = vpack.c.b16 %v3378, %v3372
    %v3469 = vpack.c.b16 %v3379, %v3373
    %v3470 = vpack.c.b16 %v3380, %v3374
    %v3471 = vpack.c.b16 %v3381, %v3375
    %v3472 = vpack.c.b16 %v3382, %v3376
    %v3473 = vpack.c.b16 %v3383, %v3377
    %v3474 = vpack.c.b16 %v3390, %v3384
    %v3475 = vpack.c.b16 %v3391, %v3385
    %v3476 = vpack.c.b16 %v3392, %v3386
    %v3477 = vpack.c.b16 %v3393, %v3387
    %v3478 = vpack.c.b16 %v3394, %v3388
    %v3479 = vpack.c.b16 %v3395, %v3389
    %v3480 = vpack.c.b16 %v3402, %v3396
    %v3481 = vpack.c.b16 %v3403, %v3397
    %v3482 = vpack.c.b16 %v3404, %v3398
    %v3483 = vpack.c.b16 %v3405, %v3399
    %v3484 = vpack.c.b16 %v3406, %v3400
    %v3485 = vpack.c.b16 %v3407, %v3401
    %v3486 = vpack.c.b16 %v3414, %v3408
    %v3487 = vpack.c.b16 %v3415, %v3409
    %v3488 = vpack.c.b16 %v3416, %v3410
    %v3489 = vpack.c.b16 %v3417, %v3411
    %v3490 = vpack.c.b16 %v3418, %v3412
    %v3491 = vpack.c.b16 %v3419, %v3413
    %v3492 = vpack.c.b16 %v3426, %v3420
    %v3493 = vpack.c.b16 %v3427, %v3421
    %v3494 = vpack.c.b16 %v3428, %v3422
    %v3495 = vpack.c.b16 %v3429, %v3423
    %v3496 = vpack.c.b16 %v3430, %v3424
    %v3497 = vpack.c.b16 %v3431, %v3425
    %v3498 = vpack.c.b16 %v3438, %v3432
    %v3499 = vpack.c.b16 %v3439, %v3433
    %v3500 = vpack.c.b16 %v3440, %v3434
    %v3501 = vpack.c.b16 %v3441, %v3435
    %v3502 = vpack.c.b16 %v3442, %v3436
    %v3503 = vpack.c.b16 %v3443, %v3437
    %v3504 = vpack.c.b16 %v3450, %v3444
    %v3505 = vpack.c.b16 %v3451, %v3445
    %v3506 = vpack.c.b16 %v3452, %v3446
    %v3507 = vpack.c.b16 %v3453, %v3447
    %v3508 = vpack.c.b16 %v3454, %v3448
    %v3509 = vpack.c.b16 %v3455, %v3449
    %v3510 = vpack.c.b16 %v3462, %v3456
    %v3511 = vpack.c.b16 %v3463, %v3457
    %v3512 = vpack.c.b16 %v3464, %v3458
    %v3513 = vpack.c.b16 %v3465, %v3459
    %v3514 = vpack.c.b16 %v3466, %v3460
    %v3515 = vpack.c.b16 %v3467, %v3461
    %3564 = vmatprep.subr.bf16.mxu0 %v3469
    %3565 = vmatpush1.bf16.msra.mxu0 %v3468
    %3566 = vmatprep.subr.bf16.mxu0 %v3475
    %3567 = vmatpush1.bf16.msra.mxu0 %v3474
    %3568 = vmatprep.subr.bf16.mxu0 %v3481
    %3569 = vmatpush1.bf16.msra.mxu0 %v3480
    %3570 = vmatprep.subr.bf16.mxu0 %v3487
    %3571 = vmatpush1.bf16.msra.mxu0 %v3486
    %3572 = vmatprep.subr.bf16.mxu0 %v3493
    %3573 = vmatpush1.bf16.msra.mxu0 %v3492
    %3574 = vmatprep.subr.bf16.mxu0 %v3499
    %3575 = vmatpush1.bf16.msra.mxu0 %v3498
    %3576 = vmatprep.subr.bf16.mxu0 %v3505
    %3577 = vmatpush1.bf16.msra.mxu0 %v3504
    %3578 = vmatprep.subr.bf16.mxu0 %v3511
    %3579 = vmatpush1.bf16.msra.mxu0 %v3510
    %3580 = vmatprep.subr.bf16.mxu0 0
    %3581 = vmatpush1.bf16.msra.mxu0 0
    %3582 = vmatprep.subr.bf16.mxu0 0
    %3583 = vmatpush1.bf16.msra.mxu0 0
    %3584 = vmatprep.subr.bf16.mxu0 0
    %3585 = vmatpush1.bf16.msra.mxu0 0
    %3586 = vmatprep.subr.bf16.mxu0 0
    %3587 = vmatpush1.bf16.msra.mxu0 0
    %3588 = vmatprep.subr.bf16.mxu0 0
    %3589 = vmatpush1.bf16.msra.mxu0 0
    %3590 = vmatprep.subr.bf16.mxu0 0
    %3591 = vmatpush1.bf16.msra.mxu0 0
    %3592 = vmatprep.subr.bf16.mxu0 0
    %3593 = vmatpush1.bf16.msra.mxu0 0
    %3594 = vmatprep.subr.bf16.mxu0 0
    %3595 = vmatpush1.bf16.msra.mxu0 0
    %3596 = vmatprep.mubr.bf16.mxu0 0
    %3597 = vmatmul.mubr.bf16.gmra.mrb[0].mxu0 %v3243
    %v3598 = vpop.f32.mrb[0].mxu0
    %v3599 = vadd.f32 %v3297, %v3598
    %v3600 = vpop.f32.mrb[0].mxu0
    %v3601 = vadd.f32 %v3301, %v3600
    %v3602 = vpop.f32.mrb[0].mxu0
    %v3603 = vpop.f32.mrb[0].mxu0
    %3604 = vdwg.mxu0
    %3605 = vmatprep.subr.bf16.mxu0 %v3471
    %3606 = vmatpush1.bf16.msra.mxu0 %v3470
    %3607 = vmatprep.subr.bf16.mxu0 %v3477
    %3608 = vmatpush1.bf16.msra.mxu0 %v3476
    %3609 = vmatprep.subr.bf16.mxu0 %v3483
    %3610 = vmatpush1.bf16.msra.mxu0 %v3482
    %3611 = vmatprep.subr.bf16.mxu0 %v3489
    %3612 = vmatpush1.bf16.msra.mxu0 %v3488
    %3613 = vmatprep.subr.bf16.mxu0 %v3495
    %3614 = vmatpush1.bf16.msra.mxu0 %v3494
    %3615 = vmatprep.subr.bf16.mxu0 %v3501
    %3616 = vmatpush1.bf16.msra.mxu0 %v3500
    %3617 = vmatprep.subr.bf16.mxu0 %v3507
    %3618 = vmatpush1.bf16.msra.mxu0 %v3506
    %3619 = vmatprep.subr.bf16.mxu0 %v3513
    %3620 = vmatpush1.bf16.msra.mxu0 %v3512
    %3621 = vmatprep.subr.bf16.mxu0 0
    %3622 = vmatpush1.bf16.msra.mxu0 0
    %3623 = vmatprep.subr.bf16.mxu0 0
    %3624 = vmatpush1.bf16.msra.mxu0 0
    %3625 = vmatprep.subr.bf16.mxu0 0
    %3626 = vmatpush1.bf16.msra.mxu0 0
    %3627 = vmatprep.subr.bf16.mxu0 0
    %3628 = vmatpush1.bf16.msra.mxu0 0
    %3629 = vmatprep.subr.bf16.mxu0 0
    %3630 = vmatpush1.bf16.msra.mxu0 0
    %3631 = vmatprep.subr.bf16.mxu0 0
    %3632 = vmatpush1.bf16.msra.mxu0 0
    %3633 = vmatprep.subr.bf16.mxu0 0
    %3634 = vmatpush1.bf16.msra.mxu0 0
    %3635 = vmatprep.subr.bf16.mxu0 0
    %3636 = vmatpush1.bf16.msra.mxu0 0
    %3637 = vmatprep.mubr.bf16.mxu0 0
    %3638 = vmatmul.mubr.bf16.gmra.mrb[0].mxu0 %v3243
    %v3639 = vpop.f32.mrb[0].mxu0
    %v3640 = vadd.f32 %v3305, %v3639
    %v3641 = vpop.f32.mrb[0].mxu0
    %v3642 = vadd.f32 %v3309, %v3641
    %v3643 = vpop.f32.mrb[0].mxu0
    %v3644 = vpop.f32.mrb[0].mxu0
    %3645 = vdwg.mxu0
    %3646 = vmatprep.subr.bf16.mxu0 %v3473
    %3647 = vmatpush1.bf16.msra.mxu0 %v3472
    %3648 = vmatprep.subr.bf16.mxu0 %v3479
    %3649 = vmatpush1.bf16.msra.mxu0 %v3478
    %3650 = vmatprep.subr.bf16.mxu0 %v3485
    %3651 = vmatpush1.bf16.msra.mxu0 %v3484
    %3652 = vmatprep.subr.bf16.mxu0 %v3491
    %3653 = vmatpush1.bf16.msra.mxu0 %v3490
    %3654 = vmatprep.subr.bf16.mxu0 %v3497
    %3655 = vmatpush1.bf16.msra.mxu0 %v3496
    %3656 = vmatprep.subr.bf16.mxu0 %v3503
    %3657 = vmatpush1.bf16.msra.mxu0 %v3502
    %3658 = vmatprep.subr.bf16.mxu0 %v3509
    %3659 = vmatpush1.bf16.msra.mxu0 %v3508
    %3660 = vmatprep.subr.bf16.mxu0 %v3515
    %3661 = vmatpush1.bf16.msra.mxu0 %v3514
    %3662 = vmatprep.subr.bf16.mxu0 0
    %3663 = vmatpush1.bf16.msra.mxu0 0
    %3664 = vmatprep.subr.bf16.mxu0 0
    %3665 = vmatpush1.bf16.msra.mxu0 0
    %3666 = vmatprep.subr.bf16.mxu0 0
    %3667 = vmatpush1.bf16.msra.mxu0 0
    %3668 = vmatprep.subr.bf16.mxu0 0
    %3669 = vmatpush1.bf16.msra.mxu0 0
    %3670 = vmatprep.subr.bf16.mxu0 0
    %3671 = vmatpush1.bf16.msra.mxu0 0
    %3672 = vmatprep.subr.bf16.mxu0 0
    %3673 = vmatpush1.bf16.msra.mxu0 0
    %3674 = vmatprep.subr.bf16.mxu0 0
    %3675 = vmatpush1.bf16.msra.mxu0 0
    %3676 = vmatprep.subr.bf16.mxu0 0
    %3677 = vmatpush1.bf16.msra.mxu0 0
    %3678 = vmatprep.mubr.bf16.mxu0 0
    %3679 = vmatmul.mubr.bf16.gmra.mrb[0].mxu0 %v3243
    %v3680 = vpop.f32.mrb[0].mxu0
    %v3681 = vadd.f32 %v3313, %v3680
    %v3682 = vpop.f32.mrb[0].mxu0
    %v3683 = vadd.f32 %v3317, %v3682
    %v3684 = vpop.f32.mrb[0].mxu0
    %v3685 = vpop.f32.mrb[0].mxu0
    %3686 = vdwg.mxu0
    %v3687 = vmax.f32 %v3599, 0.0
    %v3688 = vmax.f32 %v3601, 0.0
    %v3689 = vmax.f32 %v3640, 0.0
    %v3690 = vmax.f32 %v3642, 0.0
    %v3691 = vmax.f32 %v3681, 0.0
    %v3692 = vmax.f32 %v3683, 0.0
    %v3693 = vpack.c.bf16 %v3687, %v3687
    %v3694 = vpack.c.bf16 %v3688, %v3688
    %v3695 = vpack.c.bf16 %v3689, %v3689
    %v3696 = vpack.c.bf16 %v3690, %v3690
    %v3697 = vpack.c.bf16 %v3691, %v3691
    %v3698 = vpack.c.bf16 %v3692, %v3692
    %v3699 = vld [vmem:[#allocation19] sm:$0xff]
    %v3700 = vld [vmem:[#allocation19 + $0x8] sm:$0xff]
    %v3701 = vld [vmem:[#allocation19 + $0x10] sm:$0xff]
    %v3702 = vld [vmem:[#allocation19 + $0x18] sm:$0xff]
    %v3703 = vld [vmem:[#allocation19 + $0x20] sm:$0xff]
    %v3704 = vld [vmem:[#allocation19 + $0x28] sm:$0xff]
    %v3705 = vld [vmem:[#allocation19 + $0x30] sm:$0xff]
    %v3706 = vld [vmem:[#allocation19 + $0x38] sm:$0xff]
    %v3707 = vld [vmem:[#allocation19 + $0x40] sm:$0xff]
    %v3708 = vld [vmem:[#allocation19 + $0x48] sm:$0xff]
    %v3709 = vld [vmem:[#allocation19 + $0x50] sm:$0xff]
    %v3710 = vld [vmem:[#allocation19 + $0x58] sm:$0xff]
    %v3711 = vld [vmem:[#allocation19 + $0x60] sm:$0xff]
    %v3712 = vld [vmem:[#allocation19 + $0x68] sm:$0xff]
    %v3713 = vld [vmem:[#allocation19 + $0x70] sm:$0xff]
    %v3714 = vld [vmem:[#allocation19 + $0x78] sm:$0xff]
    %v3715 = vld [vmem:[#allocation19 + $0x80] sm:$0xff]
    %v3716 = vld [vmem:[#allocation19 + $0x88] sm:$0xff]
    %v3717 = vld [vmem:[#allocation19 + $0x90] sm:$0xff]
    %v3718 = vld [vmem:[#allocation19 + $0x98] sm:$0xff]
    %v3719 = vld [vmem:[#allocation19 + $0xa0] sm:$0xff]
    %v3720 = vld [vmem:[#allocation19 + $0xa8] sm:$0xff]
    %v3721 = vld [vmem:[#allocation19 + $0xb0] sm:$0xff]
    %v3722 = vld [vmem:[#allocation19 + $0xb8] sm:$0xff]
    %v3723 = vld [vmem:[#allocation19 + $0xc0] sm:$0xff]
    %v3724 = vld [vmem:[#allocation19 + $0xc8] sm:$0xff]
    %v3725 = vld [vmem:[#allocation19 + $0xd0] sm:$0xff]
    %v3726 = vld [vmem:[#allocation19 + $0xd8] sm:$0xff]
    %v3727 = vld [vmem:[#allocation19 + $0xe0] sm:$0xff]
    %v3728 = vld [vmem:[#allocation19 + $0xe8] sm:$0xff]
    %v3729 = vld [vmem:[#allocation19 + $0xf0] sm:$0xff]
    %v3730 = vld [vmem:[#allocation19 + $0xf8] sm:$0xff]
    %v3731 = vld [vmem:[#allocation19 + $0x100] sm:$0xff]
    %v3732 = vld [vmem:[#allocation19 + $0x108] sm:$0xff]
    %v3733 = vld [vmem:[#allocation19 + $0x110] sm:$0xff]
    %v3734 = vld [vmem:[#allocation19 + $0x118] sm:$0xff]
    %v3735 = vld [vmem:[#allocation19 + $0x120] sm:$0xff]
    %v3736 = vld [vmem:[#allocation19 + $0x128] sm:$0xff]
    %v3737 = vld [vmem:[#allocation19 + $0x130] sm:$0xff]
    %v3738 = vld [vmem:[#allocation19 + $0x138] sm:$0xff]
    %v3739 = vld [vmem:[#allocation19 + $0x140] sm:$0xff]
    %v3740 = vld [vmem:[#allocation19 + $0x148] sm:$0xff]
    %v3741 = vld [vmem:[#allocation19 + $0x150] sm:$0xff]
    %v3742 = vld [vmem:[#allocation19 + $0x158] sm:$0xff]
    %v3743 = vld [vmem:[#allocation19 + $0x160] sm:$0xff]
    %v3744 = vld [vmem:[#allocation19 + $0x168] sm:$0xff]
    %v3745 = vld [vmem:[#allocation19 + $0x170] sm:$0xff]
    %v3746 = vld [vmem:[#allocation19 + $0x178] sm:$0xff]
    %v3747 = vld [vmem:[#allocation19 + $0x180] sm:$0xff]
    %v3748 = vld [vmem:[#allocation19 + $0x188] sm:$0xff]
    %v3749 = vld [vmem:[#allocation19 + $0x190] sm:$0xff]
    %v3750 = vld [vmem:[#allocation19 + $0x198] sm:$0xff]
    %v3751 = vld [vmem:[#allocation19 + $0x1a0] sm:$0xff]
    %v3752 = vld [vmem:[#allocation19 + $0x1a8] sm:$0xff]
    %v3753 = vld [vmem:[#allocation19 + $0x1b0] sm:$0xff]
    %v3754 = vld [vmem:[#allocation19 + $0x1b8] sm:$0xff]
    %v3755 = vld [vmem:[#allocation19 + $0x1c0] sm:$0xff]
    %v3756 = vld [vmem:[#allocation19 + $0x1c8] sm:$0xff]
    %v3757 = vld [vmem:[#allocation19 + $0x1d0] sm:$0xff]
    %v3758 = vld [vmem:[#allocation19 + $0x1d8] sm:$0xff]
    %v3759 = vld [vmem:[#allocation19 + $0x1e0] sm:$0xff]
    %v3760 = vld [vmem:[#allocation19 + $0x1e8] sm:$0xff]
    %v3761 = vld [vmem:[#allocation19 + $0x1f0] sm:$0xff]
    %v3762 = vld [vmem:[#allocation19 + $0x1f8] sm:$0xff]
    %v3763 = vld [vmem:[#allocation19 + $0x200] sm:$0xff]
    %v3764 = vld [vmem:[#allocation19 + $0x208] sm:$0xff]
    %v3765 = vld [vmem:[#allocation19 + $0x210] sm:$0xff]
    %v3766 = vld [vmem:[#allocation19 + $0x218] sm:$0xff]
    %v3767 = vld [vmem:[#allocation19 + $0x220] sm:$0xff]
    %v3768 = vld [vmem:[#allocation19 + $0x228] sm:$0xff]
    %v3769 = vld [vmem:[#allocation19 + $0x230] sm:$0xff]
    %v3770 = vld [vmem:[#allocation19 + $0x238] sm:$0xff]
    %v3771 = vld [vmem:[#allocation19 + $0x240] sm:$0xff]
    %v3772 = vld [vmem:[#allocation19 + $0x248] sm:$0xff]
    %v3773 = vld [vmem:[#allocation19 + $0x250] sm:$0xff]
    %v3774 = vld [vmem:[#allocation19 + $0x258] sm:$0xff]
    %v3775 = vld [vmem:[#allocation19 + $0x260] sm:$0xff]
    %v3776 = vld [vmem:[#allocation19 + $0x268] sm:$0xff]
    %v3777 = vld [vmem:[#allocation19 + $0x270] sm:$0xff]
    %v3778 = vld [vmem:[#allocation19 + $0x278] sm:$0xff]
    %v3779 = vld [vmem:[#allocation19 + $0x280] sm:$0xff]
    %v3780 = vld [vmem:[#allocation19 + $0x288] sm:$0xff]
    %v3781 = vld [vmem:[#allocation19 + $0x290] sm:$0xff]
    %v3782 = vld [vmem:[#allocation19 + $0x298] sm:$0xff]
    %v3783 = vld [vmem:[#allocation19 + $0x2a0] sm:$0xff]
    %v3784 = vld [vmem:[#allocation19 + $0x2a8] sm:$0xff]
    %v3785 = vld [vmem:[#allocation19 + $0x2b0] sm:$0xff]
    %v3786 = vld [vmem:[#allocation19 + $0x2b8] sm:$0xff]
    %v3787 = vld [vmem:[#allocation19 + $0x2c0] sm:$0xff]
    %v3788 = vld [vmem:[#allocation19 + $0x2c8] sm:$0xff]
    %v3789 = vld [vmem:[#allocation19 + $0x2d0] sm:$0xff]
    %v3790 = vld [vmem:[#allocation19 + $0x2d8] sm:$0xff]
    %v3791 = vld [vmem:[#allocation19 + $0x2e0] sm:$0xff]
    %v3792 = vld [vmem:[#allocation19 + $0x2e8] sm:$0xff]
    %v3793 = vld [vmem:[#allocation19 + $0x2f0] sm:$0xff]
    %v3794 = vld [vmem:[#allocation19 + $0x2f8] sm:$0xff]
    %v3795 = vld [vmem:[#allocation19 + $0x300] sm:$0xff]
    %v3796 = vld [vmem:[#allocation19 + $0x308] sm:$0xff]
    %v3797 = vld [vmem:[#allocation19 + $0x310] sm:$0xff]
    %v3798 = vld [vmem:[#allocation19 + $0x318] sm:$0xff]
    %v3799 = vld [vmem:[#allocation19 + $0x320] sm:$0xff]
    %v3800 = vld [vmem:[#allocation19 + $0x328] sm:$0xff]
    %v3801 = vld [vmem:[#allocation19 + $0x330] sm:$0xff]
    %v3802 = vld [vmem:[#allocation19 + $0x338] sm:$0xff]
    %v3803 = vld [vmem:[#allocation19 + $0x340] sm:$0xff]
    %v3804 = vld [vmem:[#allocation19 + $0x348] sm:$0xff]
    %v3805 = vld [vmem:[#allocation19 + $0x350] sm:$0xff]
    %v3806 = vld [vmem:[#allocation19 + $0x358] sm:$0xff]
    %v3807 = vld [vmem:[#allocation19 + $0x360] sm:$0xff]
    %v3808 = vld [vmem:[#allocation19 + $0x368] sm:$0xff]
    %v3809 = vld [vmem:[#allocation19 + $0x370] sm:$0xff]
    %v3810 = vld [vmem:[#allocation19 + $0x378] sm:$0xff]
    %v3811 = vld [vmem:[#allocation19 + $0x380] sm:$0xff]
    %v3812 = vld [vmem:[#allocation19 + $0x388] sm:$0xff]
    %v3813 = vld [vmem:[#allocation19 + $0x390] sm:$0xff]
    %v3814 = vld [vmem:[#allocation19 + $0x398] sm:$0xff]
    %v3815 = vld [vmem:[#allocation19 + $0x3a0] sm:$0xff]
    %v3816 = vld [vmem:[#allocation19 + $0x3a8] sm:$0xff]
    %v3817 = vld [vmem:[#allocation19 + $0x3b0] sm:$0xff]
    %v3818 = vld [vmem:[#allocation19 + $0x3b8] sm:$0xff]
    %v3819 = vld [vmem:[#allocation19 + $0x3c0] sm:$0xff]
    %v3820 = vld [vmem:[#allocation19 + $0x3c8] sm:$0xff]
    %v3821 = vld [vmem:[#allocation19 + $0x3d0] sm:$0xff]
    %v3822 = vld [vmem:[#allocation19 + $0x3d8] sm:$0xff]
    %v3823 = vld [vmem:[#allocation19 + $0x3e0] sm:$0xff]
    %v3824 = vld [vmem:[#allocation19 + $0x3e8] sm:$0xff]
    %v3825 = vld [vmem:[#allocation19 + $0x3f0] sm:$0xff]
    %v3826 = vld [vmem:[#allocation19 + $0x3f8] sm:$0xff]
    %v3827 = vld [vmem:[#allocation19 + $0x400] sm:$0xff]
    %v3828 = vld [vmem:[#allocation19 + $0x408] sm:$0xff]
    %v3829 = vld [vmem:[#allocation19 + $0x410] sm:$0xff]
    %v3830 = vld [vmem:[#allocation19 + $0x418] sm:$0xff]
    %v3831 = vld [vmem:[#allocation19 + $0x420] sm:$0xff]
    %v3832 = vld [vmem:[#allocation19 + $0x428] sm:$0xff]
    %v3833 = vld [vmem:[#allocation19 + $0x430] sm:$0xff]
    %v3834 = vld [vmem:[#allocation19 + $0x438] sm:$0xff]
    %v3835 = vld [vmem:[#allocation19 + $0x440] sm:$0xff]
    %v3836 = vld [vmem:[#allocation19 + $0x448] sm:$0xff]
    %v3837 = vld [vmem:[#allocation19 + $0x450] sm:$0xff]
    %v3838 = vld [vmem:[#allocation19 + $0x458] sm:$0xff]
    %v3839 = vld [vmem:[#allocation19 + $0x460] sm:$0xff]
    %v3840 = vld [vmem:[#allocation19 + $0x468] sm:$0xff]
    %v3841 = vld [vmem:[#allocation19 + $0x470] sm:$0xff]
    %v3842 = vld [vmem:[#allocation19 + $0x478] sm:$0xff]
    %v3843 = vld [vmem:[#allocation19 + $0x480] sm:$0xff]
    %v3844 = vld [vmem:[#allocation19 + $0x488] sm:$0xff]
    %v3845 = vld [vmem:[#allocation19 + $0x490] sm:$0xff]
    %v3846 = vld [vmem:[#allocation19 + $0x498] sm:$0xff]
    %v3847 = vld [vmem:[#allocation19 + $0x4a0] sm:$0xff]
    %v3848 = vld [vmem:[#allocation19 + $0x4a8] sm:$0xff]
    %v3849 = vld [vmem:[#allocation19 + $0x4b0] sm:$0xff]
    %v3850 = vld [vmem:[#allocation19 + $0x4b8] sm:$0xff]
    %v3851 = vld [vmem:[#allocation19 + $0x4c0] sm:$0xff]
    %v3852 = vld [vmem:[#allocation19 + $0x4c8] sm:$0xff]
    %v3853 = vld [vmem:[#allocation19 + $0x4d0] sm:$0xff]
    %v3854 = vld [vmem:[#allocation19 + $0x4d8] sm:$0xff]
    %v3855 = vld [vmem:[#allocation19 + $0x4e0] sm:$0xff]
    %v3856 = vld [vmem:[#allocation19 + $0x4e8] sm:$0xff]
    %v3857 = vld [vmem:[#allocation19 + $0x4f0] sm:$0xff]
    %v3858 = vld [vmem:[#allocation19 + $0x4f8] sm:$0xff]
    %v3859 = vld [vmem:[#allocation19 + $0x500] sm:$0xff]
    %v3860 = vld [vmem:[#allocation19 + $0x508] sm:$0xff]
    %v3861 = vld [vmem:[#allocation19 + $0x510] sm:$0xff]
    %v3862 = vld [vmem:[#allocation19 + $0x518] sm:$0xff]
    %v3863 = vld [vmem:[#allocation19 + $0x520] sm:$0xff]
    %v3864 = vld [vmem:[#allocation19 + $0x528] sm:$0xff]
    %v3865 = vld [vmem:[#allocation19 + $0x530] sm:$0xff]
    %v3866 = vld [vmem:[#allocation19 + $0x538] sm:$0xff]
    %v3867 = vld [vmem:[#allocation19 + $0x540] sm:$0xff]
    %v3868 = vld [vmem:[#allocation19 + $0x548] sm:$0xff]
    %v3869 = vld [vmem:[#allocation19 + $0x550] sm:$0xff]
    %v3870 = vld [vmem:[#allocation19 + $0x558] sm:$0xff]
    %v3871 = vld [vmem:[#allocation19 + $0x560] sm:$0xff]
    %v3872 = vld [vmem:[#allocation19 + $0x568] sm:$0xff]
    %v3873 = vld [vmem:[#allocation19 + $0x570] sm:$0xff]
    %v3874 = vld [vmem:[#allocation19 + $0x578] sm:$0xff]
    %v3875 = vld [vmem:[#allocation19 + $0x580] sm:$0xff]
    %v3876 = vld [vmem:[#allocation19 + $0x588] sm:$0xff]
    %v3877 = vld [vmem:[#allocation19 + $0x590] sm:$0xff]
    %v3878 = vld [vmem:[#allocation19 + $0x598] sm:$0xff]
    %v3879 = vld [vmem:[#allocation19 + $0x5a0] sm:$0xff]
    %v3880 = vld [vmem:[#allocation19 + $0x5a8] sm:$0xff]
    %v3881 = vld [vmem:[#allocation19 + $0x5b0] sm:$0xff]
    %v3882 = vld [vmem:[#allocation19 + $0x5b8] sm:$0xff]
    %v3883 = vld [vmem:[#allocation19 + $0x5c0] sm:$0xff]
    %v3884 = vld [vmem:[#allocation19 + $0x5c8] sm:$0xff]
    %v3885 = vld [vmem:[#allocation19 + $0x5d0] sm:$0xff]
    %v3886 = vld [vmem:[#allocation19 + $0x5d8] sm:$0xff]
    %v3887 = vld [vmem:[#allocation19 + $0x5e0] sm:$0xff]
    %v3888 = vld [vmem:[#allocation19 + $0x5e8] sm:$0xff]
    %v3889 = vld [vmem:[#allocation19 + $0x5f0] sm:$0xff]
    %v3890 = vld [vmem:[#allocation19 + $0x5f8] sm:$0xff]
    %v3891 = vld [vmem:[#allocation19 + $0x600] sm:$0xff]
    %v3892 = vld [vmem:[#allocation19 + $0x608] sm:$0xff]
    %v3893 = vld [vmem:[#allocation19 + $0x610] sm:$0xff]
    %v3894 = vld [vmem:[#allocation19 + $0x618] sm:$0xff]
    %v3895 = vld [vmem:[#allocation19 + $0x620] sm:$0xff]
    %v3896 = vld [vmem:[#allocation19 + $0x628] sm:$0xff]
    %v3897 = vld [vmem:[#allocation19 + $0x630] sm:$0xff]
    %v3898 = vld [vmem:[#allocation19 + $0x638] sm:$0xff]
    %v3899 = vld [vmem:[#allocation19 + $0x640] sm:$0xff]
    %v3900 = vld [vmem:[#allocation19 + $0x648] sm:$0xff]
    %v3901 = vld [vmem:[#allocation19 + $0x650] sm:$0xff]
    %v3902 = vld [vmem:[#allocation19 + $0x658] sm:$0xff]
    %v3903 = vld [vmem:[#allocation19 + $0x660] sm:$0xff]
    %v3904 = vld [vmem:[#allocation19 + $0x668] sm:$0xff]
    %v3905 = vld [vmem:[#allocation19 + $0x670] sm:$0xff]
    %v3906 = vld [vmem:[#allocation19 + $0x678] sm:$0xff]
    %v3907 = vld [vmem:[#allocation19 + $0x680] sm:$0xff]
    %v3908 = vld [vmem:[#allocation19 + $0x688] sm:$0xff]
    %v3909 = vld [vmem:[#allocation19 + $0x690] sm:$0xff]
    %v3910 = vld [vmem:[#allocation19 + $0x698] sm:$0xff]
    %v3911 = vld [vmem:[#allocation19 + $0x6a0] sm:$0xff]
    %v3912 = vld [vmem:[#allocation19 + $0x6a8] sm:$0xff]
    %v3913 = vld [vmem:[#allocation19 + $0x6b0] sm:$0xff]
    %v3914 = vld [vmem:[#allocation19 + $0x6b8] sm:$0xff]
    %v3915 = vld [vmem:[#allocation19 + $0x6c0] sm:$0xff]
    %v3916 = vld [vmem:[#allocation19 + $0x6c8] sm:$0xff]
    %v3917 = vld [vmem:[#allocation19 + $0x6d0] sm:$0xff]
    %v3918 = vld [vmem:[#allocation19 + $0x6d8] sm:$0xff]
    %v3919 = vld [vmem:[#allocation19 + $0x6e0] sm:$0xff]
    %v3920 = vld [vmem:[#allocation19 + $0x6e8] sm:$0xff]
    %v3921 = vld [vmem:[#allocation19 + $0x6f0] sm:$0xff]
    %v3922 = vld [vmem:[#allocation19 + $0x6f8] sm:$0xff]
    %v3923 = vld [vmem:[#allocation19 + $0x700] sm:$0xff]
    %v3924 = vld [vmem:[#allocation19 + $0x708] sm:$0xff]
    %v3925 = vld [vmem:[#allocation19 + $0x710] sm:$0xff]
    %v3926 = vld [vmem:[#allocation19 + $0x718] sm:$0xff]
    %v3927 = vld [vmem:[#allocation19 + $0x720] sm:$0xff]
    %v3928 = vld [vmem:[#allocation19 + $0x728] sm:$0xff]
    %v3929 = vld [vmem:[#allocation19 + $0x730] sm:$0xff]
    %v3930 = vld [vmem:[#allocation19 + $0x738] sm:$0xff]
    %v3931 = vld [vmem:[#allocation19 + $0x740] sm:$0xff]
    %v3932 = vld [vmem:[#allocation19 + $0x748] sm:$0xff]
    %v3933 = vld [vmem:[#allocation19 + $0x750] sm:$0xff]
    %v3934 = vld [vmem:[#allocation19 + $0x758] sm:$0xff]
    %v3935 = vld [vmem:[#allocation19 + $0x760] sm:$0xff]
    %v3936 = vld [vmem:[#allocation19 + $0x768] sm:$0xff]
    %v3937 = vld [vmem:[#allocation19 + $0x770] sm:$0xff]
    %v3938 = vld [vmem:[#allocation19 + $0x778] sm:$0xff]
    %v3939 = vld [vmem:[#allocation19 + $0x780] sm:$0xff]
    %v3940 = vld [vmem:[#allocation19 + $0x788] sm:$0xff]
    %v3941 = vld [vmem:[#allocation19 + $0x790] sm:$0xff]
    %v3942 = vld [vmem:[#allocation19 + $0x798] sm:$0xff]
    %v3943 = vld [vmem:[#allocation19 + $0x7a0] sm:$0xff]
    %v3944 = vld [vmem:[#allocation19 + $0x7a8] sm:$0xff]
    %v3945 = vld [vmem:[#allocation19 + $0x7b0] sm:$0xff]
    %v3946 = vld [vmem:[#allocation19 + $0x7b8] sm:$0xff]
    %v3947 = vld [vmem:[#allocation19 + $0x7c0] sm:$0xff]
    %v3948 = vld [vmem:[#allocation19 + $0x7c8] sm:$0xff]
    %v3949 = vld [vmem:[#allocation19 + $0x7d0] sm:$0xff]
    %v3950 = vld [vmem:[#allocation19 + $0x7d8] sm:$0xff]
    %v3951 = vld [vmem:[#allocation19 + $0x7e0] sm:$0xff]
    %v3952 = vld [vmem:[#allocation19 + $0x7e8] sm:$0xff]
    %v3953 = vld [vmem:[#allocation19 + $0x7f0] sm:$0xff]
    %v3954 = vld [vmem:[#allocation19 + $0x7f8] sm:$0xff]
    %v3955 = vld [vmem:[#allocation19 + $0x800] sm:$0xff]
    %v3956 = vld [vmem:[#allocation19 + $0x808] sm:$0xff]
    %v3957 = vld [vmem:[#allocation19 + $0x810] sm:$0xff]
    %v3958 = vld [vmem:[#allocation19 + $0x818] sm:$0xff]
    %v3959 = vld [vmem:[#allocation19 + $0x820] sm:$0xff]
    %v3960 = vld [vmem:[#allocation19 + $0x828] sm:$0xff]
    %v3961 = vld [vmem:[#allocation19 + $0x830] sm:$0xff]
    %v3962 = vld [vmem:[#allocation19 + $0x838] sm:$0xff]
    %v3963 = vld [vmem:[#allocation19 + $0x840] sm:$0xff]
    %v3964 = vld [vmem:[#allocation19 + $0x848] sm:$0xff]
    %v3965 = vld [vmem:[#allocation19 + $0x850] sm:$0xff]
    %v3966 = vld [vmem:[#allocation19 + $0x858] sm:$0xff]
    %v3967 = vld [vmem:[#allocation19 + $0x860] sm:$0xff]
    %v3968 = vld [vmem:[#allocation19 + $0x868] sm:$0xff]
    %v3969 = vld [vmem:[#allocation19 + $0x870] sm:$0xff]
    %v3970 = vld [vmem:[#allocation19 + $0x878] sm:$0xff]
    %v3971 = vld [vmem:[#allocation19 + $0x880] sm:$0xff]
    %v3972 = vld [vmem:[#allocation19 + $0x888] sm:$0xff]
    %v3973 = vld [vmem:[#allocation19 + $0x890] sm:$0xff]
    %v3974 = vld [vmem:[#allocation19 + $0x898] sm:$0xff]
    %v3975 = vld [vmem:[#allocation19 + $0x8a0] sm:$0xff]
    %v3976 = vld [vmem:[#allocation19 + $0x8a8] sm:$0xff]
    %v3977 = vld [vmem:[#allocation19 + $0x8b0] sm:$0xff]
    %v3978 = vld [vmem:[#allocation19 + $0x8b8] sm:$0xff]
    %v3979 = vld [vmem:[#allocation19 + $0x8c0] sm:$0xff]
    %v3980 = vld [vmem:[#allocation19 + $0x8c8] sm:$0xff]
    %v3981 = vld [vmem:[#allocation19 + $0x8d0] sm:$0xff]
    %v3982 = vld [vmem:[#allocation19 + $0x8d8] sm:$0xff]
    %v3983 = vld [vmem:[#allocation19 + $0x8e0] sm:$0xff]
    %v3984 = vld [vmem:[#allocation19 + $0x8e8] sm:$0xff]
    %v3985 = vld [vmem:[#allocation19 + $0x8f0] sm:$0xff]
    %v3986 = vld [vmem:[#allocation19 + $0x8f8] sm:$0xff]
    %v3987 = vld [vmem:[#allocation20] sm:$0x3f]
    %v3989 = vlaneseq
    %v3990 = vshrl.u32 %v3989, 7
    %v3991 = vsub.s32 0, %v3990
    %v3992 = vrot.slane %v3987, %v3991
    %v3993 = vlaneseq
    %v3994 = vshrl.u32 %v3993, 7
    %v3995 = vsub.s32 1, %v3994
    %v3996 = vrot.slane %v3987, %v3995
    %v3997 = vlaneseq
    %v3998 = vshrl.u32 %v3997, 7
    %v3999 = vsub.s32 2, %v3998
    %v4000 = vrot.slane %v3987, %v3999
    %v4001 = vlaneseq
    %v4002 = vshrl.u32 %v4001, 7
    %v4003 = vsub.s32 3, %v4002
    %v4004 = vrot.slane %v3987, %v4003
    %v4005 = vlaneseq
    %v4006 = vshrl.u32 %v4005, 7
    %v4007 = vsub.s32 4, %v4006
    %v4008 = vrot.slane %v3987, %v4007
    %v4009 = vlaneseq
    %v4010 = vshrl.u32 %v4009, 7
    %v4011 = vsub.s32 5, %v4010
    %v4012 = vrot.slane %v3987, %v4011
    %v4307 = vunpack.c.l.b16 %v3699
    %v4308 = vunpack.c.h.b16 %v3699
    %v4309 = vunpack.c.l.b16 %v3700
    %v4310 = vunpack.c.h.b16 %v3700
    %v4311 = vunpack.c.l.b16 %v3701
    %v4312 = vunpack.c.h.b16 %v3701
    %v4313 = vunpack.c.l.b16 %v3702
    %v4314 = vunpack.c.h.b16 %v3702
    %v4315 = vunpack.c.l.b16 %v3703
    %v4316 = vunpack.c.h.b16 %v3703
    %v4317 = vunpack.c.l.b16 %v3704
    %v4318 = vunpack.c.h.b16 %v3704
    %v4319 = vunpack.c.l.b16 %v3705
    %v4320 = vunpack.c.h.b16 %v3705
    %v4321 = vunpack.c.l.b16 %v3706
    %v4322 = vunpack.c.h.b16 %v3706
    %v4323 = vunpack.c.l.b16 %v3707
    %v4324 = vunpack.c.h.b16 %v3707
    %v4325 = vunpack.c.l.b16 %v3708
    %v4326 = vunpack.c.h.b16 %v3708
    %v4327 = vunpack.c.l.b16 %v3709
    %v4328 = vunpack.c.h.b16 %v3709
    %v4329 = vunpack.c.l.b16 %v3710
    %v4330 = vunpack.c.h.b16 %v3710
    %v4331 = vunpack.c.l.b16 %v3711
    %v4332 = vunpack.c.h.b16 %v3711
    %v4333 = vunpack.c.l.b16 %v3712
    %v4334 = vunpack.c.h.b16 %v3712
    %v4335 = vunpack.c.l.b16 %v3713
    %v4336 = vunpack.c.h.b16 %v3713
    %v4337 = vunpack.c.l.b16 %v3714
    %v4338 = vunpack.c.h.b16 %v3714
    %v4339 = vunpack.c.l.b16 %v3715
    %v4340 = vunpack.c.h.b16 %v3715
    %v4341 = vunpack.c.l.b16 %v3716
    %v4342 = vunpack.c.h.b16 %v3716
    %v4343 = vunpack.c.l.b16 %v3717
    %v4344 = vunpack.c.h.b16 %v3717
    %v4345 = vunpack.c.l.b16 %v3718
    %v4346 = vunpack.c.h.b16 %v3718
    %v4347 = vunpack.c.l.b16 %v3719
    %v4348 = vunpack.c.h.b16 %v3719
    %v4349 = vunpack.c.l.b16 %v3720
    %v4350 = vunpack.c.h.b16 %v3720
    %v4351 = vunpack.c.l.b16 %v3721
    %v4352 = vunpack.c.h.b16 %v3721
    %v4353 = vunpack.c.l.b16 %v3722
    %v4354 = vunpack.c.h.b16 %v3722
    %v4355 = vunpack.c.l.b16 %v3723
    %v4356 = vunpack.c.h.b16 %v3723
    %v4357 = vunpack.c.l.b16 %v3724
    %v4358 = vunpack.c.h.b16 %v3724
    %v4359 = vunpack.c.l.b16 %v3725
    %v4360 = vunpack.c.h.b16 %v3725
    %v4361 = vunpack.c.l.b16 %v3726
    %v4362 = vunpack.c.h.b16 %v3726
    %v4363 = vunpack.c.l.b16 %v3727
    %v4364 = vunpack.c.h.b16 %v3727
    %v4365 = vunpack.c.l.b16 %v3728
    %v4366 = vunpack.c.h.b16 %v3728
    %v4367 = vunpack.c.l.b16 %v3729
    %v4368 = vunpack.c.h.b16 %v3729
    %v4369 = vunpack.c.l.b16 %v3730
    %v4370 = vunpack.c.h.b16 %v3730
    %v4371 = vunpack.c.l.b16 %v3731
    %v4372 = vunpack.c.h.b16 %v3731
    %v4373 = vunpack.c.l.b16 %v3732
    %v4374 = vunpack.c.h.b16 %v3732
    %v4375 = vunpack.c.l.b16 %v3733
    %v4376 = vunpack.c.h.b16 %v3733
    %v4377 = vunpack.c.l.b16 %v3734
    %v4378 = vunpack.c.h.b16 %v3734
    %v4379 = vunpack.c.l.b16 %v3735
    %v4380 = vunpack.c.h.b16 %v3735
    %v4381 = vunpack.c.l.b16 %v3736
    %v4382 = vunpack.c.h.b16 %v3736
    %v4383 = vunpack.c.l.b16 %v3737
    %v4384 = vunpack.c.h.b16 %v3737
    %v4385 = vunpack.c.l.b16 %v3738
    %v4386 = vunpack.c.h.b16 %v3738
    %v4387 = vunpack.c.l.b16 %v3739
    %v4388 = vunpack.c.h.b16 %v3739
    %v4389 = vunpack.c.l.b16 %v3740
    %v4390 = vunpack.c.h.b16 %v3740
    %v4391 = vunpack.c.l.b16 %v3741
    %v4392 = vunpack.c.h.b16 %v3741
    %v4393 = vunpack.c.l.b16 %v3742
    %v4394 = vunpack.c.h.b16 %v3742
    %v4395 = vunpack.c.l.b16 %v3743
    %v4396 = vunpack.c.h.b16 %v3743
    %v4397 = vunpack.c.l.b16 %v3744
    %v4398 = vunpack.c.h.b16 %v3744
    %v4399 = vunpack.c.l.b16 %v3745
    %v4400 = vunpack.c.h.b16 %v3745
    %v4401 = vunpack.c.l.b16 %v3746
    %v4402 = vunpack.c.h.b16 %v3746
    %v4403 = vunpack.c.l.b16 %v3747
    %v4404 = vunpack.c.h.b16 %v3747
    %v4405 = vunpack.c.l.b16 %v3748
    %v4406 = vunpack.c.h.b16 %v3748
    %v4407 = vunpack.c.l.b16 %v3749
    %v4408 = vunpack.c.h.b16 %v3749
    %v4409 = vunpack.c.l.b16 %v3750
    %v4410 = vunpack.c.h.b16 %v3750
    %v4411 = vunpack.c.l.b16 %v3751
    %v4412 = vunpack.c.h.b16 %v3751
    %v4413 = vunpack.c.l.b16 %v3752
    %v4414 = vunpack.c.h.b16 %v3752
    %v4415 = vunpack.c.l.b16 %v3753
    %v4416 = vunpack.c.h.b16 %v3753
    %v4417 = vunpack.c.l.b16 %v3754
    %v4418 = vunpack.c.h.b16 %v3754
    %v4419 = vunpack.c.l.b16 %v3755
    %v4420 = vunpack.c.h.b16 %v3755
    %v4421 = vunpack.c.l.b16 %v3756
    %v4422 = vunpack.c.h.b16 %v3756
    %v4423 = vunpack.c.l.b16 %v3757
    %v4424 = vunpack.c.h.b16 %v3757
    %v4425 = vunpack.c.l.b16 %v3758
    %v4426 = vunpack.c.h.b16 %v3758
    %v4427 = vunpack.c.l.b16 %v3759
    %v4428 = vunpack.c.h.b16 %v3759
    %v4429 = vunpack.c.l.b16 %v3760
    %v4430 = vunpack.c.h.b16 %v3760
    %v4431 = vunpack.c.l.b16 %v3761
    %v4432 = vunpack.c.h.b16 %v3761
    %v4433 = vunpack.c.l.b16 %v3762
    %v4434 = vunpack.c.h.b16 %v3762
    %v4435 = vunpack.c.l.b16 %v3763
    %v4436 = vunpack.c.h.b16 %v3763
    %v4437 = vunpack.c.l.b16 %v3764
    %v4438 = vunpack.c.h.b16 %v3764
    %v4439 = vunpack.c.l.b16 %v3765
    %v4440 = vunpack.c.h.b16 %v3765
    %v4441 = vunpack.c.l.b16 %v3766
    %v4442 = vunpack.c.h.b16 %v3766
    %v4443 = vunpack.c.l.b16 %v3767
    %v4444 = vunpack.c.h.b16 %v3767
    %v4445 = vunpack.c.l.b16 %v3768
    %v4446 = vunpack.c.h.b16 %v3768
    %v4447 = vunpack.c.l.b16 %v3769
    %v4448 = vunpack.c.h.b16 %v3769
    %v4449 = vunpack.c.l.b16 %v3770
    %v4450 = vunpack.c.h.b16 %v3770
    %v4451 = vunpack.c.l.b16 %v3771
    %v4452 = vunpack.c.h.b16 %v3771
    %v4453 = vunpack.c.l.b16 %v3772
    %v4454 = vunpack.c.h.b16 %v3772
    %v4455 = vunpack.c.l.b16 %v3773
    %v4456 = vunpack.c.h.b16 %v3773
    %v4457 = vunpack.c.l.b16 %v3774
    %v4458 = vunpack.c.h.b16 %v3774
    %v4459 = vunpack.c.l.b16 %v3775
    %v4460 = vunpack.c.h.b16 %v3775
    %v4461 = vunpack.c.l.b16 %v3776
    %v4462 = vunpack.c.h.b16 %v3776
    %v4463 = vunpack.c.l.b16 %v3777
    %v4464 = vunpack.c.h.b16 %v3777
    %v4465 = vunpack.c.l.b16 %v3778
    %v4466 = vunpack.c.h.b16 %v3778
    %v4467 = vunpack.c.l.b16 %v3779
    %v4468 = vunpack.c.h.b16 %v3779
    %v4469 = vunpack.c.l.b16 %v3780
    %v4470 = vunpack.c.h.b16 %v3780
    %v4471 = vunpack.c.l.b16 %v3781
    %v4472 = vunpack.c.h.b16 %v3781
    %v4473 = vunpack.c.l.b16 %v3782
    %v4474 = vunpack.c.h.b16 %v3782
    %v4475 = vunpack.c.l.b16 %v3783
    %v4476 = vunpack.c.h.b16 %v3783
    %v4477 = vunpack.c.l.b16 %v3784
    %v4478 = vunpack.c.h.b16 %v3784
    %v4479 = vunpack.c.l.b16 %v3785
    %v4480 = vunpack.c.h.b16 %v3785
    %v4481 = vunpack.c.l.b16 %v3786
    %v4482 = vunpack.c.h.b16 %v3786
    %v4483 = vunpack.c.l.b16 %v3787
    %v4484 = vunpack.c.h.b16 %v3787
    %v4485 = vunpack.c.l.b16 %v3788
    %v4486 = vunpack.c.h.b16 %v3788
    %v4487 = vunpack.c.l.b16 %v3789
    %v4488 = vunpack.c.h.b16 %v3789
    %v4489 = vunpack.c.l.b16 %v3790
    %v4490 = vunpack.c.h.b16 %v3790
    %v4491 = vunpack.c.l.b16 %v3791
    %v4492 = vunpack.c.h.b16 %v3791
    %v4493 = vunpack.c.l.b16 %v3792
    %v4494 = vunpack.c.h.b16 %v3792
    %v4495 = vunpack.c.l.b16 %v3793
    %v4496 = vunpack.c.h.b16 %v3793
    %v4497 = vunpack.c.l.b16 %v3794
    %v4498 = vunpack.c.h.b16 %v3794
    %v4499 = vunpack.c.l.b16 %v3795
    %v4500 = vunpack.c.h.b16 %v3795
    %v4501 = vunpack.c.l.b16 %v3796
    %v4502 = vunpack.c.h.b16 %v3796
    %v4503 = vunpack.c.l.b16 %v3797
    %v4504 = vunpack.c.h.b16 %v3797
    %v4505 = vunpack.c.l.b16 %v3798
    %v4506 = vunpack.c.h.b16 %v3798
    %v4507 = vunpack.c.l.b16 %v3799
    %v4508 = vunpack.c.h.b16 %v3799
    %v4509 = vunpack.c.l.b16 %v3800
    %v4510 = vunpack.c.h.b16 %v3800
    %v4511 = vunpack.c.l.b16 %v3801
    %v4512 = vunpack.c.h.b16 %v3801
    %v4513 = vunpack.c.l.b16 %v3802
    %v4514 = vunpack.c.h.b16 %v3802
    %v4515 = vunpack.c.l.b16 %v3803
    %v4516 = vunpack.c.h.b16 %v3803
    %v4517 = vunpack.c.l.b16 %v3804
    %v4518 = vunpack.c.h.b16 %v3804
    %v4519 = vunpack.c.l.b16 %v3805
    %v4520 = vunpack.c.h.b16 %v3805
    %v4521 = vunpack.c.l.b16 %v3806
    %v4522 = vunpack.c.h.b16 %v3806
    %v4523 = vunpack.c.l.b16 %v3807
    %v4524 = vunpack.c.h.b16 %v3807
    %v4525 = vunpack.c.l.b16 %v3808
    %v4526 = vunpack.c.h.b16 %v3808
    %v4527 = vunpack.c.l.b16 %v3809
    %v4528 = vunpack.c.h.b16 %v3809
    %v4529 = vunpack.c.l.b16 %v3810
    %v4530 = vunpack.c.h.b16 %v3810
    %v4531 = vunpack.c.l.b16 %v3811
    %v4532 = vunpack.c.h.b16 %v3811
    %v4533 = vunpack.c.l.b16 %v3812
    %v4534 = vunpack.c.h.b16 %v3812
    %v4535 = vunpack.c.l.b16 %v3813
    %v4536 = vunpack.c.h.b16 %v3813
    %v4537 = vunpack.c.l.b16 %v3814
    %v4538 = vunpack.c.h.b16 %v3814
    %v4539 = vunpack.c.l.b16 %v3815
    %v4540 = vunpack.c.h.b16 %v3815
    %v4541 = vunpack.c.l.b16 %v3816
    %v4542 = vunpack.c.h.b16 %v3816
    %v4543 = vunpack.c.l.b16 %v3817
    %v4544 = vunpack.c.h.b16 %v3817
    %v4545 = vunpack.c.l.b16 %v3818
    %v4546 = vunpack.c.h.b16 %v3818
    %v4547 = vunpack.c.l.b16 %v3819
    %v4548 = vunpack.c.h.b16 %v3819
    %v4549 = vunpack.c.l.b16 %v3820
    %v4550 = vunpack.c.h.b16 %v3820
    %v4551 = vunpack.c.l.b16 %v3821
    %v4552 = vunpack.c.h.b16 %v3821
    %v4553 = vunpack.c.l.b16 %v3822
    %v4554 = vunpack.c.h.b16 %v3822
    %v4555 = vunpack.c.l.b16 %v3823
    %v4556 = vunpack.c.h.b16 %v3823
    %v4557 = vunpack.c.l.b16 %v3824
    %v4558 = vunpack.c.h.b16 %v3824
    %v4559 = vunpack.c.l.b16 %v3825
    %v4560 = vunpack.c.h.b16 %v3825
    %v4561 = vunpack.c.l.b16 %v3826
    %v4562 = vunpack.c.h.b16 %v3826
    %v4563 = vunpack.c.l.b16 %v3827
    %v4564 = vunpack.c.h.b16 %v3827
    %v4565 = vunpack.c.l.b16 %v3828
    %v4566 = vunpack.c.h.b16 %v3828
    %v4567 = vunpack.c.l.b16 %v3829
    %v4568 = vunpack.c.h.b16 %v3829
    %v4569 = vunpack.c.l.b16 %v3830
    %v4570 = vunpack.c.h.b16 %v3830
    %v4571 = vunpack.c.l.b16 %v3831
    %v4572 = vunpack.c.h.b16 %v3831
    %v4573 = vunpack.c.l.b16 %v3832
    %v4574 = vunpack.c.h.b16 %v3832
    %v4575 = vunpack.c.l.b16 %v3833
    %v4576 = vunpack.c.h.b16 %v3833
    %v4577 = vunpack.c.l.b16 %v3834
    %v4578 = vunpack.c.h.b16 %v3834
    %v4579 = vunpack.c.l.b16 %v3835
    %v4580 = vunpack.c.h.b16 %v3835
    %v4581 = vunpack.c.l.b16 %v3836
    %v4582 = vunpack.c.h.b16 %v3836
    %v4583 = vunpack.c.l.b16 %v3837
    %v4584 = vunpack.c.h.b16 %v3837
    %v4585 = vunpack.c.l.b16 %v3838
    %v4586 = vunpack.c.h.b16 %v3838
    %v4587 = vunpack.c.l.b16 %v3839
    %v4588 = vunpack.c.h.b16 %v3839
    %v4589 = vunpack.c.l.b16 %v3840
    %v4590 = vunpack.c.h.b16 %v3840
    %v4591 = vunpack.c.l.b16 %v3841
    %v4592 = vunpack.c.h.b16 %v3841
    %v4593 = vunpack.c.l.b16 %v3842
    %v4594 = vunpack.c.h.b16 %v3842
    %v4595 = vunpack.c.l.b16 %v3843
    %v4596 = vunpack.c.h.b16 %v3843
    %v4597 = vunpack.c.l.b16 %v3844
    %v4598 = vunpack.c.h.b16 %v3844
    %v4599 = vunpack.c.l.b16 %v3845
    %v4600 = vunpack.c.h.b16 %v3845
    %v4601 = vunpack.c.l.b16 %v3846
    %v4602 = vunpack.c.h.b16 %v3846
    %v4603 = vunpack.c.l.b16 %v3847
    %v4604 = vunpack.c.h.b16 %v3847
    %v4605 = vunpack.c.l.b16 %v3848
    %v4606 = vunpack.c.h.b16 %v3848
    %v4607 = vunpack.c.l.b16 %v3849
    %v4608 = vunpack.c.h.b16 %v3849
    %v4609 = vunpack.c.l.b16 %v3850
    %v4610 = vunpack.c.h.b16 %v3850
    %v4611 = vunpack.c.l.b16 %v3851
    %v4612 = vunpack.c.h.b16 %v3851
    %v4613 = vunpack.c.l.b16 %v3852
    %v4614 = vunpack.c.h.b16 %v3852
    %v4615 = vunpack.c.l.b16 %v3853
    %v4616 = vunpack.c.h.b16 %v3853
    %v4617 = vunpack.c.l.b16 %v3854
    %v4618 = vunpack.c.h.b16 %v3854
    %v4619 = vunpack.c.l.b16 %v3855
    %v4620 = vunpack.c.h.b16 %v3855
    %v4621 = vunpack.c.l.b16 %v3856
    %v4622 = vunpack.c.h.b16 %v3856
    %v4623 = vunpack.c.l.b16 %v3857
    %v4624 = vunpack.c.h.b16 %v3857
    %v4625 = vunpack.c.l.b16 %v3858
    %v4626 = vunpack.c.h.b16 %v3858
    %v4627 = vunpack.c.l.b16 %v3859
    %v4628 = vunpack.c.h.b16 %v3859
    %v4629 = vunpack.c.l.b16 %v3860
    %v4630 = vunpack.c.h.b16 %v3860
    %v4631 = vunpack.c.l.b16 %v3861
    %v4632 = vunpack.c.h.b16 %v3861
    %v4633 = vunpack.c.l.b16 %v3862
    %v4634 = vunpack.c.h.b16 %v3862
    %v4635 = vunpack.c.l.b16 %v3863
    %v4636 = vunpack.c.h.b16 %v3863
    %v4637 = vunpack.c.l.b16 %v3864
    %v4638 = vunpack.c.h.b16 %v3864
    %v4639 = vunpack.c.l.b16 %v3865
    %v4640 = vunpack.c.h.b16 %v3865
    %v4641 = vunpack.c.l.b16 %v3866
    %v4642 = vunpack.c.h.b16 %v3866
    %v4643 = vunpack.c.l.b16 %v3867
    %v4644 = vunpack.c.h.b16 %v3867
    %v4645 = vunpack.c.l.b16 %v3868
    %v4646 = vunpack.c.h.b16 %v3868
    %v4647 = vunpack.c.l.b16 %v3869
    %v4648 = vunpack.c.h.b16 %v3869
    %v4649 = vunpack.c.l.b16 %v3870
    %v4650 = vunpack.c.h.b16 %v3870
    %v4651 = vunpack.c.l.b16 %v3871
    %v4652 = vunpack.c.h.b16 %v3871
    %v4653 = vunpack.c.l.b16 %v3872
    %v4654 = vunpack.c.h.b16 %v3872
    %v4655 = vunpack.c.l.b16 %v3873
    %v4656 = vunpack.c.h.b16 %v3873
    %v4657 = vunpack.c.l.b16 %v3874
    %v4658 = vunpack.c.h.b16 %v3874
    %v4659 = vunpack.c.l.b16 %v3875
    %v4660 = vunpack.c.h.b16 %v3875
    %v4661 = vunpack.c.l.b16 %v3876
    %v4662 = vunpack.c.h.b16 %v3876
    %v4663 = vunpack.c.l.b16 %v3877
    %v4664 = vunpack.c.h.b16 %v3877
    %v4665 = vunpack.c.l.b16 %v3878
    %v4666 = vunpack.c.h.b16 %v3878
    %v4667 = vunpack.c.l.b16 %v3879
    %v4668 = vunpack.c.h.b16 %v3879
    %v4669 = vunpack.c.l.b16 %v3880
    %v4670 = vunpack.c.h.b16 %v3880
    %v4671 = vunpack.c.l.b16 %v3881
    %v4672 = vunpack.c.h.b16 %v3881
    %v4673 = vunpack.c.l.b16 %v3882
    %v4674 = vunpack.c.h.b16 %v3882
    %v4675 = vunpack.c.l.b16 %v3883
    %v4676 = vunpack.c.h.b16 %v3883
    %v4677 = vunpack.c.l.b16 %v3884
    %v4678 = vunpack.c.h.b16 %v3884
    %v4679 = vunpack.c.l.b16 %v3885
    %v4680 = vunpack.c.h.b16 %v3885
    %v4681 = vunpack.c.l.b16 %v3886
    %v4682 = vunpack.c.h.b16 %v3886
    %v4683 = vunpack.c.l.b16 %v3887
    %v4684 = vunpack.c.h.b16 %v3887
    %v4685 = vunpack.c.l.b16 %v3888
    %v4686 = vunpack.c.h.b16 %v3888
    %v4687 = vunpack.c.l.b16 %v3889
    %v4688 = vunpack.c.h.b16 %v3889
    %v4689 = vunpack.c.l.b16 %v3890
    %v4690 = vunpack.c.h.b16 %v3890
    %v4691 = vunpack.c.l.b16 %v3891
    %v4692 = vunpack.c.h.b16 %v3891
    %v4693 = vunpack.c.l.b16 %v3892
    %v4694 = vunpack.c.h.b16 %v3892
    %v4695 = vunpack.c.l.b16 %v3893
    %v4696 = vunpack.c.h.b16 %v3893
    %v4697 = vunpack.c.l.b16 %v3894
    %v4698 = vunpack.c.h.b16 %v3894
    %v4699 = vunpack.c.l.b16 %v3895
    %v4700 = vunpack.c.h.b16 %v3895
    %v4701 = vunpack.c.l.b16 %v3896
    %v4702 = vunpack.c.h.b16 %v3896
    %v4703 = vunpack.c.l.b16 %v3897
    %v4704 = vunpack.c.h.b16 %v3897
    %v4705 = vunpack.c.l.b16 %v3898
    %v4706 = vunpack.c.h.b16 %v3898
    %v4707 = vunpack.c.l.b16 %v3899
    %v4708 = vunpack.c.h.b16 %v3899
    %v4709 = vunpack.c.l.b16 %v3900
    %v4710 = vunpack.c.h.b16 %v3900
    %v4711 = vunpack.c.l.b16 %v3901
    %v4712 = vunpack.c.h.b16 %v3901
    %v4713 = vunpack.c.l.b16 %v3902
    %v4714 = vunpack.c.h.b16 %v3902
    %v4715 = vunpack.c.l.b16 %v3903
    %v4716 = vunpack.c.h.b16 %v3903
    %v4717 = vunpack.c.l.b16 %v3904
    %v4718 = vunpack.c.h.b16 %v3904
    %v4719 = vunpack.c.l.b16 %v3905
    %v4720 = vunpack.c.h.b16 %v3905
    %v4721 = vunpack.c.l.b16 %v3906
    %v4722 = vunpack.c.h.b16 %v3906
    %v4723 = vunpack.c.l.b16 %v3907
    %v4724 = vunpack.c.h.b16 %v3907
    %v4725 = vunpack.c.l.b16 %v3908
    %v4726 = vunpack.c.h.b16 %v3908
    %v4727 = vunpack.c.l.b16 %v3909
    %v4728 = vunpack.c.h.b16 %v3909
    %v4729 = vunpack.c.l.b16 %v3910
    %v4730 = vunpack.c.h.b16 %v3910
    %v4731 = vunpack.c.l.b16 %v3911
    %v4732 = vunpack.c.h.b16 %v3911
    %v4733 = vunpack.c.l.b16 %v3912
    %v4734 = vunpack.c.h.b16 %v3912
    %v4735 = vunpack.c.l.b16 %v3913
    %v4736 = vunpack.c.h.b16 %v3913
    %v4737 = vunpack.c.l.b16 %v3914
    %v4738 = vunpack.c.h.b16 %v3914
    %v4739 = vunpack.c.l.b16 %v3915
    %v4740 = vunpack.c.h.b16 %v3915
    %v4741 = vunpack.c.l.b16 %v3916
    %v4742 = vunpack.c.h.b16 %v3916
    %v4743 = vunpack.c.l.b16 %v3917
    %v4744 = vunpack.c.h.b16 %v3917
    %v4745 = vunpack.c.l.b16 %v3918
    %v4746 = vunpack.c.h.b16 %v3918
    %v4747 = vunpack.c.l.b16 %v3919
    %v4748 = vunpack.c.h.b16 %v3919
    %v4749 = vunpack.c.l.b16 %v3920
    %v4750 = vunpack.c.h.b16 %v3920
    %v4751 = vunpack.c.l.b16 %v3921
    %v4752 = vunpack.c.h.b16 %v3921
    %v4753 = vunpack.c.l.b16 %v3922
    %v4754 = vunpack.c.h.b16 %v3922
    %v4755 = vunpack.c.l.b16 %v3923
    %v4756 = vunpack.c.h.b16 %v3923
    %v4757 = vunpack.c.l.b16 %v3924
    %v4758 = vunpack.c.h.b16 %v3924
    %v4759 = vunpack.c.l.b16 %v3925
    %v4760 = vunpack.c.h.b16 %v3925
    %v4761 = vunpack.c.l.b16 %v3926
    %v4762 = vunpack.c.h.b16 %v3926
    %v4763 = vunpack.c.l.b16 %v3927
    %v4764 = vunpack.c.h.b16 %v3927
    %v4765 = vunpack.c.l.b16 %v3928
    %v4766 = vunpack.c.h.b16 %v3928
    %v4767 = vunpack.c.l.b16 %v3929
    %v4768 = vunpack.c.h.b16 %v3929
    %v4769 = vunpack.c.l.b16 %v3930
    %v4770 = vunpack.c.h.b16 %v3930
    %v4771 = vunpack.c.l.b16 %v3931
    %v4772 = vunpack.c.h.b16 %v3931
    %v4773 = vunpack.c.l.b16 %v3932
    %v4774 = vunpack.c.h.b16 %v3932
    %v4775 = vunpack.c.l.b16 %v3933
    %v4776 = vunpack.c.h.b16 %v3933
    %v4777 = vunpack.c.l.b16 %v3934
    %v4778 = vunpack.c.h.b16 %v3934
    %v4779 = vunpack.c.l.b16 %v3935
    %v4780 = vunpack.c.h.b16 %v3935
    %v4781 = vunpack.c.l.b16 %v3936
    %v4782 = vunpack.c.h.b16 %v3936
    %v4783 = vunpack.c.l.b16 %v3937
    %v4784 = vunpack.c.h.b16 %v3937
    %v4785 = vunpack.c.l.b16 %v3938
    %v4786 = vunpack.c.h.b16 %v3938
    %v4787 = vunpack.c.l.b16 %v3939
    %v4788 = vunpack.c.h.b16 %v3939
    %v4789 = vunpack.c.l.b16 %v3940
    %v4790 = vunpack.c.h.b16 %v3940
    %v4791 = vunpack.c.l.b16 %v3941
    %v4792 = vunpack.c.h.b16 %v3941
    %v4793 = vunpack.c.l.b16 %v3942
    %v4794 = vunpack.c.h.b16 %v3942
    %v4795 = vunpack.c.l.b16 %v3943
    %v4796 = vunpack.c.h.b16 %v3943
    %v4797 = vunpack.c.l.b16 %v3944
    %v4798 = vunpack.c.h.b16 %v3944
    %v4799 = vunpack.c.l.b16 %v3945
    %v4800 = vunpack.c.h.b16 %v3945
    %v4801 = vunpack.c.l.b16 %v3946
    %v4802 = vunpack.c.h.b16 %v3946
    %v4803 = vunpack.c.l.b16 %v3947
    %v4804 = vunpack.c.h.b16 %v3947
    %v4805 = vunpack.c.l.b16 %v3948
    %v4806 = vunpack.c.h.b16 %v3948
    %v4807 = vunpack.c.l.b16 %v3949
    %v4808 = vunpack.c.h.b16 %v3949
    %v4809 = vunpack.c.l.b16 %v3950
    %v4810 = vunpack.c.h.b16 %v3950
    %v4811 = vunpack.c.l.b16 %v3951
    %v4812 = vunpack.c.h.b16 %v3951
    %v4813 = vunpack.c.l.b16 %v3952
    %v4814 = vunpack.c.h.b16 %v3952
    %v4815 = vunpack.c.l.b16 %v3953
    %v4816 = vunpack.c.h.b16 %v3953
    %v4817 = vunpack.c.l.b16 %v3954
    %v4818 = vunpack.c.h.b16 %v3954
    %v4819 = vunpack.c.l.b16 %v3955
    %v4820 = vunpack.c.h.b16 %v3955
    %v4821 = vunpack.c.l.b16 %v3956
    %v4822 = vunpack.c.h.b16 %v3956
    %v4823 = vunpack.c.l.b16 %v3957
    %v4824 = vunpack.c.h.b16 %v3957
    %v4825 = vunpack.c.l.b16 %v3958
    %v4826 = vunpack.c.h.b16 %v3958
    %v4827 = vunpack.c.l.b16 %v3959
    %v4828 = vunpack.c.h.b16 %v3959
    %v4829 = vunpack.c.l.b16 %v3960
    %v4830 = vunpack.c.h.b16 %v3960
    %v4831 = vunpack.c.l.b16 %v3961
    %v4832 = vunpack.c.h.b16 %v3961
    %v4833 = vunpack.c.l.b16 %v3962
    %v4834 = vunpack.c.h.b16 %v3962
    %v4835 = vunpack.c.l.b16 %v3963
    %v4836 = vunpack.c.h.b16 %v3963
    %v4837 = vunpack.c.l.b16 %v3964
    %v4838 = vunpack.c.h.b16 %v3964
    %v4839 = vunpack.c.l.b16 %v3965
    %v4840 = vunpack.c.h.b16 %v3965
    %v4841 = vunpack.c.l.b16 %v3966
    %v4842 = vunpack.c.h.b16 %v3966
    %v4843 = vunpack.c.l.b16 %v3967
    %v4844 = vunpack.c.h.b16 %v3967
    %v4845 = vunpack.c.l.b16 %v3968
    %v4846 = vunpack.c.h.b16 %v3968
    %v4847 = vunpack.c.l.b16 %v3969
    %v4848 = vunpack.c.h.b16 %v3969
    %v4849 = vunpack.c.l.b16 %v3970
    %v4850 = vunpack.c.h.b16 %v3970
    %v4851 = vunpack.c.l.b16 %v3971
    %v4852 = vunpack.c.h.b16 %v3971
    %v4853 = vunpack.c.l.b16 %v3972
    %v4854 = vunpack.c.h.b16 %v3972
    %v4855 = vunpack.c.l.b16 %v3973
    %v4856 = vunpack.c.h.b16 %v3973
    %v4857 = vunpack.c.l.b16 %v3974
    %v4858 = vunpack.c.h.b16 %v3974
    %v4859 = vunpack.c.l.b16 %v3975
    %v4860 = vunpack.c.h.b16 %v3975
    %v4861 = vunpack.c.l.b16 %v3976
    %v4862 = vunpack.c.h.b16 %v3976
    %v4863 = vunpack.c.l.b16 %v3977
    %v4864 = vunpack.c.h.b16 %v3977
    %v4865 = vunpack.c.l.b16 %v3978
    %v4866 = vunpack.c.h.b16 %v3978
    %v4867 = vunpack.c.l.b16 %v3979
    %v4868 = vunpack.c.h.b16 %v3979
    %v4869 = vunpack.c.l.b16 %v3980
    %v4870 = vunpack.c.h.b16 %v3980
    %v4871 = vunpack.c.l.b16 %v3981
    %v4872 = vunpack.c.h.b16 %v3981
    %v4873 = vunpack.c.l.b16 %v3982
    %v4874 = vunpack.c.h.b16 %v3982
    %v4875 = vunpack.c.l.b16 %v3983
    %v4876 = vunpack.c.h.b16 %v3983
    %v4877 = vunpack.c.l.b16 %v3984
    %v4878 = vunpack.c.h.b16 %v3984
    %v4879 = vunpack.c.l.b16 %v3985
    %v4880 = vunpack.c.h.b16 %v3985
    %v4881 = vunpack.c.l.b16 %v3986
    %v4882 = vunpack.c.h.b16 %v3986
    %v4883 = vpack.c.b16 %v4313, %v4307
    %v4884 = vpack.c.b16 %v4314, %v4308
    %v4885 = vpack.c.b16 %v4315, %v4309
    %v4886 = vpack.c.b16 %v4316, %v4310
    %v4887 = vpack.c.b16 %v4317, %v4311
    %v4888 = vpack.c.b16 %v4318, %v4312
    %v4889 = vpack.c.b16 %v4325, %v4319
    %v4890 = vpack.c.b16 %v4326, %v4320
    %v4891 = vpack.c.b16 %v4327, %v4321
    %v4892 = vpack.c.b16 %v4328, %v4322
    %v4893 = vpack.c.b16 %v4329, %v4323
    %v4894 = vpack.c.b16 %v4330, %v4324
    %v4895 = vpack.c.b16 %v4337, %v4331
    %v4896 = vpack.c.b16 %v4338, %v4332
    %v4897 = vpack.c.b16 %v4339, %v4333
    %v4898 = vpack.c.b16 %v4340, %v4334
    %v4899 = vpack.c.b16 %v4341, %v4335
    %v4900 = vpack.c.b16 %v4342, %v4336
    %v4901 = vpack.c.b16 %v4349, %v4343
    %v4902 = vpack.c.b16 %v4350, %v4344
    %v4903 = vpack.c.b16 %v4351, %v4345
    %v4904 = vpack.c.b16 %v4352, %v4346
    %v4905 = vpack.c.b16 %v4353, %v4347
    %v4906 = vpack.c.b16 %v4354, %v4348
    %v4907 = vpack.c.b16 %v4361, %v4355
    %v4908 = vpack.c.b16 %v4362, %v4356
    %v4909 = vpack.c.b16 %v4363, %v4357
    %v4910 = vpack.c.b16 %v4364, %v4358
    %v4911 = vpack.c.b16 %v4365, %v4359
    %v4912 = vpack.c.b16 %v4366, %v4360
    %v4913 = vpack.c.b16 %v4373, %v4367
    %v4914 = vpack.c.b16 %v4374, %v4368
    %v4915 = vpack.c.b16 %v4375, %v4369
    %v4916 = vpack.c.b16 %v4376, %v4370
    %v4917 = vpack.c.b16 %v4377, %v4371
    %v4918 = vpack.c.b16 %v4378, %v4372
    %v4919 = vpack.c.b16 %v4385, %v4379
    %v4920 = vpack.c.b16 %v4386, %v4380
    %v4921 = vpack.c.b16 %v4387, %v4381
    %v4922 = vpack.c.b16 %v4388, %v4382
    %v4923 = vpack.c.b16 %v4389, %v4383
    %v4924 = vpack.c.b16 %v4390, %v4384
    %v4925 = vpack.c.b16 %v4397, %v4391
    %v4926 = vpack.c.b16 %v4398, %v4392
    %v4927 = vpack.c.b16 %v4399, %v4393
    %v4928 = vpack.c.b16 %v4400, %v4394
    %v4929 = vpack.c.b16 %v4401, %v4395
    %v4930 = vpack.c.b16 %v4402, %v4396
    %v4931 = vpack.c.b16 %v4409, %v4403
    %v4932 = vpack.c.b16 %v4410, %v4404
    %v4933 = vpack.c.b16 %v4411, %v4405
    %v4934 = vpack.c.b16 %v4412, %v4406
    %v4935 = vpack.c.b16 %v4413, %v4407
    %v4936 = vpack.c.b16 %v4414, %v4408
    %v4937 = vpack.c.b16 %v4421, %v4415
    %v4938 = vpack.c.b16 %v4422, %v4416
    %v4939 = vpack.c.b16 %v4423, %v4417
    %v4940 = vpack.c.b16 %v4424, %v4418
    %v4941 = vpack.c.b16 %v4425, %v4419
    %v4942 = vpack.c.b16 %v4426, %v4420
    %v4943 = vpack.c.b16 %v4433, %v4427
    %v4944 = vpack.c.b16 %v4434, %v4428
    %v4945 = vpack.c.b16 %v4435, %v4429
    %v4946 = vpack.c.b16 %v4436, %v4430
    %v4947 = vpack.c.b16 %v4437, %v4431
    %v4948 = vpack.c.b16 %v4438, %v4432
    %v4949 = vpack.c.b16 %v4445, %v4439
    %v4950 = vpack.c.b16 %v4446, %v4440
    %v4951 = vpack.c.b16 %v4447, %v4441
    %v4952 = vpack.c.b16 %v4448, %v4442
    %v4953 = vpack.c.b16 %v4449, %v4443
    %v4954 = vpack.c.b16 %v4450, %v4444
    %v4955 = vpack.c.b16 %v4457, %v4451
    %v4956 = vpack.c.b16 %v4458, %v4452
    %v4957 = vpack.c.b16 %v4459, %v4453
    %v4958 = vpack.c.b16 %v4460, %v4454
    %v4959 = vpack.c.b16 %v4461, %v4455
    %v4960 = vpack.c.b16 %v4462, %v4456
    %v4961 = vpack.c.b16 %v4469, %v4463
    %v4962 = vpack.c.b16 %v4470, %v4464
    %v4963 = vpack.c.b16 %v4471, %v4465
    %v4964 = vpack.c.b16 %v4472, %v4466
    %v4965 = vpack.c.b16 %v4473, %v4467
    %v4966 = vpack.c.b16 %v4474, %v4468
    %v4967 = vpack.c.b16 %v4481, %v4475
    %v4968 = vpack.c.b16 %v4482, %v4476
    %v4969 = vpack.c.b16 %v4483, %v4477
    %v4970 = vpack.c.b16 %v4484, %v4478
    %v4971 = vpack.c.b16 %v4485, %v4479
    %v4972 = vpack.c.b16 %v4486, %v4480
    %v4973 = vpack.c.b16 %v4493, %v4487
    %v4974 = vpack.c.b16 %v4494, %v4488
    %v4975 = vpack.c.b16 %v4495, %v4489
    %v4976 = vpack.c.b16 %v4496, %v4490
    %v4977 = vpack.c.b16 %v4497, %v4491
    %v4978 = vpack.c.b16 %v4498, %v4492
    %v4979 = vpack.c.b16 %v4505, %v4499
    %v4980 = vpack.c.b16 %v4506, %v4500
    %v4981 = vpack.c.b16 %v4507, %v4501
    %v4982 = vpack.c.b16 %v4508, %v4502
    %v4983 = vpack.c.b16 %v4509, %v4503
    %v4984 = vpack.c.b16 %v4510, %v4504
    %v4985 = vpack.c.b16 %v4517, %v4511
    %v4986 = vpack.c.b16 %v4518, %v4512
    %v4987 = vpack.c.b16 %v4519, %v4513
    %v4988 = vpack.c.b16 %v4520, %v4514
    %v4989 = vpack.c.b16 %v4521, %v4515
    %v4990 = vpack.c.b16 %v4522, %v4516
    %v4991 = vpack.c.b16 %v4529, %v4523
    %v4992 = vpack.c.b16 %v4530, %v4524
    %v4993 = vpack.c.b16 %v4531, %v4525
    %v4994 = vpack.c.b16 %v4532, %v4526
    %v4995 = vpack.c.b16 %v4533, %v4527
    %v4996 = vpack.c.b16 %v4534, %v4528
    %v4997 = vpack.c.b16 %v4541, %v4535
    %v4998 = vpack.c.b16 %v4542, %v4536
    %v4999 = vpack.c.b16 %v4543, %v4537
    %v5000 = vpack.c.b16 %v4544, %v4538
    %v5001 = vpack.c.b16 %v4545, %v4539
    %v5002 = vpack.c.b16 %v4546, %v4540
    %v5003 = vpack.c.b16 %v4553, %v4547
    %v5004 = vpack.c.b16 %v4554, %v4548
    %v5005 = vpack.c.b16 %v4555, %v4549
    %v5006 = vpack.c.b16 %v4556, %v4550
    %v5007 = vpack.c.b16 %v4557, %v4551
    %v5008 = vpack.c.b16 %v4558, %v4552
    %v5009 = vpack.c.b16 %v4565, %v4559
    %v5010 = vpack.c.b16 %v4566, %v4560
    %v5011 = vpack.c.b16 %v4567, %v4561
    %v5012 = vpack.c.b16 %v4568, %v4562
    %v5013 = vpack.c.b16 %v4569, %v4563
    %v5014 = vpack.c.b16 %v4570, %v4564
    %v5015 = vpack.c.b16 %v4577, %v4571
    %v5016 = vpack.c.b16 %v4578, %v4572
    %v5017 = vpack.c.b16 %v4579, %v4573
    %v5018 = vpack.c.b16 %v4580, %v4574
    %v5019 = vpack.c.b16 %v4581, %v4575
    %v5020 = vpack.c.b16 %v4582, %v4576
    %v5021 = vpack.c.b16 %v4589, %v4583
    %v5022 = vpack.c.b16 %v4590, %v4584
    %v5023 = vpack.c.b16 %v4591, %v4585
    %v5024 = vpack.c.b16 %v4592, %v4586
    %v5025 = vpack.c.b16 %v4593, %v4587
    %v5026 = vpack.c.b16 %v4594, %v4588
    %v5027 = vpack.c.b16 %v4601, %v4595
    %v5028 = vpack.c.b16 %v4602, %v4596
    %v5029 = vpack.c.b16 %v4603, %v4597
    %v5030 = vpack.c.b16 %v4604, %v4598
    %v5031 = vpack.c.b16 %v4605, %v4599
    %v5032 = vpack.c.b16 %v4606, %v4600
    %v5033 = vpack.c.b16 %v4613, %v4607
    %v5034 = vpack.c.b16 %v4614, %v4608
    %v5035 = vpack.c.b16 %v4615, %v4609
    %v5036 = vpack.c.b16 %v4616, %v4610
    %v5037 = vpack.c.b16 %v4617, %v4611
    %v5038 = vpack.c.b16 %v4618, %v4612
    %v5039 = vpack.c.b16 %v4625, %v4619
    %v5040 = vpack.c.b16 %v4626, %v4620
    %v5041 = vpack.c.b16 %v4627, %v4621
    %v5042 = vpack.c.b16 %v4628, %v4622
    %v5043 = vpack.c.b16 %v4629, %v4623
    %v5044 = vpack.c.b16 %v4630, %v4624
    %v5045 = vpack.c.b16 %v4637, %v4631
    %v5046 = vpack.c.b16 %v4638, %v4632
    %v5047 = vpack.c.b16 %v4639, %v4633
    %v5048 = vpack.c.b16 %v4640, %v4634
    %v5049 = vpack.c.b16 %v4641, %v4635
    %v5050 = vpack.c.b16 %v4642, %v4636
    %v5051 = vpack.c.b16 %v4649, %v4643
    %v5052 = vpack.c.b16 %v4650, %v4644
    %v5053 = vpack.c.b16 %v4651, %v4645
    %v5054 = vpack.c.b16 %v4652, %v4646
    %v5055 = vpack.c.b16 %v4653, %v4647
    %v5056 = vpack.c.b16 %v4654, %v4648
    %v5057 = vpack.c.b16 %v4661, %v4655
    %v5058 = vpack.c.b16 %v4662, %v4656
    %v5059 = vpack.c.b16 %v4663, %v4657
    %v5060 = vpack.c.b16 %v4664, %v4658
    %v5061 = vpack.c.b16 %v4665, %v4659
    %v5062 = vpack.c.b16 %v4666, %v4660
    %v5063 = vpack.c.b16 %v4673, %v4667
    %v5064 = vpack.c.b16 %v4674, %v4668
    %v5065 = vpack.c.b16 %v4675, %v4669
    %v5066 = vpack.c.b16 %v4676, %v4670
    %v5067 = vpack.c.b16 %v4677, %v4671
    %v5068 = vpack.c.b16 %v4678, %v4672
    %v5069 = vpack.c.b16 %v4685, %v4679
    %v5070 = vpack.c.b16 %v4686, %v4680
    %v5071 = vpack.c.b16 %v4687, %v4681
    %v5072 = vpack.c.b16 %v4688, %v4682
    %v5073 = vpack.c.b16 %v4689, %v4683
    %v5074 = vpack.c.b16 %v4690, %v4684
    %v5075 = vpack.c.b16 %v4697, %v4691
    %v5076 = vpack.c.b16 %v4698, %v4692
    %v5077 = vpack.c.b16 %v4699, %v4693
    %v5078 = vpack.c.b16 %v4700, %v4694
    %v5079 = vpack.c.b16 %v4701, %v4695
    %v5080 = vpack.c.b16 %v4702, %v4696
    %v5081 = vpack.c.b16 %v4709, %v4703
    %v5082 = vpack.c.b16 %v4710, %v4704
    %v5083 = vpack.c.b16 %v4711, %v4705
    %v5084 = vpack.c.b16 %v4712, %v4706
    %v5085 = vpack.c.b16 %v4713, %v4707
    %v5086 = vpack.c.b16 %v4714, %v4708
    %v5087 = vpack.c.b16 %v4721, %v4715
    %v5088 = vpack.c.b16 %v4722, %v4716
    %v5089 = vpack.c.b16 %v4723, %v4717
    %v5090 = vpack.c.b16 %v4724, %v4718
    %v5091 = vpack.c.b16 %v4725, %v4719
    %v5092 = vpack.c.b16 %v4726, %v4720
    %v5093 = vpack.c.b16 %v4733, %v4727
    %v5094 = vpack.c.b16 %v4734, %v4728
    %v5095 = vpack.c.b16 %v4735, %v4729
    %v5096 = vpack.c.b16 %v4736, %v4730
    %v5097 = vpack.c.b16 %v4737, %v4731
    %v5098 = vpack.c.b16 %v4738, %v4732
    %v5099 = vpack.c.b16 %v4745, %v4739
    %v5100 = vpack.c.b16 %v4746, %v4740
    %v5101 = vpack.c.b16 %v4747, %v4741
    %v5102 = vpack.c.b16 %v4748, %v4742
    %v5103 = vpack.c.b16 %v4749, %v4743
    %v5104 = vpack.c.b16 %v4750, %v4744
    %v5105 = vpack.c.b16 %v4757, %v4751
    %v5106 = vpack.c.b16 %v4758, %v4752
    %v5107 = vpack.c.b16 %v4759, %v4753
    %v5108 = vpack.c.b16 %v4760, %v4754
    %v5109 = vpack.c.b16 %v4761, %v4755
    %v5110 = vpack.c.b16 %v4762, %v4756
    %v5111 = vpack.c.b16 %v4769, %v4763
    %v5112 = vpack.c.b16 %v4770, %v4764
    %v5113 = vpack.c.b16 %v4771, %v4765
    %v5114 = vpack.c.b16 %v4772, %v4766
    %v5115 = vpack.c.b16 %v4773, %v4767
    %v5116 = vpack.c.b16 %v4774, %v4768
    %v5117 = vpack.c.b16 %v4781, %v4775
    %v5118 = vpack.c.b16 %v4782, %v4776
    %v5119 = vpack.c.b16 %v4783, %v4777
    %v5120 = vpack.c.b16 %v4784, %v4778
    %v5121 = vpack.c.b16 %v4785, %v4779
    %v5122 = vpack.c.b16 %v4786, %v4780
    %v5123 = vpack.c.b16 %v4793, %v4787
    %v5124 = vpack.c.b16 %v4794, %v4788
    %v5125 = vpack.c.b16 %v4795, %v4789
    %v5126 = vpack.c.b16 %v4796, %v4790
    %v5127 = vpack.c.b16 %v4797, %v4791
    %v5128 = vpack.c.b16 %v4798, %v4792
    %v5129 = vpack.c.b16 %v4805, %v4799
    %v5130 = vpack.c.b16 %v4806, %v4800
    %v5131 = vpack.c.b16 %v4807, %v4801
    %v5132 = vpack.c.b16 %v4808, %v4802
    %v5133 = vpack.c.b16 %v4809, %v4803
    %v5134 = vpack.c.b16 %v4810, %v4804
    %v5135 = vpack.c.b16 %v4817, %v4811
    %v5136 = vpack.c.b16 %v4818, %v4812
    %v5137 = vpack.c.b16 %v4819, %v4813
    %v5138 = vpack.c.b16 %v4820, %v4814
    %v5139 = vpack.c.b16 %v4821, %v4815
    %v5140 = vpack.c.b16 %v4822, %v4816
    %v5141 = vpack.c.b16 %v4829, %v4823
    %v5142 = vpack.c.b16 %v4830, %v4824
    %v5143 = vpack.c.b16 %v4831, %v4825
    %v5144 = vpack.c.b16 %v4832, %v4826
    %v5145 = vpack.c.b16 %v4833, %v4827
    %v5146 = vpack.c.b16 %v4834, %v4828
    %v5147 = vpack.c.b16 %v4841, %v4835
    %v5148 = vpack.c.b16 %v4842, %v4836
    %v5149 = vpack.c.b16 %v4843, %v4837
    %v5150 = vpack.c.b16 %v4844, %v4838
    %v5151 = vpack.c.b16 %v4845, %v4839
    %v5152 = vpack.c.b16 %v4846, %v4840
    %v5153 = vpack.c.b16 %v4853, %v4847
    %v5154 = vpack.c.b16 %v4854, %v4848
    %v5155 = vpack.c.b16 %v4855, %v4849
    %v5156 = vpack.c.b16 %v4856, %v4850
    %v5157 = vpack.c.b16 %v4857, %v4851
    %v5158 = vpack.c.b16 %v4858, %v4852
    %v5159 = vpack.c.b16 %v4865, %v4859
    %v5160 = vpack.c.b16 %v4866, %v4860
    %v5161 = vpack.c.b16 %v4867, %v4861
    %v5162 = vpack.c.b16 %v4868, %v4862
    %v5163 = vpack.c.b16 %v4869, %v4863
    %v5164 = vpack.c.b16 %v4870, %v4864
    %v5165 = vpack.c.b16 %v4877, %v4871
    %v5166 = vpack.c.b16 %v4878, %v4872
    %v5167 = vpack.c.b16 %v4879, %v4873
    %v5168 = vpack.c.b16 %v4880, %v4874
    %v5169 = vpack.c.b16 %v4881, %v4875
    %v5170 = vpack.c.b16 %v4882, %v4876
    %5459 = vmatprep.subr.bf16.mxu0 %v4884
    %5460 = vmatpush1.bf16.msra.mxu0 %v4883
    %5461 = vmatprep.subr.bf16.mxu0 %v4890
    %5462 = vmatpush1.bf16.msra.mxu0 %v4889
    %5463 = vmatprep.subr.bf16.mxu0 %v4896
    %5464 = vmatpush1.bf16.msra.mxu0 %v4895
    %5465 = vmatprep.subr.bf16.mxu0 %v4902
    %5466 = vmatpush1.bf16.msra.mxu0 %v4901
    %5467 = vmatprep.subr.bf16.mxu0 %v4908
    %5468 = vmatpush1.bf16.msra.mxu0 %v4907
    %5469 = vmatprep.subr.bf16.mxu0 %v4914
    %5470 = vmatpush1.bf16.msra.mxu0 %v4913
    %5471 = vmatprep.subr.bf16.mxu0 %v4920
    %5472 = vmatpush1.bf16.msra.mxu0 %v4919
    %5473 = vmatprep.subr.bf16.mxu0 %v4926
    %5474 = vmatpush1.bf16.msra.mxu0 %v4925
    %5475 = vmatprep.subr.bf16.mxu0 %v4932
    %5476 = vmatpush1.bf16.msra.mxu0 %v4931
    %5477 = vmatprep.subr.bf16.mxu0 %v4938
    %5478 = vmatpush1.bf16.msra.mxu0 %v4937
    %5479 = vmatprep.subr.bf16.mxu0 %v4944
    %5480 = vmatpush1.bf16.msra.mxu0 %v4943
    %5481 = vmatprep.subr.bf16.mxu0 %v4950
    %5482 = vmatpush1.bf16.msra.mxu0 %v4949
    %5483 = vmatprep.subr.bf16.mxu0 %v4956
    %5484 = vmatpush1.bf16.msra.mxu0 %v4955
    %5485 = vmatprep.subr.bf16.mxu0 %v4962
    %5486 = vmatpush1.bf16.msra.mxu0 %v4961
    %5487 = vmatprep.subr.bf16.mxu0 %v4968
    %5488 = vmatpush1.bf16.msra.mxu0 %v4967
    %5489 = vmatprep.subr.bf16.mxu0 %v4974
    %5490 = vmatpush1.bf16.msra.mxu0 %v4973
    %5491 = vmatprep.mubr.bf16.mxu0 %v3694
    %5492 = vmatmul.mubr.bf16.gmra.mrb[0].mxu0 %v3693
    %v5493 = vpop.f32.mrb[0].mxu0
    %v5494 = vadd.f32 %v3992, %v5493
    %v5495 = vpop.f32.mrb[0].mxu0
    %v5496 = vadd.f32 %v3996, %v5495
    %v5497 = vpop.f32.mrb[0].mxu0
    %v5498 = vpop.f32.mrb[0].mxu0
    %5499 = vdwg.mxu0
    %5500 = vmatprep.subr.bf16.mxu0 %v4980
    %5501 = vmatpush1.bf16.msra.mxu0 %v4979
    %5502 = vmatprep.subr.bf16.mxu0 %v4986
    %5503 = vmatpush1.bf16.msra.mxu0 %v4985
    %5504 = vmatprep.subr.bf16.mxu0 %v4992
    %5505 = vmatpush1.bf16.msra.mxu0 %v4991
    %5506 = vmatprep.subr.bf16.mxu0 %v4998
    %5507 = vmatpush1.bf16.msra.mxu0 %v4997
    %5508 = vmatprep.subr.bf16.mxu0 %v5004
    %5509 = vmatpush1.bf16.msra.mxu0 %v5003
    %5510 = vmatprep.subr.bf16.mxu0 %v5010
    %5511 = vmatpush1.bf16.msra.mxu0 %v5009
    %5512 = vmatprep.subr.bf16.mxu0 %v5016
    %5513 = vmatpush1.bf16.msra.mxu0 %v5015
    %5514 = vmatprep.subr.bf16.mxu0 %v5022
    %5515 = vmatpush1.bf16.msra.mxu0 %v5021
    %5516 = vmatprep.subr.bf16.mxu0 %v5028
    %5517 = vmatpush1.bf16.msra.mxu0 %v5027
    %5518 = vmatprep.subr.bf16.mxu0 %v5034
    %5519 = vmatpush1.bf16.msra.mxu0 %v5033
    %5520 = vmatprep.subr.bf16.mxu0 %v5040
    %5521 = vmatpush1.bf16.msra.mxu0 %v5039
    %5522 = vmatprep.subr.bf16.mxu0 %v5046
    %5523 = vmatpush1.bf16.msra.mxu0 %v5045
    %5524 = vmatprep.subr.bf16.mxu0 %v5052
    %5525 = vmatpush1.bf16.msra.mxu0 %v5051
    %5526 = vmatprep.subr.bf16.mxu0 %v5058
    %5527 = vmatpush1.bf16.msra.mxu0 %v5057
    %5528 = vmatprep.subr.bf16.mxu0 %v5064
    %5529 = vmatpush1.bf16.msra.mxu0 %v5063
    %5530 = vmatprep.subr.bf16.mxu0 %v5070
    %5531 = vmatpush1.bf16.msra.mxu0 %v5069
    %5532 = vmatprep.mubr.bf16.mxu0 %v3696
    %5533 = vmatmul.mubr.bf16.gmra.mrb[0].mxu0 %v3695
    %v5534 = vpop.f32.mrb[0].mxu0
    %v5535 = vadd.f32 %v5494, %v5534
    %v5536 = vpop.f32.mrb[0].mxu0
    %v5537 = vadd.f32 %v5496, %v5536
    %v5538 = vpop.f32.mrb[0].mxu0
    %v5539 = vpop.f32.mrb[0].mxu0
    %5540 = vdwg.mxu0
    %5541 = vmatprep.subr.bf16.mxu0 %v5076
    %5542 = vmatpush1.bf16.msra.mxu0 %v5075
    %5543 = vmatprep.subr.bf16.mxu0 %v5082
    %5544 = vmatpush1.bf16.msra.mxu0 %v5081
    %5545 = vmatprep.subr.bf16.mxu0 %v5088
    %5546 = vmatpush1.bf16.msra.mxu0 %v5087
    %5547 = vmatprep.subr.bf16.mxu0 %v5094
    %5548 = vmatpush1.bf16.msra.mxu0 %v5093
    %5549 = vmatprep.subr.bf16.mxu0 %v5100
    %5550 = vmatpush1.bf16.msra.mxu0 %v5099
    %5551 = vmatprep.subr.bf16.mxu0 %v5106
    %5552 = vmatpush1.bf16.msra.mxu0 %v5105
    %5553 = vmatprep.subr.bf16.mxu0 %v5112
    %5554 = vmatpush1.bf16.msra.mxu0 %v5111
    %5555 = vmatprep.subr.bf16.mxu0 %v5118
    %5556 = vmatpush1.bf16.msra.mxu0 %v5117
    %5557 = vmatprep.subr.bf16.mxu0 %v5124
    %5558 = vmatpush1.bf16.msra.mxu0 %v5123
    %5559 = vmatprep.subr.bf16.mxu0 %v5130
    %5560 = vmatpush1.bf16.msra.mxu0 %v5129
    %5561 = vmatprep.subr.bf16.mxu0 %v5136
    %5562 = vmatpush1.bf16.msra.mxu0 %v5135
    %5563 = vmatprep.subr.bf16.mxu0 %v5142
    %5564 = vmatpush1.bf16.msra.mxu0 %v5141
    %5565 = vmatprep.subr.bf16.mxu0 %v5148
    %5566 = vmatpush1.bf16.msra.mxu0 %v5147
    %5567 = vmatprep.subr.bf16.mxu0 %v5154
    %5568 = vmatpush1.bf16.msra.mxu0 %v5153
    %5569 = vmatprep.subr.bf16.mxu0 %v5160
    %5570 = vmatpush1.bf16.msra.mxu0 %v5159
    %5571 = vmatprep.subr.bf16.mxu0 %v5166
    %5572 = vmatpush1.bf16.msra.mxu0 %v5165
    %5573 = vmatprep.mubr.bf16.mxu0 %v3698
    %5574 = vmatmul.mubr.bf16.gmra.mrb[0].mxu0 %v3697
    %v5575 = vpop.f32.mrb[0].mxu0
    %v5576 = vadd.f32 %v5535, %v5575
    %v5577 = vpop.f32.mrb[0].mxu0
    %v5578 = vadd.f32 %v5537, %v5577
    %v5579 = vpop.f32.mrb[0].mxu0
    %v5580 = vpop.f32.mrb[0].mxu0
    %5581 = vdwg.mxu0
    %5582 = vmatprep.subr.bf16.mxu0 %v4886
    %5583 = vmatpush1.bf16.msra.mxu0 %v4885
    %5584 = vmatprep.subr.bf16.mxu0 %v4892
    %5585 = vmatpush1.bf16.msra.mxu0 %v4891
    %5586 = vmatprep.subr.bf16.mxu0 %v4898
    %5587 = vmatpush1.bf16.msra.mxu0 %v4897
    %5588 = vmatprep.subr.bf16.mxu0 %v4904
    %5589 = vmatpush1.bf16.msra.mxu0 %v4903
    %5590 = vmatprep.subr.bf16.mxu0 %v4910
    %5591 = vmatpush1.bf16.msra.mxu0 %v4909
    %5592 = vmatprep.subr.bf16.mxu0 %v4916
    %5593 = vmatpush1.bf16.msra.mxu0 %v4915
    %5594 = vmatprep.subr.bf16.mxu0 %v4922
    %5595 = vmatpush1.bf16.msra.mxu0 %v4921
    %5596 = vmatprep.subr.bf16.mxu0 %v4928
    %5597 = vmatpush1.bf16.msra.mxu0 %v4927
    %5598 = vmatprep.subr.bf16.mxu0 %v4934
    %5599 = vmatpush1.bf16.msra.mxu0 %v4933
    %5600 = vmatprep.subr.bf16.mxu0 %v4940
    %5601 = vmatpush1.bf16.msra.mxu0 %v4939
    %5602 = vmatprep.subr.bf16.mxu0 %v4946
    %5603 = vmatpush1.bf16.msra.mxu0 %v4945
    %5604 = vmatprep.subr.bf16.mxu0 %v4952
    %5605 = vmatpush1.bf16.msra.mxu0 %v4951
    %5606 = vmatprep.subr.bf16.mxu0 %v4958
    %5607 = vmatpush1.bf16.msra.mxu0 %v4957
    %5608 = vmatprep.subr.bf16.mxu0 %v4964
    %5609 = vmatpush1.bf16.msra.mxu0 %v4963
    %5610 = vmatprep.subr.bf16.mxu0 %v4970
    %5611 = vmatpush1.bf16.msra.mxu0 %v4969
    %5612 = vmatprep.subr.bf16.mxu0 %v4976
    %5613 = vmatpush1.bf16.msra.mxu0 %v4975
    %5614 = vmatprep.mubr.bf16.mxu0 %v3694
    %5615 = vmatmul.mubr.bf16.gmra.mrb[0].mxu0 %v3693
    %v5616 = vpop.f32.mrb[0].mxu0
    %v5617 = vadd.f32 %v4000, %v5616
    %v5618 = vpop.f32.mrb[0].mxu0
    %v5619 = vadd.f32 %v4004, %v5618
    %v5620 = vpop.f32.mrb[0].mxu0
    %v5621 = vpop.f32.mrb[0].mxu0
    %5622 = vdwg.mxu0
    %5623 = vmatprep.subr.bf16.mxu0 %v4982
    %5624 = vmatpush1.bf16.msra.mxu0 %v4981
    %5625 = vmatprep.subr.bf16.mxu0 %v4988
    %5626 = vmatpush1.bf16.msra.mxu0 %v4987
    %5627 = vmatprep.subr.bf16.mxu0 %v4994
    %5628 = vmatpush1.bf16.msra.mxu0 %v4993
    %5629 = vmatprep.subr.bf16.mxu0 %v5000
    %5630 = vmatpush1.bf16.msra.mxu0 %v4999
    %5631 = vmatprep.subr.bf16.mxu0 %v5006
    %5632 = vmatpush1.bf16.msra.mxu0 %v5005
    %5633 = vmatprep.subr.bf16.mxu0 %v5012
    %5634 = vmatpush1.bf16.msra.mxu0 %v5011
    %5635 = vmatprep.subr.bf16.mxu0 %v5018
    %5636 = vmatpush1.bf16.msra.mxu0 %v5017
    %5637 = vmatprep.subr.bf16.mxu0 %v5024
    %5638 = vmatpush1.bf16.msra.mxu0 %v5023
    %5639 = vmatprep.subr.bf16.mxu0 %v5030
    %5640 = vmatpush1.bf16.msra.mxu0 %v5029
    %5641 = vmatprep.subr.bf16.mxu0 %v5036
    %5642 = vmatpush1.bf16.msra.mxu0 %v5035
    %5643 = vmatprep.subr.bf16.mxu0 %v5042
    %5644 = vmatpush1.bf16.msra.mxu0 %v5041
    %5645 = vmatprep.subr.bf16.mxu0 %v5048
    %5646 = vmatpush1.bf16.msra.mxu0 %v5047
    %5647 = vmatprep.subr.bf16.mxu0 %v5054
    %5648 = vmatpush1.bf16.msra.mxu0 %v5053
    %5649 = vmatprep.subr.bf16.mxu0 %v5060
    %5650 = vmatpush1.bf16.msra.mxu0 %v5059
    %5651 = vmatprep.subr.bf16.mxu0 %v5066
    %5652 = vmatpush1.bf16.msra.mxu0 %v5065
    %5653 = vmatprep.subr.bf16.mxu0 %v5072
    %5654 = vmatpush1.bf16.msra.mxu0 %v5071
    %5655 = vmatprep.mubr.bf16.mxu0 %v3696
    %5656 = vmatmul.mubr.bf16.gmra.mrb[0].mxu0 %v3695
    %v5657 = vpop.f32.mrb[0].mxu0
    %v5658 = vadd.f32 %v5617, %v5657
    %v5659 = vpop.f32.mrb[0].mxu0
    %v5660 = vadd.f32 %v5619, %v5659
    %v5661 = vpop.f32.mrb[0].mxu0
    %v5662 = vpop.f32.mrb[0].mxu0
    %5663 = vdwg.mxu0
    %5664 = vmatprep.subr.bf16.mxu0 %v5078
    %5665 = vmatpush1.bf16.msra.mxu0 %v5077
    %5666 = vmatprep.subr.bf16.mxu0 %v5084
    %5667 = vmatpush1.bf16.msra.mxu0 %v5083
    %5668 = vmatprep.subr.bf16.mxu0 %v5090
    %5669 = vmatpush1.bf16.msra.mxu0 %v5089
    %5670 = vmatprep.subr.bf16.mxu0 %v5096
    %5671 = vmatpush1.bf16.msra.mxu0 %v5095
    %5672 = vmatprep.subr.bf16.mxu0 %v5102
    %5673 = vmatpush1.bf16.msra.mxu0 %v5101
    %5674 = vmatprep.subr.bf16.mxu0 %v5108
    %5675 = vmatpush1.bf16.msra.mxu0 %v5107
    %5676 = vmatprep.subr.bf16.mxu0 %v5114
    %5677 = vmatpush1.bf16.msra.mxu0 %v5113
    %5678 = vmatprep.subr.bf16.mxu0 %v5120
    %5679 = vmatpush1.bf16.msra.mxu0 %v5119
    %5680 = vmatprep.subr.bf16.mxu0 %v5126
    %5681 = vmatpush1.bf16.msra.mxu0 %v5125
    %5682 = vmatprep.subr.bf16.mxu0 %v5132
    %5683 = vmatpush1.bf16.msra.mxu0 %v5131
    %5684 = vmatprep.subr.bf16.mxu0 %v5138
    %5685 = vmatpush1.bf16.msra.mxu0 %v5137
    %5686 = vmatprep.subr.bf16.mxu0 %v5144
    %5687 = vmatpush1.bf16.msra.mxu0 %v5143
    %5688 = vmatprep.subr.bf16.mxu0 %v5150
    %5689 = vmatpush1.bf16.msra.mxu0 %v5149
    %5690 = vmatprep.subr.bf16.mxu0 %v5156
    %5691 = vmatpush1.bf16.msra.mxu0 %v5155
    %5692 = vmatprep.subr.bf16.mxu0 %v5162
    %5693 = vmatpush1.bf16.msra.mxu0 %v5161
    %5694 = vmatprep.subr.bf16.mxu0 %v5168
    %5695 = vmatpush1.bf16.msra.mxu0 %v5167
    %5696 = vmatprep.mubr.bf16.mxu0 %v3698
    %5697 = vmatmul.mubr.bf16.gmra.mrb[0].mxu0 %v3697
    %v5698 = vpop.f32.mrb[0].mxu0
    %v5699 = vadd.f32 %v5658, %v5698
    %v5700 = vpop.f32.mrb[0].mxu0
    %v5701 = vadd.f32 %v5660, %v5700
    %v5702 = vpop.f32.mrb[0].mxu0
    %v5703 = vpop.f32.mrb[0].mxu0
    %5704 = vdwg.mxu0
    %5705 = vmatprep.subr.bf16.mxu0 %v4888
    %5706 = vmatpush1.bf16.msra.mxu0 %v4887
    %5707 = vmatprep.subr.bf16.mxu0 %v4894
    %5708 = vmatpush1.bf16.msra.mxu0 %v4893
    %5709 = vmatprep.subr.bf16.mxu0 %v4900
    %5710 = vmatpush1.bf16.msra.mxu0 %v4899
    %5711 = vmatprep.subr.bf16.mxu0 %v4906
    %5712 = vmatpush1.bf16.msra.mxu0 %v4905
    %5713 = vmatprep.subr.bf16.mxu0 %v4912
    %5714 = vmatpush1.bf16.msra.mxu0 %v4911
    %5715 = vmatprep.subr.bf16.mxu0 %v4918
    %5716 = vmatpush1.bf16.msra.mxu0 %v4917
    %5717 = vmatprep.subr.bf16.mxu0 %v4924
    %5718 = vmatpush1.bf16.msra.mxu0 %v4923
    %5719 = vmatprep.subr.bf16.mxu0 %v4930
    %5720 = vmatpush1.bf16.msra.mxu0 %v4929
    %5721 = vmatprep.subr.bf16.mxu0 %v4936
    %5722 = vmatpush1.bf16.msra.mxu0 %v4935
    %5723 = vmatprep.subr.bf16.mxu0 %v4942
    %5724 = vmatpush1.bf16.msra.mxu0 %v4941
    %5725 = vmatprep.subr.bf16.mxu0 %v4948
    %5726 = vmatpush1.bf16.msra.mxu0 %v4947
    %5727 = vmatprep.subr.bf16.mxu0 %v4954
    %5728 = vmatpush1.bf16.msra.mxu0 %v4953
    %5729 = vmatprep.subr.bf16.mxu0 %v4960
    %5730 = vmatpush1.bf16.msra.mxu0 %v4959
    %5731 = vmatprep.subr.bf16.mxu0 %v4966
    %5732 = vmatpush1.bf16.msra.mxu0 %v4965
    %5733 = vmatprep.subr.bf16.mxu0 %v4972
    %5734 = vmatpush1.bf16.msra.mxu0 %v4971
    %5735 = vmatprep.subr.bf16.mxu0 %v4978
    %5736 = vmatpush1.bf16.msra.mxu0 %v4977
    %5737 = vmatprep.mubr.bf16.mxu0 %v3694
    %5738 = vmatmul.mubr.bf16.gmra.mrb[0].mxu0 %v3693
    %v5739 = vpop.f32.mrb[0].mxu0
    %v5740 = vadd.f32 %v4008, %v5739
    %v5741 = vpop.f32.mrb[0].mxu0
    %v5742 = vadd.f32 %v4012, %v5741
    %v5743 = vpop.f32.mrb[0].mxu0
    %v5744 = vpop.f32.mrb[0].mxu0
    %5745 = vdwg.mxu0
    %5746 = vmatprep.subr.bf16.mxu0 %v4984
    %5747 = vmatpush1.bf16.msra.mxu0 %v4983
    %5748 = vmatprep.subr.bf16.mxu0 %v4990
    %5749 = vmatpush1.bf16.msra.mxu0 %v4989
    %5750 = vmatprep.subr.bf16.mxu0 %v4996
    %5751 = vmatpush1.bf16.msra.mxu0 %v4995
    %5752 = vmatprep.subr.bf16.mxu0 %v5002
    %5753 = vmatpush1.bf16.msra.mxu0 %v5001
    %5754 = vmatprep.subr.bf16.mxu0 %v5008
    %5755 = vmatpush1.bf16.msra.mxu0 %v5007
    %5756 = vmatprep.subr.bf16.mxu0 %v5014
    %5757 = vmatpush1.bf16.msra.mxu0 %v5013
    %5758 = vmatprep.subr.bf16.mxu0 %v5020
    %5759 = vmatpush1.bf16.msra.mxu0 %v5019
    %5760 = vmatprep.subr.bf16.mxu0 %v5026
    %5761 = vmatpush1.bf16.msra.mxu0 %v5025
    %5762 = vmatprep.subr.bf16.mxu0 %v5032
    %5763 = vmatpush1.bf16.msra.mxu0 %v5031
    %5764 = vmatprep.subr.bf16.mxu0 %v5038
    %5765 = vmatpush1.bf16.msra.mxu0 %v5037
    %5766 = vmatprep.subr.bf16.mxu0 %v5044
    %5767 = vmatpush1.bf16.msra.mxu0 %v5043
    %5768 = vmatprep.subr.bf16.mxu0 %v5050
    %5769 = vmatpush1.bf16.msra.mxu0 %v5049
    %5770 = vmatprep.subr.bf16.mxu0 %v5056
    %5771 = vmatpush1.bf16.msra.mxu0 %v5055
    %5772 = vmatprep.subr.bf16.mxu0 %v5062
    %5773 = vmatpush1.bf16.msra.mxu0 %v5061
    %5774 = vmatprep.subr.bf16.mxu0 %v5068
    %5775 = vmatpush1.bf16.msra.mxu0 %v5067
    %5776 = vmatprep.subr.bf16.mxu0 %v5074
    %5777 = vmatpush1.bf16.msra.mxu0 %v5073
    %5778 = vmatprep.mubr.bf16.mxu0 %v3696
    %5779 = vmatmul.mubr.bf16.gmra.mrb[0].mxu0 %v3695
    %v5780 = vpop.f32.mrb[0].mxu0
    %v5781 = vadd.f32 %v5740, %v5780
    %v5782 = vpop.f32.mrb[0].mxu0
    %v5783 = vadd.f32 %v5742, %v5782
    %v5784 = vpop.f32.mrb[0].mxu0
    %v5785 = vpop.f32.mrb[0].mxu0
    %5786 = vdwg.mxu0
    %5787 = vmatprep.subr.bf16.mxu0 %v5080
    %5788 = vmatpush1.bf16.msra.mxu0 %v5079
    %5789 = vmatprep.subr.bf16.mxu0 %v5086
    %5790 = vmatpush1.bf16.msra.mxu0 %v5085
    %5791 = vmatprep.subr.bf16.mxu0 %v5092
    %5792 = vmatpush1.bf16.msra.mxu0 %v5091
    %5793 = vmatprep.subr.bf16.mxu0 %v5098
    %5794 = vmatpush1.bf16.msra.mxu0 %v5097
    %5795 = vmatprep.subr.bf16.mxu0 %v5104
    %5796 = vmatpush1.bf16.msra.mxu0 %v5103
    %5797 = vmatprep.subr.bf16.mxu0 %v5110
    %5798 = vmatpush1.bf16.msra.mxu0 %v5109
    %5799 = vmatprep.subr.bf16.mxu0 %v5116
    %5800 = vmatpush1.bf16.msra.mxu0 %v5115
    %5801 = vmatprep.subr.bf16.mxu0 %v5122
    %5802 = vmatpush1.bf16.msra.mxu0 %v5121
    %5803 = vmatprep.subr.bf16.mxu0 %v5128
    %5804 = vmatpush1.bf16.msra.mxu0 %v5127
    %5805 = vmatprep.subr.bf16.mxu0 %v5134
    %5806 = vmatpush1.bf16.msra.mxu0 %v5133
    %5807 = vmatprep.subr.bf16.mxu0 %v5140
    %5808 = vmatpush1.bf16.msra.mxu0 %v5139
    %5809 = vmatprep.subr.bf16.mxu0 %v5146
    %5810 = vmatpush1.bf16.msra.mxu0 %v5145
    %5811 = vmatprep.subr.bf16.mxu0 %v5152
    %5812 = vmatpush1.bf16.msra.mxu0 %v5151
    %5813 = vmatprep.subr.bf16.mxu0 %v5158
    %5814 = vmatpush1.bf16.msra.mxu0 %v5157
    %5815 = vmatprep.subr.bf16.mxu0 %v5164
    %5816 = vmatpush1.bf16.msra.mxu0 %v5163
    %5817 = vmatprep.subr.bf16.mxu0 %v5170
    %5818 = vmatpush1.bf16.msra.mxu0 %v5169
    %5819 = vmatprep.mubr.bf16.mxu0 %v3698
    %5820 = vmatmul.mubr.bf16.gmra.mrb[0].mxu0 %v3697
    %v5821 = vpop.f32.mrb[0].mxu0
    %v5822 = vadd.f32 %v5781, %v5821
    %v5823 = vpop.f32.mrb[0].mxu0
    %v5824 = vadd.f32 %v5783, %v5823
    %v5825 = vpop.f32.mrb[0].mxu0
    %v5826 = vpop.f32.mrb[0].mxu0
    %5827 = vdwg.mxu0
    %v5828 = vmax.f32 %v5576, 0.0
    %v5829 = vmax.f32 %v5578, 0.0
    %v5830 = vmax.f32 %v5699, 0.0
    %v5831 = vmax.f32 %v5701, 0.0
    %v5832 = vmax.f32 %v5822, 0.0
    %v5833 = vmax.f32 %v5824, 0.0
    %v5834 = vpack.c.bf16 %v5828, %v5828
    %v5835 = vpack.c.bf16 %v5829, %v5829
    %v5836 = vpack.c.bf16 %v5830, %v5830
    %v5837 = vpack.c.bf16 %v5831, %v5831
    %v5838 = vpack.c.bf16 %v5832, %v5832
    %v5839 = vpack.c.bf16 %v5833, %v5833
    %v5840 = vld [vmem:[#allocation22] sm:$0xf]
    %v5841 = vld [vmem:[#allocation22 + $0x4] sm:$0xf]
    %v5842 = vld [vmem:[#allocation22 + $0x8] sm:$0xf]
    %v5843 = vld [vmem:[#allocation22 + $0xc] sm:$0xf]
    %v5844 = vld [vmem:[#allocation22 + $0x10] sm:$0xf]
    %v5845 = vld [vmem:[#allocation22 + $0x14] sm:$0xf]
    %v5846 = vld [vmem:[#allocation22 + $0x18] sm:$0xf]
    %v5847 = vld [vmem:[#allocation22 + $0x1c] sm:$0xf]
    %v5848 = vld [vmem:[#allocation22 + $0x20] sm:$0xf]
    %v5849 = vld [vmem:[#allocation22 + $0x24] sm:$0xf]
    %v5850 = vld [vmem:[#allocation22 + $0x28] sm:$0xf]
    %v5851 = vld [vmem:[#allocation22 + $0x2c] sm:$0xf]
    %v5852 = vld [vmem:[#allocation22 + $0x30] sm:$0xf]
    %v5853 = vld [vmem:[#allocation22 + $0x34] sm:$0xf]
    %v5854 = vld [vmem:[#allocation22 + $0x38] sm:$0xf]
    %v5855 = vld [vmem:[#allocation22 + $0x3c] sm:$0xf]
    %v5856 = vld [vmem:[#allocation22 + $0x40] sm:$0xf]
    %v5857 = vld [vmem:[#allocation22 + $0x44] sm:$0xf]
    %v5858 = vld [vmem:[#allocation22 + $0x48] sm:$0xf]
    %v5859 = vld [vmem:[#allocation22 + $0x4c] sm:$0xf]
    %v5860 = vld [vmem:[#allocation22 + $0x50] sm:$0xf]
    %v5861 = vld [vmem:[#allocation22 + $0x54] sm:$0xf]
    %v5862 = vld [vmem:[#allocation22 + $0x58] sm:$0xf]
    %v5863 = vld [vmem:[#allocation22 + $0x5c] sm:$0xf]
    %v5864 = vld [vmem:[#allocation22 + $0x60] sm:$0xf]
    %v5865 = vld [vmem:[#allocation22 + $0x64] sm:$0xf]
    %v5866 = vld [vmem:[#allocation22 + $0x68] sm:$0xf]
    %v5867 = vld [vmem:[#allocation22 + $0x6c] sm:$0xf]
    %v5868 = vld [vmem:[#allocation22 + $0x70] sm:$0xf]
    %v5869 = vld [vmem:[#allocation22 + $0x74] sm:$0xf]
    %v5870 = vld [vmem:[#allocation22 + $0x78] sm:$0xf]
    %v5871 = vld [vmem:[#allocation22 + $0x7c] sm:$0xf]
    %v5872 = vld [vmem:[#allocation22 + $0x80] sm:$0xf]
    %v5873 = vld [vmem:[#allocation22 + $0x84] sm:$0xf]
    %v5874 = vld [vmem:[#allocation22 + $0x88] sm:$0xf]
    %v5875 = vld [vmem:[#allocation22 + $0x8c] sm:$0xf]
    %v5876 = vld [vmem:[#allocation22 + $0x90] sm:$0xf]
    %v5877 = vld [vmem:[#allocation22 + $0x94] sm:$0xf]
    %v5878 = vld [vmem:[#allocation22 + $0x98] sm:$0xf]
    %v5879 = vld [vmem:[#allocation22 + $0x9c] sm:$0xf]
    %v5880 = vld [vmem:[#allocation22 + $0xa0] sm:$0xf]
    %v5881 = vld [vmem:[#allocation22 + $0xa4] sm:$0xf]
    %v5882 = vld [vmem:[#allocation22 + $0xa8] sm:$0xf]
    %v5883 = vld [vmem:[#allocation22 + $0xac] sm:$0xf]
    %v5884 = vld [vmem:[#allocation22 + $0xb0] sm:$0xf]
    %v5885 = vld [vmem:[#allocation22 + $0xb4] sm:$0xf]
    %v5886 = vld [vmem:[#allocation22 + $0xb8] sm:$0xf]
    %v5887 = vld [vmem:[#allocation22 + $0xbc] sm:$0xf]
    %v5888 = vld [vmem:[#allocation22 + $0xc0] sm:$0xf]
    %v5889 = vld [vmem:[#allocation22 + $0xc4] sm:$0xf]
    %v5890 = vld [vmem:[#allocation22 + $0xc8] sm:$0xf]
    %v5891 = vld [vmem:[#allocation22 + $0xcc] sm:$0xf]
    %v5892 = vld [vmem:[#allocation22 + $0xd0] sm:$0xf]
    %v5893 = vld [vmem:[#allocation22 + $0xd4] sm:$0xf]
    %v5894 = vld [vmem:[#allocation22 + $0xd8] sm:$0xf]
    %v5895 = vld [vmem:[#allocation22 + $0xdc] sm:$0xf]
    %v5896 = vld [vmem:[#allocation22 + $0xe0] sm:$0xf]
    %v5897 = vld [vmem:[#allocation22 + $0xe4] sm:$0xf]
    %v5898 = vld [vmem:[#allocation22 + $0xe8] sm:$0xf]
    %v5899 = vld [vmem:[#allocation22 + $0xec] sm:$0xf]
    %v5900 = vld [vmem:[#allocation22 + $0xf0] sm:$0xf]
    %v5901 = vld [vmem:[#allocation22 + $0xf4] sm:$0xf]
    %v5902 = vld [vmem:[#allocation22 + $0xf8] sm:$0xf]
    %v5903 = vld [vmem:[#allocation22 + $0xfc] sm:$0xf]
    %v5904 = vld [vmem:[#allocation22 + $0x100] sm:$0xf]
    %v5905 = vld [vmem:[#allocation22 + $0x104] sm:$0xf]
    %v5906 = vld [vmem:[#allocation22 + $0x108] sm:$0xf]
    %v5907 = vld [vmem:[#allocation22 + $0x10c] sm:$0xf]
    %v5908 = vld [vmem:[#allocation22 + $0x110] sm:$0xf]
    %v5909 = vld [vmem:[#allocation22 + $0x114] sm:$0xf]
    %v5910 = vld [vmem:[#allocation22 + $0x118] sm:$0xf]
    %v5911 = vld [vmem:[#allocation22 + $0x11c] sm:$0xf]
    %v5912 = vld [vmem:[#allocation22 + $0x120] sm:$0xf]
    %v5913 = vld [vmem:[#allocation22 + $0x124] sm:$0xf]
    %v5914 = vld [vmem:[#allocation22 + $0x128] sm:$0xf]
    %v5915 = vld [vmem:[#allocation22 + $0x12c] sm:$0xf]
    %v5916 = vld [vmem:[#allocation22 + $0x130] sm:$0xf]
    %v5917 = vld [vmem:[#allocation22 + $0x134] sm:$0xf]
    %v5918 = vld [vmem:[#allocation22 + $0x138] sm:$0xf]
    %v5919 = vld [vmem:[#allocation22 + $0x13c] sm:$0xf]
    %v5920 = vld [vmem:[#allocation22 + $0x140] sm:$0xf]
    %v5921 = vld [vmem:[#allocation22 + $0x144] sm:$0xf]
    %v5922 = vld [vmem:[#allocation22 + $0x148] sm:$0xf]
    %v5923 = vld [vmem:[#allocation22 + $0x14c] sm:$0xf]
    %v5924 = vld [vmem:[#allocation22 + $0x150] sm:$0xf]
    %v5925 = vld [vmem:[#allocation22 + $0x154] sm:$0xf]
    %v5926 = vld [vmem:[#allocation22 + $0x158] sm:$0xf]
    %v5927 = vld [vmem:[#allocation22 + $0x15c] sm:$0xf]
    %v5928 = vld [vmem:[#allocation22 + $0x160] sm:$0xf]
    %v5929 = vld [vmem:[#allocation22 + $0x164] sm:$0xf]
    %v5930 = vld [vmem:[#allocation22 + $0x168] sm:$0xf]
    %v5931 = vld [vmem:[#allocation22 + $0x16c] sm:$0xf]
    %v5932 = vld [vmem:[#allocation22 + $0x170] sm:$0xf]
    %v5933 = vld [vmem:[#allocation22 + $0x174] sm:$0xf]
    %v5934 = vld [vmem:[#allocation22 + $0x178] sm:$0xf]
    %v5935 = vld [vmem:[#allocation22 + $0x17c] sm:$0xf]
    %v5936 = vld [vmem:[#allocation23] sm:$0x1]
    %v5938 = vlaneseq
    %v5939 = vshrl.u32 %v5938, 7
    %v5940 = vsub.s32 0, %v5939
    %v5941 = vrot.slane %v5936, %v5940
    %v6039 = vunpack.c.l.b16 %v5840
    %v6040 = vunpack.c.l.b16 %v5841
    %v6041 = vunpack.c.l.b16 %v5842
    %v6042 = vunpack.c.l.b16 %v5843
    %v6043 = vunpack.c.l.b16 %v5844
    %v6044 = vunpack.c.l.b16 %v5845
    %v6045 = vunpack.c.l.b16 %v5846
    %v6046 = vunpack.c.l.b16 %v5847
    %v6047 = vunpack.c.l.b16 %v5848
    %v6048 = vunpack.c.l.b16 %v5849
    %v6049 = vunpack.c.l.b16 %v5850
    %v6050 = vunpack.c.l.b16 %v5851
    %v6051 = vunpack.c.l.b16 %v5852
    %v6052 = vunpack.c.l.b16 %v5853
    %v6053 = vunpack.c.l.b16 %v5854
    %v6054 = vunpack.c.l.b16 %v5855
    %v6055 = vunpack.c.l.b16 %v5856
    %v6056 = vunpack.c.l.b16 %v5857
    %v6057 = vunpack.c.l.b16 %v5858
    %v6058 = vunpack.c.l.b16 %v5859
    %v6059 = vunpack.c.l.b16 %v5860
    %v6060 = vunpack.c.l.b16 %v5861
    %v6061 = vunpack.c.l.b16 %v5862
    %v6062 = vunpack.c.l.b16 %v5863
    %v6063 = vunpack.c.l.b16 %v5864
    %v6064 = vunpack.c.l.b16 %v5865
    %v6065 = vunpack.c.l.b16 %v5866
    %v6066 = vunpack.c.l.b16 %v5867
    %v6067 = vunpack.c.l.b16 %v5868
    %v6068 = vunpack.c.l.b16 %v5869
    %v6069 = vunpack.c.l.b16 %v5870
    %v6070 = vunpack.c.l.b16 %v5871
    %v6071 = vunpack.c.l.b16 %v5872
    %v6072 = vunpack.c.l.b16 %v5873
    %v6073 = vunpack.c.l.b16 %v5874
    %v6074 = vunpack.c.l.b16 %v5875
    %v6075 = vunpack.c.l.b16 %v5876
    %v6076 = vunpack.c.l.b16 %v5877
    %v6077 = vunpack.c.l.b16 %v5878
    %v6078 = vunpack.c.l.b16 %v5879
    %v6079 = vunpack.c.l.b16 %v5880
    %v6080 = vunpack.c.l.b16 %v5881
    %v6081 = vunpack.c.l.b16 %v5882
    %v6082 = vunpack.c.l.b16 %v5883
    %v6083 = vunpack.c.l.b16 %v5884
    %v6084 = vunpack.c.l.b16 %v5885
    %v6085 = vunpack.c.l.b16 %v5886
    %v6086 = vunpack.c.l.b16 %v5887
    %v6087 = vunpack.c.l.b16 %v5888
    %v6088 = vunpack.c.l.b16 %v5889
    %v6089 = vunpack.c.l.b16 %v5890
    %v6090 = vunpack.c.l.b16 %v5891
    %v6091 = vunpack.c.l.b16 %v5892
    %v6092 = vunpack.c.l.b16 %v5893
    %v6093 = vunpack.c.l.b16 %v5894
    %v6094 = vunpack.c.l.b16 %v5895
    %v6095 = vunpack.c.l.b16 %v5896
    %v6096 = vunpack.c.l.b16 %v5897
    %v6097 = vunpack.c.l.b16 %v5898
    %v6098 = vunpack.c.l.b16 %v5899
    %v6099 = vunpack.c.l.b16 %v5900
    %v6100 = vunpack.c.l.b16 %v5901
    %v6101 = vunpack.c.l.b16 %v5902
    %v6102 = vunpack.c.l.b16 %v5903
    %v6103 = vunpack.c.l.b16 %v5904
    %v6104 = vunpack.c.l.b16 %v5905
    %v6105 = vunpack.c.l.b16 %v5906
    %v6106 = vunpack.c.l.b16 %v5907
    %v6107 = vunpack.c.l.b16 %v5908
    %v6108 = vunpack.c.l.b16 %v5909
    %v6109 = vunpack.c.l.b16 %v5910
    %v6110 = vunpack.c.l.b16 %v5911
    %v6111 = vunpack.c.l.b16 %v5912
    %v6112 = vunpack.c.l.b16 %v5913
    %v6113 = vunpack.c.l.b16 %v5914
    %v6114 = vunpack.c.l.b16 %v5915
    %v6115 = vunpack.c.l.b16 %v5916
    %v6116 = vunpack.c.l.b16 %v5917
    %v6117 = vunpack.c.l.b16 %v5918
    %v6118 = vunpack.c.l.b16 %v5919
    %v6119 = vunpack.c.l.b16 %v5920
    %v6120 = vunpack.c.l.b16 %v5921
    %v6121 = vunpack.c.l.b16 %v5922
    %v6122 = vunpack.c.l.b16 %v5923
    %v6123 = vunpack.c.l.b16 %v5924
    %v6124 = vunpack.c.l.b16 %v5925
    %v6125 = vunpack.c.l.b16 %v5926
    %v6126 = vunpack.c.l.b16 %v5927
    %v6127 = vunpack.c.l.b16 %v5928
    %v6128 = vunpack.c.l.b16 %v5929
    %v6129 = vunpack.c.l.b16 %v5930
    %v6130 = vunpack.c.l.b16 %v5931
    %v6131 = vunpack.c.l.b16 %v5932
    %v6132 = vunpack.c.l.b16 %v5933
    %v6133 = vunpack.c.l.b16 %v5934
    %v6134 = vunpack.c.l.b16 %v5935
    %v6135 = vpack.c.b16 %v6040, %v6039
    %v6136 = vpack.c.b16 %v6042, %v6041
    %v6137 = vpack.c.b16 %v6044, %v6043
    %v6138 = vpack.c.b16 %v6046, %v6045
    %v6139 = vpack.c.b16 %v6048, %v6047
    %v6140 = vpack.c.b16 %v6050, %v6049
    %v6141 = vpack.c.b16 %v6052, %v6051
    %v6142 = vpack.c.b16 %v6054, %v6053
    %v6143 = vpack.c.b16 %v6056, %v6055
    %v6144 = vpack.c.b16 %v6058, %v6057
    %v6145 = vpack.c.b16 %v6060, %v6059
    %v6146 = vpack.c.b16 %v6062, %v6061
    %v6147 = vpack.c.b16 %v6064, %v6063
    %v6148 = vpack.c.b16 %v6066, %v6065
    %v6149 = vpack.c.b16 %v6068, %v6067
    %v6150 = vpack.c.b16 %v6070, %v6069
    %v6151 = vpack.c.b16 %v6072, %v6071
    %v6152 = vpack.c.b16 %v6074, %v6073
    %v6153 = vpack.c.b16 %v6076, %v6075
    %v6154 = vpack.c.b16 %v6078, %v6077
    %v6155 = vpack.c.b16 %v6080, %v6079
    %v6156 = vpack.c.b16 %v6082, %v6081
    %v6157 = vpack.c.b16 %v6084, %v6083
    %v6158 = vpack.c.b16 %v6086, %v6085
    %v6159 = vpack.c.b16 %v6088, %v6087
    %v6160 = vpack.c.b16 %v6090, %v6089
    %v6161 = vpack.c.b16 %v6092, %v6091
    %v6162 = vpack.c.b16 %v6094, %v6093
    %v6163 = vpack.c.b16 %v6096, %v6095
    %v6164 = vpack.c.b16 %v6098, %v6097
    %v6165 = vpack.c.b16 %v6100, %v6099
    %v6166 = vpack.c.b16 %v6102, %v6101
    %v6167 = vpack.c.b16 %v6104, %v6103
    %v6168 = vpack.c.b16 %v6106, %v6105
    %v6169 = vpack.c.b16 %v6108, %v6107
    %v6170 = vpack.c.b16 %v6110, %v6109
    %v6171 = vpack.c.b16 %v6112, %v6111
    %v6172 = vpack.c.b16 %v6114, %v6113
    %v6173 = vpack.c.b16 %v6116, %v6115
    %v6174 = vpack.c.b16 %v6118, %v6117
    %v6175 = vpack.c.b16 %v6120, %v6119
    %v6176 = vpack.c.b16 %v6122, %v6121
    %v6177 = vpack.c.b16 %v6124, %v6123
    %v6178 = vpack.c.b16 %v6126, %v6125
    %v6179 = vpack.c.b16 %v6128, %v6127
    %v6180 = vpack.c.b16 %v6130, %v6129
    %v6181 = vpack.c.b16 %v6132, %v6131
    %v6182 = vpack.c.b16 %v6134, %v6133
    %6231 = vmatprep.subr.bf16.mxu0 0
    %6232 = vmatpush1.bf16.msra.mxu0 %v6135
    %6233 = vmatprep.subr.bf16.mxu0 0
    %6234 = vmatpush1.bf16.msra.mxu0 %v6136
    %6235 = vmatprep.subr.bf16.mxu0 0
    %6236 = vmatpush1.bf16.msra.mxu0 %v6137
    %6237 = vmatprep.subr.bf16.mxu0 0
    %6238 = vmatpush1.bf16.msra.mxu0 %v6138
    %6239 = vmatprep.subr.bf16.mxu0 0
    %6240 = vmatpush1.bf16.msra.mxu0 %v6139
    %6241 = vmatprep.subr.bf16.mxu0 0
    %6242 = vmatpush1.bf16.msra.mxu0 %v6140
    %6243 = vmatprep.subr.bf16.mxu0 0
    %6244 = vmatpush1.bf16.msra.mxu0 %v6141
    %6245 = vmatprep.subr.bf16.mxu0 0
    %6246 = vmatpush1.bf16.msra.mxu0 %v6142
    %6247 = vmatprep.subr.bf16.mxu0 0
    %6248 = vmatpush1.bf16.msra.mxu0 %v6143
    %6249 = vmatprep.subr.bf16.mxu0 0
    %6250 = vmatpush1.bf16.msra.mxu0 %v6144
    %6251 = vmatprep.subr.bf16.mxu0 0
    %6252 = vmatpush1.bf16.msra.mxu0 %v6145
    %6253 = vmatprep.subr.bf16.mxu0 0
    %6254 = vmatpush1.bf16.msra.mxu0 %v6146
    %6255 = vmatprep.subr.bf16.mxu0 0
    %6256 = vmatpush1.bf16.msra.mxu0 %v6147
    %6257 = vmatprep.subr.bf16.mxu0 0
    %6258 = vmatpush1.bf16.msra.mxu0 %v6148
    %6259 = vmatprep.subr.bf16.mxu0 0
    %6260 = vmatpush1.bf16.msra.mxu0 %v6149
    %6261 = vmatprep.subr.bf16.mxu0 0
    %6262 = vmatpush1.bf16.msra.mxu0 %v6150
    %6263 = vmatprep.mubr.bf16.mxu0 %v5835
    %6264 = vmatmul.mubr.bf16.gmra.mrb[0].mxu0 %v5834
    %v6265 = vpop.f32.mrb[0].mxu0
    %v6266 = vadd.f32 %v5941, %v6265
    %v6267 = vpop.f32.mrb[0].mxu0
    %v6268 = vpop.f32.mrb[0].mxu0
    %v6269 = vpop.f32.mrb[0].mxu0
    %6270 = vdwg.mxu0
    %6271 = vmatprep.subr.bf16.mxu0 0
    %6272 = vmatpush1.bf16.msra.mxu0 %v6151
    %6273 = vmatprep.subr.bf16.mxu0 0
    %6274 = vmatpush1.bf16.msra.mxu0 %v6152
    %6275 = vmatprep.subr.bf16.mxu0 0
    %6276 = vmatpush1.bf16.msra.mxu0 %v6153
    %6277 = vmatprep.subr.bf16.mxu0 0
    %6278 = vmatpush1.bf16.msra.mxu0 %v6154
    %6279 = vmatprep.subr.bf16.mxu0 0
    %6280 = vmatpush1.bf16.msra.mxu0 %v6155
    %6281 = vmatprep.subr.bf16.mxu0 0
    %6282 = vmatpush1.bf16.msra.mxu0 %v6156
    %6283 = vmatprep.subr.bf16.mxu0 0
    %6284 = vmatpush1.bf16.msra.mxu0 %v6157
    %6285 = vmatprep.subr.bf16.mxu0 0
    %6286 = vmatpush1.bf16.msra.mxu0 %v6158
    %6287 = vmatprep.subr.bf16.mxu0 0
    %6288 = vmatpush1.bf16.msra.mxu0 %v6159
    %6289 = vmatprep.subr.bf16.mxu0 0
    %6290 = vmatpush1.bf16.msra.mxu0 %v6160
    %6291 = vmatprep.subr.bf16.mxu0 0
    %6292 = vmatpush1.bf16.msra.mxu0 %v6161
    %6293 = vmatprep.subr.bf16.mxu0 0
    %6294 = vmatpush1.bf16.msra.mxu0 %v6162
    %6295 = vmatprep.subr.bf16.mxu0 0
    %6296 = vmatpush1.bf16.msra.mxu0 %v6163
    %6297 = vmatprep.subr.bf16.mxu0 0
    %6298 = vmatpush1.bf16.msra.mxu0 %v6164
    %6299 = vmatprep.subr.bf16.mxu0 0
    %6300 = vmatpush1.bf16.msra.mxu0 %v6165
    %6301 = vmatprep.subr.bf16.mxu0 0
    %6302 = vmatpush1.bf16.msra.mxu0 %v6166
    %6303 = vmatprep.mubr.bf16.mxu0 %v5837
    %6304 = vmatmul.mubr.bf16.gmra.mrb[0].mxu0 %v5836
    %v6305 = vpop.f32.mrb[0].mxu0
    %v6306 = vadd.f32 %v6266, %v6305
    %v6307 = vpop.f32.mrb[0].mxu0
    %v6308 = vpop.f32.mrb[0].mxu0
    %v6309 = vpop.f32.mrb[0].mxu0
    %6310 = vdwg.mxu0
    %6311 = vmatprep.subr.bf16.mxu0 0
    %6312 = vmatpush1.bf16.msra.mxu0 %v6167
    %6313 = vmatprep.subr.bf16.mxu0 0
    %6314 = vmatpush1.bf16.msra.mxu0 %v6168
    %6315 = vmatprep.subr.bf16.mxu0 0
    %6316 = vmatpush1.bf16.msra.mxu0 %v6169
    %6317 = vmatprep.subr.bf16.mxu0 0
    %6318 = vmatpush1.bf16.msra.mxu0 %v6170
    %6319 = vmatprep.subr.bf16.mxu0 0
    %6320 = vmatpush1.bf16.msra.mxu0 %v6171
    %6321 = vmatprep.subr.bf16.mxu0 0
    %6322 = vmatpush1.bf16.msra.mxu0 %v6172
    %6323 = vmatprep.subr.bf16.mxu0 0
    %6324 = vmatpush1.bf16.msra.mxu0 %v6173
    %6325 = vmatprep.subr.bf16.mxu0 0
    %6326 = vmatpush1.bf16.msra.mxu0 %v6174
    %6327 = vmatprep.subr.bf16.mxu0 0
    %6328 = vmatpush1.bf16.msra.mxu0 %v6175
    %6329 = vmatprep.subr.bf16.mxu0 0
    %6330 = vmatpush1.bf16.msra.mxu0 %v6176
    %6331 = vmatprep.subr.bf16.mxu0 0
    %6332 = vmatpush1.bf16.msra.mxu0 %v6177
    %6333 = vmatprep.subr.bf16.mxu0 0
    %6334 = vmatpush1.bf16.msra.mxu0 %v6178
    %6335 = vmatprep.subr.bf16.mxu0 0
    %6336 = vmatpush1.bf16.msra.mxu0 %v6179
    %6337 = vmatprep.subr.bf16.mxu0 0
    %6338 = vmatpush1.bf16.msra.mxu0 %v6180
    %6339 = vmatprep.subr.bf16.mxu0 0
    %6340 = vmatpush1.bf16.msra.mxu0 %v6181
    %6341 = vmatprep.subr.bf16.mxu0 0
    %6342 = vmatpush1.bf16.msra.mxu0 %v6182
    %6343 = vmatprep.mubr.bf16.mxu0 %v5839
    %6344 = vmatmul.mubr.bf16.gmra.mrb[0].mxu0 %v5838
    %v6345 = vpop.f32.mrb[0].mxu0
    %v6346 = vadd.f32 %v6306, %v6345
    %v6347 = vpop.f32.mrb[0].mxu0
    %v6348 = vpop.f32.mrb[0].mxu0
    %v6349 = vpop.f32.mrb[0].mxu0
    %6350 = vdwg.mxu0
    %v6351 = vtanh.pop %v6346
    %6352 = vst [vmem:[#allocation25] sm:$0xff] %v6351
    %6353 = vst [vmem:[#allocation26] sm:$0xff] %v3231
    %6354 = vst [vmem:[#allocation28] sm:$0xff] %v3238
    // Predicated region
    $region114: #{tpu_custom_call.1} parent=1 // pred_check
      _
    $region115: #{tpu_custom_call.1} parent=1 // pred_check_branch
      %6356 = sbr.rel (0) target = $region117
    $region116: #{tpu_custom_call.1} parent=1 // pred_region
      %s6358 = ssub.s32 128, 128
      %6359 = vsyncadd [#allocation4], %s6358
      %s6361 = sshll.u32 [#allocation25], 4
      %s6362 = int_to_ptr.vmem [resolvable:$true] %s6361
      %6364 = dma.vmem_to_hbm [thread:$0]  %s6362, 128, %s14, [#allocation4]
    $region117: #{tpu_custom_call.1} parent=1 // pred_fallthru
      _
    // Predicated region
    $region118: #{tpu_custom_call.1} parent=1 // pred_check
      _
    $region119: #{tpu_custom_call.1} parent=1 // pred_check_branch
      %6366 = sbr.rel (0) target = $region121
    $region120: #{tpu_custom_call.1} parent=1 // pred_region
      %s6368 = ssub.s32 128, 128
      %6369 = vsyncadd [#allocation27], %s6368
      %s6371 = sshll.u32 [#allocation26], 4
      %s6372 = int_to_ptr.vmem [resolvable:$true] %s6371
      %6374 = dma.vmem_to_hbm [thread:$0]  %s6372, 128, %s15, [#allocation27]
    $region121: #{tpu_custom_call.1} parent=1 // pred_fallthru
      _
    // Predicated region
    $region122: #{tpu_custom_call.1} parent=1 // pred_check
      _
    $region123: #{tpu_custom_call.1} parent=1 // pred_check_branch
      %6376 = sbr.rel (0) target = $region125
    $region124: #{tpu_custom_call.1} parent=1 // pred_region
      %s6378 = ssub.s32 128, 128
      %6379 = vsyncadd [#allocation27], %s6378
      %s6381 = sshll.u32 [#allocation28], 4
      %s6382 = int_to_ptr.vmem [resolvable:$true] %s6381
      %6384 = dma.vmem_to_hbm [thread:$0]  %s6382, 128, %s16, [#allocation27]
    $region125: #{tpu_custom_call.1} parent=1 // pred_fallthru
      _
    // Predicated region
    $region126: #{tpu_custom_call.1} parent=1 // pred_check
      _
    $region127: #{tpu_custom_call.1} parent=1 // pred_check_branch
      %6386 = sbr.rel (0) target = $region129
    $region128: #{tpu_custom_call.1} parent=1 // pred_region
      %6387 = dma.done [#allocation4], 128
    $region129: #{tpu_custom_call.1} parent=1 // pred_fallthru
      _
    // Predicated region
    $region130: #{tpu_custom_call.1} parent=1 // pred_check
      _
    $region131: #{tpu_custom_call.1} parent=1 // pred_check_branch
      %6389 = sbr.rel (0) target = $region133
    $region132: #{tpu_custom_call.1} parent=1 // pred_region
      %6390 = dma.done [#allocation27], 128
    $region133: #{tpu_custom_call.1} parent=1 // pred_fallthru
      _
    // Predicated region
    $region134: #{tpu_custom_call.1} parent=1 // pred_check
      _
    $region135: #{tpu_custom_call.1} parent=1 // pred_check_branch
      %6392 = sbr.rel (0) target = $region137
    $region136: #{tpu_custom_call.1} parent=1 // pred_region
      %6393 = dma.done [#allocation27], 128
    $region137: #{tpu_custom_call.1} parent=1 // pred_fallthru
      _
    %6394 = vsyncpa [#allocation3], 1
    %6395 = vsyncpa [#allocation6], 1
    %6396 = vsyncpa [#allocation9], 1
    %6397 = vsyncpa [#allocation12], 1
    %6398 = vsyncpa [#allocation15], 1
    %6399 = vsyncpa [#allocation18], 1
    %6400 = vsyncpa [#allocation21], 1
    %6401 = vsyncpa [#allocation24], 1
    %6402 = vsyncpa [#allocation4], 1
    %6403 = vsyncpa [#allocation27], 1

</llo_original>
